<compile_context>
chip_gen: v7x
topology: tpu7x:2x2x1
jax: 0.10.0
libtpu: 0.0.40
codegen_flags: <defaults>
</compile_context>

<pallas_src>
import jax
import jax.numpy as jnp
from jax.experimental import pallas as pl
from jax.experimental.pallas import tpu as pltpu


def dnn2d_kernel(xt_ref, w1t_ref, b1_ref, w2t_ref, b2_ref, wft_ref, bf_ref,
                 out_ref):
    xt = xt_ref[...]          # (2, T)   batch on lanes
    w1t = w1t_ref[...]        # (H, 2)

    # Layer 1: K=2, so use VPU broadcast FMAs instead of a tiny MXU matmul.
    # eigenvalue contribution is pre-folded into b1_ref (b1_eff).
    l1 = (w1t[:, 0:1] * xt[0:1, :]
          + w1t[:, 1:2] * xt[1:2, :]
          + b1_ref[...])                                   # (H, T)
    h1 = jnp.sin(l1)

    # Layer 2 on the MXU: (H, H) @ (H, T) -> (H, T)
    l2 = jnp.dot(w2t_ref[...], h1,
                 preferred_element_type=jnp.float32) + b2_ref[...]
    h2 = jnp.sin(l2)

    # Final: (1, H) @ (H, T) -> (1, T)   (lane-dense output block)
    out = jnp.dot(wft_ref[...], h2,
                  preferred_element_type=jnp.float32) + bf_ref[...]
    out_ref[...] = out.astype(out_ref.dtype)


def dnn2d_forward(x, params, *, tile_n=512):
    """Returns (out, eigenvalue), matching the PyTorch DNN2D.forward."""
    N, F = x.shape
    assert F == 2, "DNN2D expects 2-D coordinates as input (N, 2)"
    H = params["w1"].shape[1]

    # Keep the tile a multiple of 128 (lane-dense), but don't over-pad tiny batches.
    tile_n = min(tile_n, max(128, -(-N // 128) * 128))
    n_pad = -(-N // tile_n) * tile_n

    # ---- host-side (wrapper) preprocessing: constant folds + layout flips ----
    ein = params["ein_w"][0, 0]                                # scalar
    w1 = params["w1"]                                          # (3, H)
    # Fold the constant eigenvalue column of the concat into the bias.
    b1_eff = (params["b1"] + ein * w1[2:3, :]).reshape(H, 1)   # (H, 1)
    w1t = w1[:2, :].T                                          # (H, 2)
    w2t = params["w2"].T                                       # (H, H)
    b2 = params["b2"].reshape(H, 1)                            # (H, 1)
    wft = params["wf"].T                                       # (1, H)
    bf = params["bf"].reshape(1, 1)                            # (1, 1)

    # Batch on lanes: (2, n_pad)
    x_t = jnp.pad(x, ((0, n_pad - N), (0, 0))).T

    grid = (n_pad // tile_n,)
    in_specs = [
        pl.BlockSpec((2, tile_n), lambda i: (0, i)),   # x^T tile
        pl.BlockSpec((H, 2), lambda i: (0, 0)),        # Lin_1 weight (spatial cols), transposed
        pl.BlockSpec((H, 1), lambda i: (0, 0)),        # Lin_1 bias with eigenvalue folded in
        pl.BlockSpec((H, H), lambda i: (0, 0)),        # Lin_2 weight, transposed
        pl.BlockSpec((H, 1), lambda i: (0, 0)),        # Lin_2 bias
        pl.BlockSpec((1, H), lambda i: (0, 0)),        # final weight, transposed
        pl.BlockSpec((1, 1), lambda i: (0, 0)),        # final bias
    ]
    # NOTE: for large hidden_size on v7x, add pipeline_mode=pl.Buffered(1) on the
    # constant-index weight specs and set vmem_limit_bytes; unnecessary at H=32.
    out_specs = pl.BlockSpec((1, tile_n), lambda i: (0, i))
    out_shape = jax.ShapeDtypeStruct((1, n_pad), x.dtype)

    out_t = pl.pallas_call(
        dnn2d_kernel,
        out_shape=out_shape,
        grid=grid,
        in_specs=in_specs,
        out_specs=out_specs,
        compiler_params=pltpu.CompilerParams(
            dimension_semantics=("parallel",)),
    )(x_t, w1t, b1_eff, w2t, b2, wft, bf)

    out = out_t[:, :N].T                                       # (N, 1)
    # eigenvalue = Ein(ones(N,1)) is a constant broadcast; emit it in the wrapper.
    eigenvalue = jnp.full((N, 1), ein, dtype=x.dtype)
    return out, eigenvalue


def init_params(key, hidden_size):
    """Deterministic synthetic parameters with the module's shapes.
    Weights stored transposed: (in_features, out_features)."""
    ks = jax.random.split(key, 7)
    scale = 0.5
    params = {
        # Ein: Linear(1,1,bias=False), weight.data.fill_(1.0)
        "ein_w": jnp.ones((1, 1), jnp.float32),
        # Lin_1: Linear(3, H)
        "w1": scale * jax.random.normal(ks[0], (3, hidden_size), jnp.float32),
        "b1": scale * jax.random.normal(ks[1], (1, hidden_size), jnp.float32),
        # Lin_2: Linear(H, H)
        "w2": scale * jax.random.normal(ks[2], (hidden_size, hidden_size), jnp.float32),
        "b2": scale * jax.random.normal(ks[3], (1, hidden_size), jnp.float32),
        # final: Linear(H, 1)
        "wf": scale * jax.random.normal(ks[4], (hidden_size, 1), jnp.float32),
        "bf": scale * jax.random.normal(ks[5], (1, 1), jnp.float32),
        # Lin_3: Linear(H, H) exists in __init__ but is unused in forward.
    }
    return params


def reference_forward(x, params):
    """Pure-JAX reference mirroring the PyTorch forward exactly."""
    N = x.shape[0]
    eigenvalue = jnp.ones((N, 1), x.dtype) @ params["ein_w"]
    xe = jnp.concatenate([x, eigenvalue], axis=1)
    h1 = jnp.sin(xe @ params["w1"] + params["b1"])
    h2 = jnp.sin(h1 @ params["w2"] + params["b2"])
    out = h2 @ params["wf"] + params["bf"]
    return out, eigenvalue


if __name__ == "__main__":
    key = jax.random.PRNGKey(0)
    k_x, k_p = jax.random.split(key)

    # N chosen so that with tile_n=512 the grid has 2 iterations (both v7x TCs busy).
    N, HIDDEN = 1024, 32
    # x: 2-D coordinates (e.g. (x, y) points in the square well)
    x = jax.random.uniform(k_x, (N, 2), jnp.float32)
    params = init_params(k_p, HIDDEN)

    out, eig = dnn2d_forward(x, params, tile_n=512)
    out = jax.block_until_ready(out)
    eig = jax.block_until_ready(eig)

    ref_out, ref_eig = reference_forward(x, params)
    assert out.shape == (N, 1) and eig.shape == (N, 1)
    assert jnp.allclose(out, ref_out, atol=1e-5, rtol=1e-5)
    assert jnp.allclose(eig, ref_eig, atol=1e-6, rtol=1e-6)

    print("KERNEL_OK")
</pallas_src>

<mosaic_0001>
module attributes {stable_mosaic.version = 11 : i64} {
  func.func @dnn2d_kernel(%arg0: i32, %arg1: memref<2x512xf32, #tpu.memory_space<vmem>>, %arg2: memref<32x2xf32, #tpu.memory_space<vmem>>, %arg3: memref<32x1xf32, #tpu.memory_space<vmem>>, %arg4: memref<32x32xf32, #tpu.memory_space<vmem>>, %arg5: memref<32x1xf32, #tpu.memory_space<vmem>>, %arg6: memref<1x32xf32, #tpu.memory_space<vmem>>, %arg7: memref<1x1xf32, #tpu.memory_space<vmem>>, %arg8: memref<1x512xf32, #tpu.memory_space<vmem>>) attributes {dimension_semantics = [#tpu.dimension_semantics<parallel>], iteration_bounds = array<i64: 2>, scalar_prefetch = 0 : i64, scratch_operands = 0 : i64, tpu.core_type = #tpu.core_type<tc>, window_params = [{transform_indices = @transform_0, window_bounds = array<i64: 2, 512>}, {pipeline_mode = #tpu.pipeline_mode<synchronous>, transform_indices = @transform_1, window_bounds = array<i64: 32, 2>}, {pipeline_mode = #tpu.pipeline_mode<synchronous>, transform_indices = @transform_2, window_bounds = array<i64: 32, 1>}, {pipeline_mode = #tpu.pipeline_mode<synchronous>, transform_indices = @transform_3, window_bounds = array<i64: 32, 32>}, {pipeline_mode = #tpu.pipeline_mode<synchronous>, transform_indices = @transform_4, window_bounds = array<i64: 32, 1>}, {pipeline_mode = #tpu.pipeline_mode<synchronous>, transform_indices = @transform_5, window_bounds = array<i64: 1, 32>}, {pipeline_mode = #tpu.pipeline_mode<synchronous>, transform_indices = @transform_6, window_bounds = array<i64: 1, 1>}, {transform_indices = @transform_7, window_bounds = array<i64: 1, 512>}]} {
    %c0 = arith.constant 0 : index
    %c0_0 = arith.constant 0 : index
    %0 = vector.load %arg1[%c0, %c0_0] : memref<2x512xf32, #tpu.memory_space<vmem>>, vector<2x512xf32>
    %c0_1 = arith.constant 0 : index
    %c0_2 = arith.constant 0 : index
    %1 = vector.load %arg2[%c0_1, %c0_2] : memref<32x2xf32, #tpu.memory_space<vmem>>, vector<32x2xf32>
    %2 = vector.extract_strided_slice %1 {offsets = [0, 0], sizes = [32, 1], strides = [1, 1]} : vector<32x2xf32> to vector<32x1xf32>
    %3 = vector.extract_strided_slice %0 {offsets = [0, 0], sizes = [1, 512], strides = [1, 1]} : vector<2x512xf32> to vector<1x512xf32>
    %4 = vector.broadcast %2 : vector<32x1xf32> to vector<32x512xf32>
    %5 = vector.broadcast %3 : vector<1x512xf32> to vector<32x512xf32>
    %6 = arith.mulf %4, %5 : vector<32x512xf32>
    %7 = vector.extract_strided_slice %1 {offsets = [0, 1], sizes = [32, 1], strides = [1, 1]} : vector<32x2xf32> to vector<32x1xf32>
    %8 = vector.extract_strided_slice %0 {offsets = [1, 0], sizes = [1, 512], strides = [1, 1]} : vector<2x512xf32> to vector<1x512xf32>
    %9 = vector.broadcast %7 : vector<32x1xf32> to vector<32x512xf32>
    %10 = vector.broadcast %8 : vector<1x512xf32> to vector<32x512xf32>
    %11 = arith.mulf %9, %10 : vector<32x512xf32>
    %12 = arith.addf %6, %11 : vector<32x512xf32>
    %c0_3 = arith.constant 0 : index
    %c0_4 = arith.constant 0 : index
    %13 = vector.load %arg3[%c0_3, %c0_4] : memref<32x1xf32, #tpu.memory_space<vmem>>, vector<32x1xf32>
    %14 = vector.broadcast %13 : vector<32x1xf32> to vector<32x512xf32>
    %15 = arith.addf %12, %14 : vector<32x512xf32>
    %16 = math.sin %15 : vector<32x512xf32>
    %c0_5 = arith.constant 0 : index
    %c0_6 = arith.constant 0 : index
    %17 = vector.load %arg4[%c0_5, %c0_6] : memref<32x32xf32, #tpu.memory_space<vmem>>, vector<32x32xf32>
    %cst = arith.constant dense<0.000000e+00> : vector<32x512xf32>
    %18 = tpu.matmul %17, %16, %cst {dimension_numbers = #tpu.dot_dimension_numbers<[1], [0], [0], [1], [0, 0, 1, 1], [], []>} : vector<32x32xf32>, vector<32x512xf32>, vector<32x512xf32> -> vector<32x512xf32>
    %c0_7 = arith.constant 0 : index
    %c0_8 = arith.constant 0 : index
    %19 = vector.load %arg5[%c0_7, %c0_8] : memref<32x1xf32, #tpu.memory_space<vmem>>, vector<32x1xf32>
    %20 = vector.broadcast %19 : vector<32x1xf32> to vector<32x512xf32>
    %21 = arith.addf %18, %20 : vector<32x512xf32>
    %22 = math.sin %21 : vector<32x512xf32>
    %c0_9 = arith.constant 0 : index
    %c0_10 = arith.constant 0 : index
    %23 = vector.load %arg6[%c0_9, %c0_10] : memref<1x32xf32, #tpu.memory_space<vmem>>, vector<1x32xf32>
    %cst_11 = arith.constant dense<0.000000e+00> : vector<1x512xf32>
    %24 = tpu.matmul %23, %22, %cst_11 {dimension_numbers = #tpu.dot_dimension_numbers<[1], [0], [0], [1], [0, 0, 1, 1], [], []>} : vector<1x32xf32>, vector<32x512xf32>, vector<1x512xf32> -> vector<1x512xf32>
    %c0_12 = arith.constant 0 : index
    %c0_13 = arith.constant 0 : index
    %25 = vector.load %arg7[%c0_12, %c0_13] : memref<1x1xf32, #tpu.memory_space<vmem>>, vector<1x1xf32>
    %26 = vector.broadcast %25 : vector<1x1xf32> to vector<1x512xf32>
    %27 = arith.addf %24, %26 : vector<1x512xf32>
    %c0_14 = arith.constant 0 : index
    %c0_15 = arith.constant 0 : index
    %28 = vector.load %arg8[%c0_14, %c0_15] : memref<1x512xf32, #tpu.memory_space<vmem>>, vector<1x512xf32>
    tpu.vector_store %arg8[%c0_14, %c0_15], %27 {strides = array<i32>} : memref<1x512xf32, #tpu.memory_space<vmem>>, vector<1x512xf32>,
    return
  }
  func.func @transform_0(%arg0: i32) -> (i32, i32) {
    %c0_i32 = arith.constant 0 : i32
    %c0_i32_0 = arith.constant 0 : i32
    return %c0_i32, %arg0 : i32, i32
  }
  func.func @transform_1(%arg0: i32) -> (i32, i32) {
    %c0_i32 = arith.constant 0 : i32
    %c0_i32_0 = arith.constant 0 : i32
    %c0_i32_1 = arith.constant 0 : i32
    return %c0_i32, %c0_i32_0 : i32, i32
  }
  func.func @transform_2(%arg0: i32) -> (i32, i32) {
    %c0_i32 = arith.constant 0 : i32
    %c0_i32_0 = arith.constant 0 : i32
    %c0_i32_1 = arith.constant 0 : i32
    return %c0_i32, %c0_i32_0 : i32, i32
  }
  func.func @transform_3(%arg0: i32) -> (i32, i32) {
    %c0_i32 = arith.constant 0 : i32
    %c0_i32_0 = arith.constant 0 : i32
    %c0_i32_1 = arith.constant 0 : i32
    return %c0_i32, %c0_i32_0 : i32, i32
  }
  func.func @transform_4(%arg0: i32) -> (i32, i32) {
    %c0_i32 = arith.constant 0 : i32
    %c0_i32_0 = arith.constant 0 : i32
    %c0_i32_1 = arith.constant 0 : i32
    return %c0_i32, %c0_i32_0 : i32, i32
  }
  func.func @transform_5(%arg0: i32) -> (i32, i32) {
    %c0_i32 = arith.constant 0 : i32
    %c0_i32_0 = arith.constant 0 : i32
    %c0_i32_1 = arith.constant 0 : i32
    return %c0_i32, %c0_i32_0 : i32, i32
  }
  func.func @transform_6(%arg0: i32) -> (i32, i32) {
    %c0_i32 = arith.constant 0 : i32
    %c0_i32_0 = arith.constant 0 : i32
    %c0_i32_1 = arith.constant 0 : i32
    return %c0_i32, %c0_i32_0 : i32, i32
  }
  func.func @transform_7(%arg0: i32) -> (i32, i32) {
    %c0_i32 = arith.constant 0 : i32
    %c0_i32_0 = arith.constant 0 : i32
    return %c0_i32, %arg0 : i32, i32
  }
}

</mosaic_0001>

<llo_original>
// kernel: tpu_custom_call.1
$region0: #{tpu_custom_call.1}
  #allocation0 [shape = 'u32[]', space=smem, size = 0x4, offset = 0x4, fixed_abs, tag = 'smem constant byte address 0x4 - core index']
  #allocation1 [shape = 'u32[144,128]{1,0:T(1,128)}', space=vmem, size = 0x12000, scoped, tag = 'internal scratch']
  #allocation2 [shape = 'f32[1,1]{1,0:T(1,128)S(1)}', space=vmem, size = 0x200, scoped, tag = 'scoped memory for tpu_custom_call.1']
  %s0 = inlined_call_operand.vmem [shape: f32[2,1024], index: 0, kind: input, shape index: {}]
  %s1 = inlined_call_operand.vmem [shape: f32[32,2], index: 1, kind: input, shape index: {}]
  %s2 = inlined_call_operand.vmem [shape: f32[32,1], index: 2, kind: input, shape index: {}]
  %s3 = inlined_call_operand.vmem [shape: f32[32,32], index: 3, kind: input, shape index: {}]
  %s4 = inlined_call_operand.vmem [shape: f32[32,1], index: 4, kind: input, shape index: {}]
  %s5 = inlined_call_operand.vmem [shape: f32[1,32], index: 5, kind: input, shape index: {}]
  %s6 = inlined_call_operand.<no memory space> [shape: f32[1,1], index: 6, kind: input, shape index: {}]
  %s7 = inlined_call_operand.hbm [shape: f32[1,1024], index: 7, kind: output, shape index: {}]
  %s8 = sld [smem:[#allocation0]]
  $region61: #{tpu_custom_call.1} parent=0
    _
  %s10 = ssub.s32 1, %s8
  %s11 = scalar_select 0, %s10, %s8
  %v12 = vstv %s6
  %13 = vst [vmem:[#allocation2] sm:$0x1] %v12
  $region1: #{tpu_custom_call.1} parent=0
    #allocation3 [shape = 'u8[4096]{0}', space=vmem, size = 0x1000, scoped, tag = 'output window, operand 0']
    #allocation4 [shape = 's32[2]{0}', space=sflag, size = 0x8, scoped, tag = 'scoped memory for tpu_custom_call.1']
    %14 = vsyncpa [#allocation4], 0
    %s15 = scalar_lea.sflag [#allocation4], 1
    %16 = vsyncpa %s15, 0
    loop: start=0, step=1, limit=4
    $region2: #{tpu_custom_call.1} parent=1 // loop_pre_header
      _
    $region3: #{tpu_custom_call.1} parent=1 // loop_header
      %s18 = sphi 0, %s22
      %p19 = scmp.ge.s32.totalorder %s18, 4
      %s28 = sphi 0, %s30
      %s31 = sphi 0, %s28
      %s32 = sphi 0, %s31
      %s48 = sphi 0, %s32
      %s52 = sphi 0, %s52
      %s54 = sphi 0, %s52
      %s55 = sphi 0, %s54
      %s69 = sphi 0, %s55
      %s73 = sphi 0, %s73
      %s75 = sphi 0, %s73
      %s76 = sphi 0, %s75
      %s90 = sphi 0, %s76
      %s94 = sphi 0, %s94
      %s96 = sphi 0, %s94
      %s97 = sphi 0, %s96
      %s111 = sphi 0, %s97
      %s115 = sphi 0, %s115
      %s117 = sphi 0, %s115
      %s118 = sphi 0, %s117
      %s132 = sphi 0, %s118
      %s136 = sphi 0, %s136
      %s138 = sphi 0, %s136
      %s139 = sphi 0, %s138
      %s153 = sphi 0, %s139
      %s157 = sphi 0, %s157
      %s159 = sphi 0, %s157
      %s160 = sphi 0, %s159
      %s174 = sphi 0, %s160
      %s180 = sphi 0, %s182
      %s183 = sphi 0, %s180
      %s184 = sphi 0, %s183
      %s200 = sphi 0, %s184
    $region4: #{tpu_custom_call.1} parent=1 // loop_header_branch
      %21 = sbr.rel (%p19) target = $region8
    $region5: #{tpu_custom_call.1} parent=1 // loop_body
      %s23 = ssub.s32 %s18, 1
      %s24 = ssub.s32 %s18, 2
      %s25 = sadd.s32 %s18, 1
      %s26 = ssub.s32 %s18, %s25
      %p27 = scmp.eq.s32.totalorder %s26, 0
      %s29 = sadd.s32 %s28, 1
      %s30 = scalar_select %p27, %s28, %s29
      %p33 = pneg %p27
      %p34 = scmp.eq.s32.totalorder %s18, 1
      %p35 = por %p33, %p34
      %p36 = scmp.ne.s32.totalorder %s28, %s31
      %p37 = scmp.eq.s32.totalorder %s18, 0
      %p38 = por %p36, %p37
      %p39 = scmp.ne.s32.totalorder %s28, %s31
      %p40 = scmp.eq.s32.totalorder %s23, 1
      %p41 = por %p39, %p40
      %p42 = scmp.ne.s32.totalorder %s31, %s32
      %p43 = scmp.eq.s32.totalorder %s23, 0
      %p44 = por %p42, %p43
      %p45 = scmp.ne.s32.totalorder %s31, %s32
      %p46 = scmp.eq.s32.totalorder %s24, 1
      %p47 = por %p45, %p46
      %p49 = scmp.ne.s32.totalorder %s32, %s48
      %p50 = scmp.eq.s32.totalorder %s24, 0
      %p51 = por %p49, %p50
      %s53 = sadd.s32 %s52, 1
      %p56 = scmp.eq.s32.totalorder %s18, 1
      %p57 = scmp.ne.s32.totalorder %s52, %s54
      %p58 = scmp.eq.s32.totalorder %s18, 0
      %p59 = por %p57, %p58
      %p60 = scmp.ne.s32.totalorder %s52, %s54
      %p61 = scmp.eq.s32.totalorder %s23, 1
      %p62 = por %p60, %p61
      %p63 = scmp.ne.s32.totalorder %s54, %s55
      %p64 = scmp.eq.s32.totalorder %s23, 0
      %p65 = por %p63, %p64
      %p66 = scmp.ne.s32.totalorder %s54, %s55
      %p67 = scmp.eq.s32.totalorder %s24, 1
      %p68 = por %p66, %p67
      %p70 = scmp.ne.s32.totalorder %s55, %s69
      %p71 = scmp.eq.s32.totalorder %s24, 0
      %p72 = por %p70, %p71
      %s74 = sadd.s32 %s73, 1
      %p77 = scmp.eq.s32.totalorder %s18, 1
      %p78 = scmp.ne.s32.totalorder %s73, %s75
      %p79 = scmp.eq.s32.totalorder %s18, 0
      %p80 = por %p78, %p79
      %p81 = scmp.ne.s32.totalorder %s73, %s75
      %p82 = scmp.eq.s32.totalorder %s23, 1
      %p83 = por %p81, %p82
      %p84 = scmp.ne.s32.totalorder %s75, %s76
      %p85 = scmp.eq.s32.totalorder %s23, 0
      %p86 = por %p84, %p85
      %p87 = scmp.ne.s32.totalorder %s75, %s76
      %p88 = scmp.eq.s32.totalorder %s24, 1
      %p89 = por %p87, %p88
      %p91 = scmp.ne.s32.totalorder %s76, %s90
      %p92 = scmp.eq.s32.totalorder %s24, 0
      %p93 = por %p91, %p92
      %s95 = sadd.s32 %s94, 1
      %p98 = scmp.eq.s32.totalorder %s18, 1
      %p99 = scmp.ne.s32.totalorder %s94, %s96
      %p100 = scmp.eq.s32.totalorder %s18, 0
      %p101 = por %p99, %p100
      %p102 = scmp.ne.s32.totalorder %s94, %s96
      %p103 = scmp.eq.s32.totalorder %s23, 1
      %p104 = por %p102, %p103
      %p105 = scmp.ne.s32.totalorder %s96, %s97
      %p106 = scmp.eq.s32.totalorder %s23, 0
      %p107 = por %p105, %p106
      %p108 = scmp.ne.s32.totalorder %s96, %s97
      %p109 = scmp.eq.s32.totalorder %s24, 1
      %p110 = por %p108, %p109
      %p112 = scmp.ne.s32.totalorder %s97, %s111
      %p113 = scmp.eq.s32.totalorder %s24, 0
      %p114 = por %p112, %p113
      %s116 = sadd.s32 %s115, 1
      %p119 = scmp.eq.s32.totalorder %s18, 1
      %p120 = scmp.ne.s32.totalorder %s115, %s117
      %p121 = scmp.eq.s32.totalorder %s18, 0
      %p122 = por %p120, %p121
      %p123 = scmp.ne.s32.totalorder %s115, %s117
      %p124 = scmp.eq.s32.totalorder %s23, 1
      %p125 = por %p123, %p124
      %p126 = scmp.ne.s32.totalorder %s117, %s118
      %p127 = scmp.eq.s32.totalorder %s23, 0
      %p128 = por %p126, %p127
      %p129 = scmp.ne.s32.totalorder %s117, %s118
      %p130 = scmp.eq.s32.totalorder %s24, 1
      %p131 = por %p129, %p130
      %p133 = scmp.ne.s32.totalorder %s118, %s132
      %p134 = scmp.eq.s32.totalorder %s24, 0
      %p135 = por %p133, %p134
      %s137 = sadd.s32 %s136, 1
      %p140 = scmp.eq.s32.totalorder %s18, 1
      %p141 = scmp.ne.s32.totalorder %s136, %s138
      %p142 = scmp.eq.s32.totalorder %s18, 0
      %p143 = por %p141, %p142
      %p144 = scmp.ne.s32.totalorder %s136, %s138
      %p145 = scmp.eq.s32.totalorder %s23, 1
      %p146 = por %p144, %p145
      %p147 = scmp.ne.s32.totalorder %s138, %s139
      %p148 = scmp.eq.s32.totalorder %s23, 0
      %p149 = por %p147, %p148
      %p150 = scmp.ne.s32.totalorder %s138, %s139
      %p151 = scmp.eq.s32.totalorder %s24, 1
      %p152 = por %p150, %p151
      %p154 = scmp.ne.s32.totalorder %s139, %s153
      %p155 = scmp.eq.s32.totalorder %s24, 0
      %p156 = por %p154, %p155
      %s158 = sadd.s32 %s157, 1
      %p161 = scmp.eq.s32.totalorder %s18, 1
      %p162 = scmp.ne.s32.totalorder %s157, %s159
      %p163 = scmp.eq.s32.totalorder %s18, 0
      %p164 = por %p162, %p163
      %p165 = scmp.ne.s32.totalorder %s157, %s159
      %p166 = scmp.eq.s32.totalorder %s23, 1
      %p167 = por %p165, %p166
      %p168 = scmp.ne.s32.totalorder %s159, %s160
      %p169 = scmp.eq.s32.totalorder %s23, 0
      %p170 = por %p168, %p169
      %p171 = scmp.ne.s32.totalorder %s159, %s160
      %p172 = scmp.eq.s32.totalorder %s24, 1
      %p173 = por %p171, %p172
      %p175 = scmp.ne.s32.totalorder %s160, %s174
      %p176 = scmp.eq.s32.totalorder %s24, 0
      %p177 = por %p175, %p176
      %s178 = ssub.s32 %s18, %s25
      %p179 = scmp.eq.s32.totalorder %s178, 0
      %s181 = sadd.s32 %s180, 1
      %s182 = scalar_select %p179, %s180, %s181
      %p185 = pneg %p179
      %p186 = scmp.eq.s32.totalorder %s18, 1
      %p187 = por %p185, %p186
      %p188 = scmp.ne.s32.totalorder %s180, %s183
      %p189 = scmp.eq.s32.totalorder %s18, 0
      %p190 = por %p188, %p189
      %p191 = scmp.ne.s32.totalorder %s180, %s183
      %p192 = scmp.eq.s32.totalorder %s23, 1
      %p193 = por %p191, %p192
      %p194 = scmp.ne.s32.totalorder %s183, %s184
      %p195 = scmp.eq.s32.totalorder %s23, 0
      %p196 = por %p194, %p195
      %p197 = scmp.ne.s32.totalorder %s183, %s184
      %p198 = scmp.eq.s32.totalorder %s24, 1
      %p199 = por %p197, %p198
      %p201 = scmp.ne.s32.totalorder %s184, %s200
      %p202 = scmp.eq.s32.totalorder %s24, 0
      %p203 = por %p201, %p202
      %p204 = scmp.le.s32.totalorder 1, %s18
      %p205 = scmp.lt.s32.totalorder %s18, 3
      %p206 = pnand %p204, %p205
      %p207 = pneg %p206
      // Predicated region
      $region9: #{tpu_custom_call.1} parent=5 // pred_check
        _
      $region10: #{tpu_custom_call.1} parent=5 // pred_check_branch
        %209 = sbr.rel (%p206) target = $region12
      $region11: #{tpu_custom_call.1} parent=5 // pred_region
        %s210 = ssub.s32 %s18, 1
        // Predicated region
        $region13: #{tpu_custom_call.1} parent=11 // pred_check
          %p211 = pneg %p65
        $region14: #{tpu_custom_call.1} parent=11 // pred_check_branch
          %213 = sbr.rel (%p211) target = $region16
        $region15: #{tpu_custom_call.1} parent=11 // pred_region
          _
        $region16: #{tpu_custom_call.1} parent=11 // pred_fallthru
          _
        // Predicated region
        $region17: #{tpu_custom_call.1} parent=11 // pred_check
          %p214 = pneg %p86
        $region18: #{tpu_custom_call.1} parent=11 // pred_check_branch
          %216 = sbr.rel (%p214) target = $region20
        $region19: #{tpu_custom_call.1} parent=11 // pred_region
          _
        $region20: #{tpu_custom_call.1} parent=11 // pred_fallthru
          _
        // Predicated region
        $region21: #{tpu_custom_call.1} parent=11 // pred_check
          %p217 = pneg %p107
        $region22: #{tpu_custom_call.1} parent=11 // pred_check_branch
          %219 = sbr.rel (%p217) target = $region24
        $region23: #{tpu_custom_call.1} parent=11 // pred_region
          _
        $region24: #{tpu_custom_call.1} parent=11 // pred_fallthru
          _
        // Predicated region
        $region25: #{tpu_custom_call.1} parent=11 // pred_check
          %p220 = pneg %p128
        $region26: #{tpu_custom_call.1} parent=11 // pred_check_branch
          %222 = sbr.rel (%p220) target = $region28
        $region27: #{tpu_custom_call.1} parent=11 // pred_region
          _
        $region28: #{tpu_custom_call.1} parent=11 // pred_fallthru
          _
        // Predicated region
        $region29: #{tpu_custom_call.1} parent=11 // pred_check
          %p223 = pneg %p149
        $region30: #{tpu_custom_call.1} parent=11 // pred_check_branch
          %225 = sbr.rel (%p223) target = $region32
        $region31: #{tpu_custom_call.1} parent=11 // pred_region
          _
        $region32: #{tpu_custom_call.1} parent=11 // pred_fallthru
          _
        // Predicated region
        $region33: #{tpu_custom_call.1} parent=11 // pred_check
          %p226 = pneg %p170
        $region34: #{tpu_custom_call.1} parent=11 // pred_check_branch
          %228 = sbr.rel (%p226) target = $region36
        $region35: #{tpu_custom_call.1} parent=11 // pred_region
          _
        $region36: #{tpu_custom_call.1} parent=11 // pred_fallthru
          _
      $region12: #{tpu_custom_call.1} parent=5 // pred_fallthru
        _
      %p229 = scmp.lt.s32.totalorder %s18, 2
      // Predicated region
      $region37: #{tpu_custom_call.1} parent=5 // pred_check
        %p230 = pneg %p229
      $region38: #{tpu_custom_call.1} parent=5 // pred_check_branch
        %232 = sbr.rel (%p230) target = $region40
      $region39: #{tpu_custom_call.1} parent=5 // pred_region
        // Predicated region
        $region41: #{tpu_custom_call.1} parent=39 // pred_check
          %p233 = pneg %p38
        $region42: #{tpu_custom_call.1} parent=39 // pred_check_branch
          %235 = sbr.rel (%p233) target = $region44
        $region43: #{tpu_custom_call.1} parent=39 // pred_region
          %s236 = smul.u32 4, %s18
          %p237 = scmp.lt.s32.totalorder %s236, 7
          %s238 = scalar_select %p237, %s236, 7
          %s239 = smul.addr %s238, 2
          %s240 = scalar_lea.vmem %s0, %s239
          %s241 = smul.u32 4, %s18
        $region44: #{tpu_custom_call.1} parent=39 // pred_fallthru
          _
      $region40: #{tpu_custom_call.1} parent=5 // pred_fallthru
        _
      %p242 = scmp.le.s32.totalorder 1, %s18
      %p243 = scmp.lt.s32.totalorder %s18, 3
      %p244 = pnand %p242, %p243
      %p245 = pneg %p244
      // Predicated region
      $region45: #{tpu_custom_call.1} parent=5 // pred_check
        _
      $region46: #{tpu_custom_call.1} parent=5 // pred_check_branch
        %247 = sbr.rel (%p244) target = $region48
      $region47: #{tpu_custom_call.1} parent=5 // pred_region
        %s248 = ssub.s32 %s18, 1
        %s249 = smul.u32 4, %s23
        %p250 = scmp.lt.s32.totalorder %s249, 7
        %s251 = scalar_select %p250, %s249, 7
        %s252 = smul.addr %s251, 2
        %s253 = scalar_lea.vmem %s0, %s252
        %p254 = pneg %p44
        %p255 = pneg %p41
        %p256 = pneg %p65
        %p257 = pneg %p62
        %p258 = pneg %p86
        %p259 = pneg %p83
        %p260 = pneg %p107
        %p261 = pneg %p104
        %p262 = pneg %p128
        %p263 = pneg %p125
        %p264 = pneg %p149
        %p265 = pneg %p146
        %p266 = pneg %p170
        %p267 = pneg %p167
        %p268 = pneg %p196
        %p269 = pneg %p193
        %s270 = sand.u32 %s183, 1
        %s271 = scalar_lea.sflag [#allocation4], %s270
        %s272 = sand.u32 %s183, 1
        %s273 = smul.addr %s272, 4
        %s274 = scalar_lea.vmem [#allocation3], %s273
        %s275 = smul.u32 4, %s23
        %p276 = scmp.lt.s32.totalorder %s275, 7
        %s277 = scalar_select %p276, %s275, 7
        %s278 = smul.addr %s277, 2
        %s279 = scalar_lea.vmem %s0, %s278
        %s280 = smul.u32 4, %s23
        %s281 = smul.u32 4, %s23
        %v282 = vld [vmem:[%s279] sm:$0xff]
        %v283 = vld [vmem:[%s1] sm:$0xff]
        %v284 = vld [vmem:[%s1 + $0x8] sm:$0xff]
        %v285 = vld [vmem:[%s1 + $0x10] sm:$0xff]
        %v286 = vld [vmem:[%s1 + $0x18] sm:$0xff]
        %288 = vset.pattern.permute.xlu0 0
        %289 = vperm.xlu0 %288, %v283
        %v290 = vpop.permute.xlu0 %289
        %293 = vset.pattern.permute.xlu0 0
        %294 = vperm.xlu0 %293, %v284
        %v295 = vpop.permute.xlu0 %294
        %298 = vset.pattern.permute.xlu0 0
        %299 = vperm.xlu0 %298, %v285
        %v300 = vpop.permute.xlu0 %299
        %303 = vset.pattern.permute.xlu0 0
        %304 = vperm.xlu0 %303, %v286
        %v305 = vpop.permute.xlu0 %304
        %v308 = vlaneseq
        %v309 = vshrl.u32 %v308, 7
        %v310 = vsub.s32 0, %v309
        %v311 = vrot.slane %v282, %v310
        %v312 = vlaneseq
        %v313 = vshrl.u32 %v312, 7
        %v314 = vsub.s32 2, %v313
        %v315 = vrot.slane %v282, %v314
        %v316 = vlaneseq
        %v317 = vshrl.u32 %v316, 7
        %v318 = vsub.s32 4, %v317
        %v319 = vrot.slane %v282, %v318
        %v320 = vlaneseq
        %v321 = vshrl.u32 %v320, 7
        %v322 = vsub.s32 6, %v321
        %v323 = vrot.slane %v282, %v322
        %v328 = vlaneseq
        %v329 = vshrl.u32 %v328, 7
        %v330 = vsub.s32 0, %v329
        %v331 = vrot.slane %v311, %v330
        %v332 = vlaneseq
        %v333 = vshrl.u32 %v332, 7
        %v334 = vsub.s32 0, %v333
        %v335 = vrot.slane %v315, %v334
        %v336 = vlaneseq
        %v337 = vshrl.u32 %v336, 7
        %v338 = vsub.s32 0, %v337
        %v339 = vrot.slane %v319, %v338
        %v340 = vlaneseq
        %v341 = vshrl.u32 %v340, 7
        %v342 = vsub.s32 0, %v341
        %v343 = vrot.slane %v323, %v342
        %v344 = vmul.f32 %v290, %v331
        %v345 = vmul.f32 %v290, %v335
        %v346 = vmul.f32 %v290, %v339
        %v347 = vmul.f32 %v290, %v343
        %v348 = vmul.f32 %v295, %v331
        %v349 = vmul.f32 %v295, %v335
        %v350 = vmul.f32 %v295, %v339
        %v351 = vmul.f32 %v295, %v343
        %v352 = vmul.f32 %v300, %v331
        %v353 = vmul.f32 %v300, %v335
        %v354 = vmul.f32 %v300, %v339
        %v355 = vmul.f32 %v300, %v343
        %v356 = vmul.f32 %v305, %v331
        %v357 = vmul.f32 %v305, %v335
        %v358 = vmul.f32 %v305, %v339
        %v359 = vmul.f32 %v305, %v343
        %360 = vset.pattern.permute.xlu0 1
        %361 = vperm.xlu0 %360, %v283
        %v362 = vpop.permute.xlu0 %361
        %364 = vset.pattern.permute.xlu0 1
        %365 = vperm.xlu0 %364, %v284
        %v366 = vpop.permute.xlu0 %365
        %368 = vset.pattern.permute.xlu0 1
        %369 = vperm.xlu0 %368, %v285
        %v370 = vpop.permute.xlu0 %369
        %372 = vset.pattern.permute.xlu0 1
        %373 = vperm.xlu0 %372, %v286
        %v374 = vpop.permute.xlu0 %373
        %v376 = vlaneseq
        %v377 = vshrl.u32 %v376, 7
        %v378 = vsub.s32 1, %v377
        %v379 = vrot.slane %v282, %v378
        %v380 = vlaneseq
        %v381 = vshrl.u32 %v380, 7
        %v382 = vsub.s32 3, %v381
        %v383 = vrot.slane %v282, %v382
        %v384 = vlaneseq
        %v385 = vshrl.u32 %v384, 7
        %v386 = vsub.s32 5, %v385
        %v387 = vrot.slane %v282, %v386
        %v388 = vlaneseq
        %v389 = vshrl.u32 %v388, 7
        %v390 = vsub.s32 7, %v389
        %v391 = vrot.slane %v282, %v390
        %v396 = vlaneseq
        %v397 = vshrl.u32 %v396, 7
        %v398 = vsub.s32 1, %v397
        %v399 = vrot.slane %v379, %v398
        %v400 = vlaneseq
        %v401 = vshrl.u32 %v400, 7
        %v402 = vsub.s32 1, %v401
        %v403 = vrot.slane %v383, %v402
        %v404 = vlaneseq
        %v405 = vshrl.u32 %v404, 7
        %v406 = vsub.s32 1, %v405
        %v407 = vrot.slane %v387, %v406
        %v408 = vlaneseq
        %v409 = vshrl.u32 %v408, 7
        %v410 = vsub.s32 1, %v409
        %v411 = vrot.slane %v391, %v410
        %v412 = vmul.f32 %v362, %v399
        %v413 = vmul.f32 %v362, %v403
        %v414 = vmul.f32 %v362, %v407
        %v415 = vmul.f32 %v362, %v411
        %v416 = vmul.f32 %v366, %v399
        %v417 = vmul.f32 %v366, %v403
        %v418 = vmul.f32 %v366, %v407
        %v419 = vmul.f32 %v366, %v411
        %v420 = vmul.f32 %v370, %v399
        %v421 = vmul.f32 %v370, %v403
        %v422 = vmul.f32 %v370, %v407
        %v423 = vmul.f32 %v370, %v411
        %v424 = vmul.f32 %v374, %v399
        %v425 = vmul.f32 %v374, %v403
        %v426 = vmul.f32 %v374, %v407
        %v427 = vmul.f32 %v374, %v411
        %v428 = vadd.f32 %v344, %v412
        %v429 = vadd.f32 %v345, %v413
        %v430 = vadd.f32 %v346, %v414
        %v431 = vadd.f32 %v347, %v415
        %v432 = vadd.f32 %v348, %v416
        %v433 = vadd.f32 %v349, %v417
        %v434 = vadd.f32 %v350, %v418
        %v435 = vadd.f32 %v351, %v419
        %v436 = vadd.f32 %v352, %v420
        %v437 = vadd.f32 %v353, %v421
        %v438 = vadd.f32 %v354, %v422
        %v439 = vadd.f32 %v355, %v423
        %v440 = vadd.f32 %v356, %v424
        %v441 = vadd.f32 %v357, %v425
        %v442 = vadd.f32 %v358, %v426
        %v443 = vadd.f32 %v359, %v427
        %v444 = vld [vmem:[%s2] sm:$0xff]
        %v445 = vld [vmem:[%s2 + $0x8] sm:$0xff]
        %v446 = vld [vmem:[%s2 + $0x10] sm:$0xff]
        %v447 = vld [vmem:[%s2 + $0x18] sm:$0xff]
        %449 = vset.pattern.permute.xlu0 0
        %450 = vperm.xlu0 %449, %v444
        %v451 = vpop.permute.xlu0 %450
        %454 = vset.pattern.permute.xlu0 0
        %455 = vperm.xlu0 %454, %v445
        %v456 = vpop.permute.xlu0 %455
        %459 = vset.pattern.permute.xlu0 0
        %460 = vperm.xlu0 %459, %v446
        %v461 = vpop.permute.xlu0 %460
        %464 = vset.pattern.permute.xlu0 0
        %465 = vperm.xlu0 %464, %v447
        %v466 = vpop.permute.xlu0 %465
        %v468 = vadd.f32 %v428, %v451
        %v469 = vadd.f32 %v429, %v451
        %v470 = vadd.f32 %v430, %v451
        %v471 = vadd.f32 %v431, %v451
        %v472 = vadd.f32 %v432, %v456
        %v473 = vadd.f32 %v433, %v456
        %v474 = vadd.f32 %v434, %v456
        %v475 = vadd.f32 %v435, %v456
        %v476 = vadd.f32 %v436, %v461
        %v477 = vadd.f32 %v437, %v461
        %v478 = vadd.f32 %v438, %v461
        %v479 = vadd.f32 %v439, %v461
        %v480 = vadd.f32 %v440, %v466
        %v481 = vadd.f32 %v441, %v466
        %v482 = vadd.f32 %v442, %v466
        %v483 = vadd.f32 %v443, %v466
        %v484 = vand.u32 2147483647, %v468
        %vm485 = vcmp.le.f32.partialorder %v484, 0.7853982
        %vm486 = vcmp.lt.s32.totalorder %v468, 0
        %v487 = vand.u32 %v468, 2139095040
        %v488 = vshrl.u32 %v487, 23
        %v489 = vsub.s32 %v488, 127
        %v490 = vand.u32 2147483647, %v468
        %v491 = vand.u32 %v490, 8388607
        %v492 = vor.u32 %v491, 8388608
        %v493 = vsub.s32 0, %v492
        %v494 = vadd.s32 %v489, 1
        %vm495 = vcmp.gt.s32.totalorder %v494, 0
        %v496 = vsel %vm495, %v494, 0
        %v497 = vshrl.u32 %v496, 5
        %v498 = vand.u32 %v496, 31
        %v499 = vsub.s32 32, %v498
        %v500 = vshrl.u32 683565275, %v499
        %v501 = vshll.u32 683565275, %v498
        %v502 = vshrl.u32 2475754826, %v499
        %v503 = vor.u32 %v501, %v502
        %v504 = vshll.u32 2475754826, %v498
        %v505 = vshrl.u32 2131351028, %v499
        %v506 = vor.u32 %v504, %v505
        %v507 = vshll.u32 2131351028, %v498
        %v508 = vshrl.u32 2102212464, %v499
        %v509 = vor.u32 %v507, %v508
        %v510 = vshll.u32 2102212464, %v498
        %v511 = vshrl.u32 920167782, %v499
        %v512 = vor.u32 %v510, %v511
        %v513 = vshll.u32 920167782, %v498
        %v514 = vshrl.u32 1326507024, %v499
        %v515 = vor.u32 %v513, %v514
        %vm516 = vcmp.lt.s32.totalorder %v497, 1
        %vm517 = vcmp.lt.s32.totalorder %v497, 2
        %vm518 = vcmp.lt.s32.totalorder %v497, 3
        %vm519 = vcmp.lt.s32.totalorder %v497, 4
        %v520 = vsel %vm516, %v500, %v503
        %v521 = vsel %vm519, %v509, 2102212464
        %v522 = vsel %vm518, %v506, %v521
        %v523 = vsel %vm517, %v520, %v522
        %v524 = vsel %vm516, %v503, %v506
        %v525 = vsel %vm519, %v512, 920167782
        %v526 = vsel %vm518, %v509, %v525
        %v527 = vsel %vm517, %v524, %v526
        %v528 = vsel %vm516, %v506, %v509
        %v529 = vsel %vm519, %v515, 1326507024
        %v530 = vsel %vm518, %v512, %v529
        %v531 = vsel %vm517, %v528, %v530
        %v532 = vshll.u32 %v492, 8
        %v533 = vmul.u32.u64.compose %v532, %v531
        %v534 = vextract.low.u32 %v533
        %v535 = vextract.high.u32 %v533
        %v536 = vmul.u32.u64.compose %v532, %v527
        %v537 = vextract.low.u32 %v536
        %v538 = vextract.high.u32 %v536
        %v539 = vmul.u32 %v532, %v523
        %v540 = vadd.s32 %v535, %v537
        %vm541 = vc.u32 %v535, %v537
        %v542 = vadd.s32 %v538, 1
        %v543 = vsel %vm541, %v542, %v538
        %v544 = vadd.s32 %v539, %v543
        %v545 = vadd.s32 %v544, 536870912
        %v546 = vshrl.u32 %v545, 30
        %v547 = vshll.u32 %v546, 30
        %v548 = vsub.s32 %v544, %v547
        %vm549 = vcmp.lt.s32.totalorder %v548, 0
        %v550 = vsub.s32 0, %v548
        %v551 = vsel %vm549, %v550, %v548
        %v552 = vclz %v551
        %v553 = vsub.s32 %v552, 2
        %vm554 = vcmp.gt.s32.totalorder 0, %v553
        %v555 = vsel %vm554, 0, %v553
        %v556 = vsub.s32 32, %v555
        %v557 = vshll.u32 %v548, %v555
        %v558 = vshrl.u32 %v540, %v556
        %v559 = vor.u32 %v557, %v558
        %v560 = vsub.s32 4294967266, %v555
        %v561 = vadd.s32 %v560, 127
        %v562 = vshll.u32 %v561, 23
        %v563 = vor.u32 4788187, %v562
        %v564 = vand.u32 2147483647, %v563
        %v566 = vcvt.s32.f32 %v559
        %v567 = vmul.f32 %v566, %v564
        %v568 = vxor.u32 %v567, 2147483648
        %v569 = vsel %vm486, %v568, %v567
        %v570 = vsub.s32 4, %v546
        %v571 = vsel %vm486, %v570, %v546
        %v572 = vsel %vm485, %v468, %v569
        %v573 = vsel %vm485, 0, %v571
        %v574 = vcosq.f32.pop %v572
        %v575 = vsinq.f32.pop %v572
        %vm576 = vweird.f32 %v468
        %v577 = vadd.s32 %v573, 3
        %v578 = vand.u32 %v577, 3
        %vm579 = vcmp.lt.s32.totalorder %v578, 2
        %vm580 = vcmp.eq.s32.totalorder %v578, 0
        %v581 = vxor.u32 %v575, 2147483648
        %v582 = vsel %vm580, %v574, %v581
        %vm583 = vcmp.eq.s32.totalorder %v578, 2
        %v584 = vxor.u32 %v574, 2147483648
        %v585 = vsel %vm583, %v584, %v575
        %v586 = vsel %vm579, %v582, %v585
        %v587 = vsel %vm576, nan, %v586
        %v588 = vand.u32 2147483647, %v469
        %vm589 = vcmp.le.f32.partialorder %v588, 0.7853982
        %vm590 = vcmp.lt.s32.totalorder %v469, 0
        %v591 = vand.u32 %v469, 2139095040
        %v592 = vshrl.u32 %v591, 23
        %v593 = vsub.s32 %v592, 127
        %v594 = vand.u32 2147483647, %v469
        %v595 = vand.u32 %v594, 8388607
        %v596 = vor.u32 %v595, 8388608
        %v597 = vsub.s32 0, %v596
        %v598 = vadd.s32 %v593, 1
        %vm599 = vcmp.gt.s32.totalorder %v598, 0
        %v600 = vsel %vm599, %v598, 0
        %v601 = vshrl.u32 %v600, 5
        %v602 = vand.u32 %v600, 31
        %v603 = vsub.s32 32, %v602
        %v604 = vshrl.u32 683565275, %v603
        %v605 = vshll.u32 683565275, %v602
        %v606 = vshrl.u32 2475754826, %v603
        %v607 = vor.u32 %v605, %v606
        %v608 = vshll.u32 2475754826, %v602
        %v609 = vshrl.u32 2131351028, %v603
        %v610 = vor.u32 %v608, %v609
        %v611 = vshll.u32 2131351028, %v602
        %v612 = vshrl.u32 2102212464, %v603
        %v613 = vor.u32 %v611, %v612
        %v614 = vshll.u32 2102212464, %v602
        %v615 = vshrl.u32 920167782, %v603
        %v616 = vor.u32 %v614, %v615
        %v617 = vshll.u32 920167782, %v602
        %v618 = vshrl.u32 1326507024, %v603
        %v619 = vor.u32 %v617, %v618
        %vm620 = vcmp.lt.s32.totalorder %v601, 1
        %vm621 = vcmp.lt.s32.totalorder %v601, 2
        %vm622 = vcmp.lt.s32.totalorder %v601, 3
        %vm623 = vcmp.lt.s32.totalorder %v601, 4
        %v624 = vsel %vm620, %v604, %v607
        %v625 = vsel %vm623, %v613, 2102212464
        %v626 = vsel %vm622, %v610, %v625
        %v627 = vsel %vm621, %v624, %v626
        %v628 = vsel %vm620, %v607, %v610
        %v629 = vsel %vm623, %v616, 920167782
        %v630 = vsel %vm622, %v613, %v629
        %v631 = vsel %vm621, %v628, %v630
        %v632 = vsel %vm620, %v610, %v613
        %v633 = vsel %vm623, %v619, 1326507024
        %v634 = vsel %vm622, %v616, %v633
        %v635 = vsel %vm621, %v632, %v634
        %v636 = vshll.u32 %v596, 8
        %v637 = vmul.u32.u64.compose %v636, %v635
        %v638 = vextract.low.u32 %v637
        %v639 = vextract.high.u32 %v637
        %v640 = vmul.u32.u64.compose %v636, %v631
        %v641 = vextract.low.u32 %v640
        %v642 = vextract.high.u32 %v640
        %v643 = vmul.u32 %v636, %v627
        %v644 = vadd.s32 %v639, %v641
        %vm645 = vc.u32 %v639, %v641
        %v646 = vadd.s32 %v642, 1
        %v647 = vsel %vm645, %v646, %v642
        %v648 = vadd.s32 %v643, %v647
        %v649 = vadd.s32 %v648, 536870912
        %v650 = vshrl.u32 %v649, 30
        %v651 = vshll.u32 %v650, 30
        %v652 = vsub.s32 %v648, %v651
        %vm653 = vcmp.lt.s32.totalorder %v652, 0
        %v654 = vsub.s32 0, %v652
        %v655 = vsel %vm653, %v654, %v652
        %v656 = vclz %v655
        %v657 = vsub.s32 %v656, 2
        %vm658 = vcmp.gt.s32.totalorder 0, %v657
        %v659 = vsel %vm658, 0, %v657
        %v660 = vsub.s32 32, %v659
        %v661 = vshll.u32 %v652, %v659
        %v662 = vshrl.u32 %v644, %v660
        %v663 = vor.u32 %v661, %v662
        %v664 = vsub.s32 4294967266, %v659
        %v665 = vadd.s32 %v664, 127
        %v666 = vshll.u32 %v665, 23
        %v667 = vor.u32 4788187, %v666
        %v668 = vand.u32 2147483647, %v667
        %v670 = vcvt.s32.f32 %v663
        %v671 = vmul.f32 %v670, %v668
        %v672 = vxor.u32 %v671, 2147483648
        %v673 = vsel %vm590, %v672, %v671
        %v674 = vsub.s32 4, %v650
        %v675 = vsel %vm590, %v674, %v650
        %v676 = vsel %vm589, %v469, %v673
        %v677 = vsel %vm589, 0, %v675
        %v678 = vcosq.f32.pop %v676
        %v679 = vsinq.f32.pop %v676
        %vm680 = vweird.f32 %v469
        %v681 = vadd.s32 %v677, 3
        %v682 = vand.u32 %v681, 3
        %vm683 = vcmp.lt.s32.totalorder %v682, 2
        %vm684 = vcmp.eq.s32.totalorder %v682, 0
        %v685 = vxor.u32 %v679, 2147483648
        %v686 = vsel %vm684, %v678, %v685
        %vm687 = vcmp.eq.s32.totalorder %v682, 2
        %v688 = vxor.u32 %v678, 2147483648
        %v689 = vsel %vm687, %v688, %v679
        %v690 = vsel %vm683, %v686, %v689
        %v691 = vsel %vm680, nan, %v690
        %v692 = vand.u32 2147483647, %v470
        %vm693 = vcmp.le.f32.partialorder %v692, 0.7853982
        %vm694 = vcmp.lt.s32.totalorder %v470, 0
        %v695 = vand.u32 %v470, 2139095040
        %v696 = vshrl.u32 %v695, 23
        %v697 = vsub.s32 %v696, 127
        %v698 = vand.u32 2147483647, %v470
        %v699 = vand.u32 %v698, 8388607
        %v700 = vor.u32 %v699, 8388608
        %v701 = vsub.s32 0, %v700
        %v702 = vadd.s32 %v697, 1
        %vm703 = vcmp.gt.s32.totalorder %v702, 0
        %v704 = vsel %vm703, %v702, 0
        %v705 = vshrl.u32 %v704, 5
        %v706 = vand.u32 %v704, 31
        %v707 = vsub.s32 32, %v706
        %v708 = vshrl.u32 683565275, %v707
        %v709 = vshll.u32 683565275, %v706
        %v710 = vshrl.u32 2475754826, %v707
        %v711 = vor.u32 %v709, %v710
        %v712 = vshll.u32 2475754826, %v706
        %v713 = vshrl.u32 2131351028, %v707
        %v714 = vor.u32 %v712, %v713
        %v715 = vshll.u32 2131351028, %v706
        %v716 = vshrl.u32 2102212464, %v707
        %v717 = vor.u32 %v715, %v716
        %v718 = vshll.u32 2102212464, %v706
        %v719 = vshrl.u32 920167782, %v707
        %v720 = vor.u32 %v718, %v719
        %v721 = vshll.u32 920167782, %v706
        %v722 = vshrl.u32 1326507024, %v707
        %v723 = vor.u32 %v721, %v722
        %vm724 = vcmp.lt.s32.totalorder %v705, 1
        %vm725 = vcmp.lt.s32.totalorder %v705, 2
        %vm726 = vcmp.lt.s32.totalorder %v705, 3
        %vm727 = vcmp.lt.s32.totalorder %v705, 4
        %v728 = vsel %vm724, %v708, %v711
        %v729 = vsel %vm727, %v717, 2102212464
        %v730 = vsel %vm726, %v714, %v729
        %v731 = vsel %vm725, %v728, %v730
        %v732 = vsel %vm724, %v711, %v714
        %v733 = vsel %vm727, %v720, 920167782
        %v734 = vsel %vm726, %v717, %v733
        %v735 = vsel %vm725, %v732, %v734
        %v736 = vsel %vm724, %v714, %v717
        %v737 = vsel %vm727, %v723, 1326507024
        %v738 = vsel %vm726, %v720, %v737
        %v739 = vsel %vm725, %v736, %v738
        %v740 = vshll.u32 %v700, 8
        %v741 = vmul.u32.u64.compose %v740, %v739
        %v742 = vextract.low.u32 %v741
        %v743 = vextract.high.u32 %v741
        %v744 = vmul.u32.u64.compose %v740, %v735
        %v745 = vextract.low.u32 %v744
        %v746 = vextract.high.u32 %v744
        %v747 = vmul.u32 %v740, %v731
        %v748 = vadd.s32 %v743, %v745
        %vm749 = vc.u32 %v743, %v745
        %v750 = vadd.s32 %v746, 1
        %v751 = vsel %vm749, %v750, %v746
        %v752 = vadd.s32 %v747, %v751
        %v753 = vadd.s32 %v752, 536870912
        %v754 = vshrl.u32 %v753, 30
        %v755 = vshll.u32 %v754, 30
        %v756 = vsub.s32 %v752, %v755
        %vm757 = vcmp.lt.s32.totalorder %v756, 0
        %v758 = vsub.s32 0, %v756
        %v759 = vsel %vm757, %v758, %v756
        %v760 = vclz %v759
        %v761 = vsub.s32 %v760, 2
        %vm762 = vcmp.gt.s32.totalorder 0, %v761
        %v763 = vsel %vm762, 0, %v761
        %v764 = vsub.s32 32, %v763
        %v765 = vshll.u32 %v756, %v763
        %v766 = vshrl.u32 %v748, %v764
        %v767 = vor.u32 %v765, %v766
        %v768 = vsub.s32 4294967266, %v763
        %v769 = vadd.s32 %v768, 127
        %v770 = vshll.u32 %v769, 23
        %v771 = vor.u32 4788187, %v770
        %v772 = vand.u32 2147483647, %v771
        %v774 = vcvt.s32.f32 %v767
        %v775 = vmul.f32 %v774, %v772
        %v776 = vxor.u32 %v775, 2147483648
        %v777 = vsel %vm694, %v776, %v775
        %v778 = vsub.s32 4, %v754
        %v779 = vsel %vm694, %v778, %v754
        %v780 = vsel %vm693, %v470, %v777
        %v781 = vsel %vm693, 0, %v779
        %v782 = vcosq.f32.pop %v780
        %v783 = vsinq.f32.pop %v780
        %vm784 = vweird.f32 %v470
        %v785 = vadd.s32 %v781, 3
        %v786 = vand.u32 %v785, 3
        %vm787 = vcmp.lt.s32.totalorder %v786, 2
        %vm788 = vcmp.eq.s32.totalorder %v786, 0
        %v789 = vxor.u32 %v783, 2147483648
        %v790 = vsel %vm788, %v782, %v789
        %vm791 = vcmp.eq.s32.totalorder %v786, 2
        %v792 = vxor.u32 %v782, 2147483648
        %v793 = vsel %vm791, %v792, %v783
        %v794 = vsel %vm787, %v790, %v793
        %v795 = vsel %vm784, nan, %v794
        %v796 = vand.u32 2147483647, %v471
        %vm797 = vcmp.le.f32.partialorder %v796, 0.7853982
        %vm798 = vcmp.lt.s32.totalorder %v471, 0
        %v799 = vand.u32 %v471, 2139095040
        %v800 = vshrl.u32 %v799, 23
        %v801 = vsub.s32 %v800, 127
        %v802 = vand.u32 2147483647, %v471
        %v803 = vand.u32 %v802, 8388607
        %v804 = vor.u32 %v803, 8388608
        %v805 = vsub.s32 0, %v804
        %v806 = vadd.s32 %v801, 1
        %vm807 = vcmp.gt.s32.totalorder %v806, 0
        %v808 = vsel %vm807, %v806, 0
        %v809 = vshrl.u32 %v808, 5
        %v810 = vand.u32 %v808, 31
        %v811 = vsub.s32 32, %v810
        %v812 = vshrl.u32 683565275, %v811
        %v813 = vshll.u32 683565275, %v810
        %v814 = vshrl.u32 2475754826, %v811
        %v815 = vor.u32 %v813, %v814
        %v816 = vshll.u32 2475754826, %v810
        %v817 = vshrl.u32 2131351028, %v811
        %v818 = vor.u32 %v816, %v817
        %v819 = vshll.u32 2131351028, %v810
        %v820 = vshrl.u32 2102212464, %v811
        %v821 = vor.u32 %v819, %v820
        %v822 = vshll.u32 2102212464, %v810
        %v823 = vshrl.u32 920167782, %v811
        %v824 = vor.u32 %v822, %v823
        %v825 = vshll.u32 920167782, %v810
        %v826 = vshrl.u32 1326507024, %v811
        %v827 = vor.u32 %v825, %v826
        %vm828 = vcmp.lt.s32.totalorder %v809, 1
        %vm829 = vcmp.lt.s32.totalorder %v809, 2
        %vm830 = vcmp.lt.s32.totalorder %v809, 3
        %vm831 = vcmp.lt.s32.totalorder %v809, 4
        %v832 = vsel %vm828, %v812, %v815
        %v833 = vsel %vm831, %v821, 2102212464
        %v834 = vsel %vm830, %v818, %v833
        %v835 = vsel %vm829, %v832, %v834
        %v836 = vsel %vm828, %v815, %v818
        %v837 = vsel %vm831, %v824, 920167782
        %v838 = vsel %vm830, %v821, %v837
        %v839 = vsel %vm829, %v836, %v838
        %v840 = vsel %vm828, %v818, %v821
        %v841 = vsel %vm831, %v827, 1326507024
        %v842 = vsel %vm830, %v824, %v841
        %v843 = vsel %vm829, %v840, %v842
        %v844 = vshll.u32 %v804, 8
        %v845 = vmul.u32.u64.compose %v844, %v843
        %v846 = vextract.low.u32 %v845
        %v847 = vextract.high.u32 %v845
        %v848 = vmul.u32.u64.compose %v844, %v839
        %v849 = vextract.low.u32 %v848
        %v850 = vextract.high.u32 %v848
        %v851 = vmul.u32 %v844, %v835
        %v852 = vadd.s32 %v847, %v849
        %vm853 = vc.u32 %v847, %v849
        %v854 = vadd.s32 %v850, 1
        %v855 = vsel %vm853, %v854, %v850
        %v856 = vadd.s32 %v851, %v855
        %v857 = vadd.s32 %v856, 536870912
        %v858 = vshrl.u32 %v857, 30
        %v859 = vshll.u32 %v858, 30
        %v860 = vsub.s32 %v856, %v859
        %vm861 = vcmp.lt.s32.totalorder %v860, 0
        %v862 = vsub.s32 0, %v860
        %v863 = vsel %vm861, %v862, %v860
        %v864 = vclz %v863
        %v865 = vsub.s32 %v864, 2
        %vm866 = vcmp.gt.s32.totalorder 0, %v865
        %v867 = vsel %vm866, 0, %v865
        %v868 = vsub.s32 32, %v867
        %v869 = vshll.u32 %v860, %v867
        %v870 = vshrl.u32 %v852, %v868
        %v871 = vor.u32 %v869, %v870
        %v872 = vsub.s32 4294967266, %v867
        %v873 = vadd.s32 %v872, 127
        %v874 = vshll.u32 %v873, 23
        %v875 = vor.u32 4788187, %v874
        %v876 = vand.u32 2147483647, %v875
        %v878 = vcvt.s32.f32 %v871
        %v879 = vmul.f32 %v878, %v876
        %v880 = vxor.u32 %v879, 2147483648
        %v881 = vsel %vm798, %v880, %v879
        %v882 = vsub.s32 4, %v858
        %v883 = vsel %vm798, %v882, %v858
        %v884 = vsel %vm797, %v471, %v881
        %v885 = vsel %vm797, 0, %v883
        %v886 = vcosq.f32.pop %v884
        %v887 = vsinq.f32.pop %v884
        %vm888 = vweird.f32 %v471
        %v889 = vadd.s32 %v885, 3
        %v890 = vand.u32 %v889, 3
        %vm891 = vcmp.lt.s32.totalorder %v890, 2
        %vm892 = vcmp.eq.s32.totalorder %v890, 0
        %v893 = vxor.u32 %v887, 2147483648
        %v894 = vsel %vm892, %v886, %v893
        %vm895 = vcmp.eq.s32.totalorder %v890, 2
        %v896 = vxor.u32 %v886, 2147483648
        %v897 = vsel %vm895, %v896, %v887
        %v898 = vsel %vm891, %v894, %v897
        %v899 = vsel %vm888, nan, %v898
        %v900 = vand.u32 2147483647, %v472
        %vm901 = vcmp.le.f32.partialorder %v900, 0.7853982
        %vm902 = vcmp.lt.s32.totalorder %v472, 0
        %v903 = vand.u32 %v472, 2139095040
        %v904 = vshrl.u32 %v903, 23
        %v905 = vsub.s32 %v904, 127
        %v906 = vand.u32 2147483647, %v472
        %v907 = vand.u32 %v906, 8388607
        %v908 = vor.u32 %v907, 8388608
        %v909 = vsub.s32 0, %v908
        %v910 = vadd.s32 %v905, 1
        %vm911 = vcmp.gt.s32.totalorder %v910, 0
        %v912 = vsel %vm911, %v910, 0
        %v913 = vshrl.u32 %v912, 5
        %v914 = vand.u32 %v912, 31
        %v915 = vsub.s32 32, %v914
        %v916 = vshrl.u32 683565275, %v915
        %v917 = vshll.u32 683565275, %v914
        %v918 = vshrl.u32 2475754826, %v915
        %v919 = vor.u32 %v917, %v918
        %v920 = vshll.u32 2475754826, %v914
        %v921 = vshrl.u32 2131351028, %v915
        %v922 = vor.u32 %v920, %v921
        %v923 = vshll.u32 2131351028, %v914
        %v924 = vshrl.u32 2102212464, %v915
        %v925 = vor.u32 %v923, %v924
        %v926 = vshll.u32 2102212464, %v914
        %v927 = vshrl.u32 920167782, %v915
        %v928 = vor.u32 %v926, %v927
        %v929 = vshll.u32 920167782, %v914
        %v930 = vshrl.u32 1326507024, %v915
        %v931 = vor.u32 %v929, %v930
        %vm932 = vcmp.lt.s32.totalorder %v913, 1
        %vm933 = vcmp.lt.s32.totalorder %v913, 2
        %vm934 = vcmp.lt.s32.totalorder %v913, 3
        %vm935 = vcmp.lt.s32.totalorder %v913, 4
        %v936 = vsel %vm932, %v916, %v919
        %v937 = vsel %vm935, %v925, 2102212464
        %v938 = vsel %vm934, %v922, %v937
        %v939 = vsel %vm933, %v936, %v938
        %v940 = vsel %vm932, %v919, %v922
        %v941 = vsel %vm935, %v928, 920167782
        %v942 = vsel %vm934, %v925, %v941
        %v943 = vsel %vm933, %v940, %v942
        %v944 = vsel %vm932, %v922, %v925
        %v945 = vsel %vm935, %v931, 1326507024
        %v946 = vsel %vm934, %v928, %v945
        %v947 = vsel %vm933, %v944, %v946
        %v948 = vshll.u32 %v908, 8
        %v949 = vmul.u32.u64.compose %v948, %v947
        %v950 = vextract.low.u32 %v949
        %v951 = vextract.high.u32 %v949
        %v952 = vmul.u32.u64.compose %v948, %v943
        %v953 = vextract.low.u32 %v952
        %v954 = vextract.high.u32 %v952
        %v955 = vmul.u32 %v948, %v939
        %v956 = vadd.s32 %v951, %v953
        %vm957 = vc.u32 %v951, %v953
        %v958 = vadd.s32 %v954, 1
        %v959 = vsel %vm957, %v958, %v954
        %v960 = vadd.s32 %v955, %v959
        %v961 = vadd.s32 %v960, 536870912
        %v962 = vshrl.u32 %v961, 30
        %v963 = vshll.u32 %v962, 30
        %v964 = vsub.s32 %v960, %v963
        %vm965 = vcmp.lt.s32.totalorder %v964, 0
        %v966 = vsub.s32 0, %v964
        %v967 = vsel %vm965, %v966, %v964
        %v968 = vclz %v967
        %v969 = vsub.s32 %v968, 2
        %vm970 = vcmp.gt.s32.totalorder 0, %v969
        %v971 = vsel %vm970, 0, %v969
        %v972 = vsub.s32 32, %v971
        %v973 = vshll.u32 %v964, %v971
        %v974 = vshrl.u32 %v956, %v972
        %v975 = vor.u32 %v973, %v974
        %v976 = vsub.s32 4294967266, %v971
        %v977 = vadd.s32 %v976, 127
        %v978 = vshll.u32 %v977, 23
        %v979 = vor.u32 4788187, %v978
        %v980 = vand.u32 2147483647, %v979
        %v982 = vcvt.s32.f32 %v975
        %v983 = vmul.f32 %v982, %v980
        %v984 = vxor.u32 %v983, 2147483648
        %v985 = vsel %vm902, %v984, %v983
        %v986 = vsub.s32 4, %v962
        %v987 = vsel %vm902, %v986, %v962
        %v988 = vsel %vm901, %v472, %v985
        %v989 = vsel %vm901, 0, %v987
        %v990 = vcosq.f32.pop %v988
        %v991 = vsinq.f32.pop %v988
        %vm992 = vweird.f32 %v472
        %v993 = vadd.s32 %v989, 3
        %v994 = vand.u32 %v993, 3
        %vm995 = vcmp.lt.s32.totalorder %v994, 2
        %vm996 = vcmp.eq.s32.totalorder %v994, 0
        %v997 = vxor.u32 %v991, 2147483648
        %v998 = vsel %vm996, %v990, %v997
        %vm999 = vcmp.eq.s32.totalorder %v994, 2
        %v1000 = vxor.u32 %v990, 2147483648
        %v1001 = vsel %vm999, %v1000, %v991
        %v1002 = vsel %vm995, %v998, %v1001
        %v1003 = vsel %vm992, nan, %v1002
        %v1004 = vand.u32 2147483647, %v473
        %vm1005 = vcmp.le.f32.partialorder %v1004, 0.7853982
        %vm1006 = vcmp.lt.s32.totalorder %v473, 0
        %v1007 = vand.u32 %v473, 2139095040
        %v1008 = vshrl.u32 %v1007, 23
        %v1009 = vsub.s32 %v1008, 127
        %v1010 = vand.u32 2147483647, %v473
        %v1011 = vand.u32 %v1010, 8388607
        %v1012 = vor.u32 %v1011, 8388608
        %v1013 = vsub.s32 0, %v1012
        %v1014 = vadd.s32 %v1009, 1
        %vm1015 = vcmp.gt.s32.totalorder %v1014, 0
        %v1016 = vsel %vm1015, %v1014, 0
        %v1017 = vshrl.u32 %v1016, 5
        %v1018 = vand.u32 %v1016, 31
        %v1019 = vsub.s32 32, %v1018
        %v1020 = vshrl.u32 683565275, %v1019
        %v1021 = vshll.u32 683565275, %v1018
        %v1022 = vshrl.u32 2475754826, %v1019
        %v1023 = vor.u32 %v1021, %v1022
        %v1024 = vshll.u32 2475754826, %v1018
        %v1025 = vshrl.u32 2131351028, %v1019
        %v1026 = vor.u32 %v1024, %v1025
        %v1027 = vshll.u32 2131351028, %v1018
        %v1028 = vshrl.u32 2102212464, %v1019
        %v1029 = vor.u32 %v1027, %v1028
        %v1030 = vshll.u32 2102212464, %v1018
        %v1031 = vshrl.u32 920167782, %v1019
        %v1032 = vor.u32 %v1030, %v1031
        %v1033 = vshll.u32 920167782, %v1018
        %v1034 = vshrl.u32 1326507024, %v1019
        %v1035 = vor.u32 %v1033, %v1034
        %vm1036 = vcmp.lt.s32.totalorder %v1017, 1
        %vm1037 = vcmp.lt.s32.totalorder %v1017, 2
        %vm1038 = vcmp.lt.s32.totalorder %v1017, 3
        %vm1039 = vcmp.lt.s32.totalorder %v1017, 4
        %v1040 = vsel %vm1036, %v1020, %v1023
        %v1041 = vsel %vm1039, %v1029, 2102212464
        %v1042 = vsel %vm1038, %v1026, %v1041
        %v1043 = vsel %vm1037, %v1040, %v1042
        %v1044 = vsel %vm1036, %v1023, %v1026
        %v1045 = vsel %vm1039, %v1032, 920167782
        %v1046 = vsel %vm1038, %v1029, %v1045
        %v1047 = vsel %vm1037, %v1044, %v1046
        %v1048 = vsel %vm1036, %v1026, %v1029
        %v1049 = vsel %vm1039, %v1035, 1326507024
        %v1050 = vsel %vm1038, %v1032, %v1049
        %v1051 = vsel %vm1037, %v1048, %v1050
        %v1052 = vshll.u32 %v1012, 8
        %v1053 = vmul.u32.u64.compose %v1052, %v1051
        %v1054 = vextract.low.u32 %v1053
        %v1055 = vextract.high.u32 %v1053
        %v1056 = vmul.u32.u64.compose %v1052, %v1047
        %v1057 = vextract.low.u32 %v1056
        %v1058 = vextract.high.u32 %v1056
        %v1059 = vmul.u32 %v1052, %v1043
        %v1060 = vadd.s32 %v1055, %v1057
        %vm1061 = vc.u32 %v1055, %v1057
        %v1062 = vadd.s32 %v1058, 1
        %v1063 = vsel %vm1061, %v1062, %v1058
        %v1064 = vadd.s32 %v1059, %v1063
        %v1065 = vadd.s32 %v1064, 536870912
        %v1066 = vshrl.u32 %v1065, 30
        %v1067 = vshll.u32 %v1066, 30
        %v1068 = vsub.s32 %v1064, %v1067
        %vm1069 = vcmp.lt.s32.totalorder %v1068, 0
        %v1070 = vsub.s32 0, %v1068
        %v1071 = vsel %vm1069, %v1070, %v1068
        %v1072 = vclz %v1071
        %v1073 = vsub.s32 %v1072, 2
        %vm1074 = vcmp.gt.s32.totalorder 0, %v1073
        %v1075 = vsel %vm1074, 0, %v1073
        %v1076 = vsub.s32 32, %v1075
        %v1077 = vshll.u32 %v1068, %v1075
        %v1078 = vshrl.u32 %v1060, %v1076
        %v1079 = vor.u32 %v1077, %v1078
        %v1080 = vsub.s32 4294967266, %v1075
        %v1081 = vadd.s32 %v1080, 127
        %v1082 = vshll.u32 %v1081, 23
        %v1083 = vor.u32 4788187, %v1082
        %v1084 = vand.u32 2147483647, %v1083
        %v1086 = vcvt.s32.f32 %v1079
        %v1087 = vmul.f32 %v1086, %v1084
        %v1088 = vxor.u32 %v1087, 2147483648
        %v1089 = vsel %vm1006, %v1088, %v1087
        %v1090 = vsub.s32 4, %v1066
        %v1091 = vsel %vm1006, %v1090, %v1066
        %v1092 = vsel %vm1005, %v473, %v1089
        %v1093 = vsel %vm1005, 0, %v1091
        %v1094 = vcosq.f32.pop %v1092
        %v1095 = vsinq.f32.pop %v1092
        %vm1096 = vweird.f32 %v473
        %v1097 = vadd.s32 %v1093, 3
        %v1098 = vand.u32 %v1097, 3
        %vm1099 = vcmp.lt.s32.totalorder %v1098, 2
        %vm1100 = vcmp.eq.s32.totalorder %v1098, 0
        %v1101 = vxor.u32 %v1095, 2147483648
        %v1102 = vsel %vm1100, %v1094, %v1101
        %vm1103 = vcmp.eq.s32.totalorder %v1098, 2
        %v1104 = vxor.u32 %v1094, 2147483648
        %v1105 = vsel %vm1103, %v1104, %v1095
        %v1106 = vsel %vm1099, %v1102, %v1105
        %v1107 = vsel %vm1096, nan, %v1106
        %v1108 = vand.u32 2147483647, %v474
        %vm1109 = vcmp.le.f32.partialorder %v1108, 0.7853982
        %vm1110 = vcmp.lt.s32.totalorder %v474, 0
        %v1111 = vand.u32 %v474, 2139095040
        %v1112 = vshrl.u32 %v1111, 23
        %v1113 = vsub.s32 %v1112, 127
        %v1114 = vand.u32 2147483647, %v474
        %v1115 = vand.u32 %v1114, 8388607
        %v1116 = vor.u32 %v1115, 8388608
        %v1117 = vsub.s32 0, %v1116
        %v1118 = vadd.s32 %v1113, 1
        %vm1119 = vcmp.gt.s32.totalorder %v1118, 0
        %v1120 = vsel %vm1119, %v1118, 0
        %v1121 = vshrl.u32 %v1120, 5
        %v1122 = vand.u32 %v1120, 31
        %v1123 = vsub.s32 32, %v1122
        %v1124 = vshrl.u32 683565275, %v1123
        %v1125 = vshll.u32 683565275, %v1122
        %v1126 = vshrl.u32 2475754826, %v1123
        %v1127 = vor.u32 %v1125, %v1126
        %v1128 = vshll.u32 2475754826, %v1122
        %v1129 = vshrl.u32 2131351028, %v1123
        %v1130 = vor.u32 %v1128, %v1129
        %v1131 = vshll.u32 2131351028, %v1122
        %v1132 = vshrl.u32 2102212464, %v1123
        %v1133 = vor.u32 %v1131, %v1132
        %v1134 = vshll.u32 2102212464, %v1122
        %v1135 = vshrl.u32 920167782, %v1123
        %v1136 = vor.u32 %v1134, %v1135
        %v1137 = vshll.u32 920167782, %v1122
        %v1138 = vshrl.u32 1326507024, %v1123
        %v1139 = vor.u32 %v1137, %v1138
        %vm1140 = vcmp.lt.s32.totalorder %v1121, 1
        %vm1141 = vcmp.lt.s32.totalorder %v1121, 2
        %vm1142 = vcmp.lt.s32.totalorder %v1121, 3
        %vm1143 = vcmp.lt.s32.totalorder %v1121, 4
        %v1144 = vsel %vm1140, %v1124, %v1127
        %v1145 = vsel %vm1143, %v1133, 2102212464
        %v1146 = vsel %vm1142, %v1130, %v1145
        %v1147 = vsel %vm1141, %v1144, %v1146
        %v1148 = vsel %vm1140, %v1127, %v1130
        %v1149 = vsel %vm1143, %v1136, 920167782
        %v1150 = vsel %vm1142, %v1133, %v1149
        %v1151 = vsel %vm1141, %v1148, %v1150
        %v1152 = vsel %vm1140, %v1130, %v1133
        %v1153 = vsel %vm1143, %v1139, 1326507024
        %v1154 = vsel %vm1142, %v1136, %v1153
        %v1155 = vsel %vm1141, %v1152, %v1154
        %v1156 = vshll.u32 %v1116, 8
        %v1157 = vmul.u32.u64.compose %v1156, %v1155
        %v1158 = vextract.low.u32 %v1157
        %v1159 = vextract.high.u32 %v1157
        %v1160 = vmul.u32.u64.compose %v1156, %v1151
        %v1161 = vextract.low.u32 %v1160
        %v1162 = vextract.high.u32 %v1160
        %v1163 = vmul.u32 %v1156, %v1147
        %v1164 = vadd.s32 %v1159, %v1161
        %vm1165 = vc.u32 %v1159, %v1161
        %v1166 = vadd.s32 %v1162, 1
        %v1167 = vsel %vm1165, %v1166, %v1162
        %v1168 = vadd.s32 %v1163, %v1167
        %v1169 = vadd.s32 %v1168, 536870912
        %v1170 = vshrl.u32 %v1169, 30
        %v1171 = vshll.u32 %v1170, 30
        %v1172 = vsub.s32 %v1168, %v1171
        %vm1173 = vcmp.lt.s32.totalorder %v1172, 0
        %v1174 = vsub.s32 0, %v1172
        %v1175 = vsel %vm1173, %v1174, %v1172
        %v1176 = vclz %v1175
        %v1177 = vsub.s32 %v1176, 2
        %vm1178 = vcmp.gt.s32.totalorder 0, %v1177
        %v1179 = vsel %vm1178, 0, %v1177
        %v1180 = vsub.s32 32, %v1179
        %v1181 = vshll.u32 %v1172, %v1179
        %v1182 = vshrl.u32 %v1164, %v1180
        %v1183 = vor.u32 %v1181, %v1182
        %v1184 = vsub.s32 4294967266, %v1179
        %v1185 = vadd.s32 %v1184, 127
        %v1186 = vshll.u32 %v1185, 23
        %v1187 = vor.u32 4788187, %v1186
        %v1188 = vand.u32 2147483647, %v1187
        %v1190 = vcvt.s32.f32 %v1183
        %v1191 = vmul.f32 %v1190, %v1188
        %v1192 = vxor.u32 %v1191, 2147483648
        %v1193 = vsel %vm1110, %v1192, %v1191
        %v1194 = vsub.s32 4, %v1170
        %v1195 = vsel %vm1110, %v1194, %v1170
        %v1196 = vsel %vm1109, %v474, %v1193
        %v1197 = vsel %vm1109, 0, %v1195
        %v1198 = vcosq.f32.pop %v1196
        %v1199 = vsinq.f32.pop %v1196
        %vm1200 = vweird.f32 %v474
        %v1201 = vadd.s32 %v1197, 3
        %v1202 = vand.u32 %v1201, 3
        %vm1203 = vcmp.lt.s32.totalorder %v1202, 2
        %vm1204 = vcmp.eq.s32.totalorder %v1202, 0
        %v1205 = vxor.u32 %v1199, 2147483648
        %v1206 = vsel %vm1204, %v1198, %v1205
        %vm1207 = vcmp.eq.s32.totalorder %v1202, 2
        %v1208 = vxor.u32 %v1198, 2147483648
        %v1209 = vsel %vm1207, %v1208, %v1199
        %v1210 = vsel %vm1203, %v1206, %v1209
        %v1211 = vsel %vm1200, nan, %v1210
        %v1212 = vand.u32 2147483647, %v475
        %vm1213 = vcmp.le.f32.partialorder %v1212, 0.7853982
        %vm1214 = vcmp.lt.s32.totalorder %v475, 0
        %v1215 = vand.u32 %v475, 2139095040
        %v1216 = vshrl.u32 %v1215, 23
        %v1217 = vsub.s32 %v1216, 127
        %v1218 = vand.u32 2147483647, %v475
        %v1219 = vand.u32 %v1218, 8388607
        %v1220 = vor.u32 %v1219, 8388608
        %v1221 = vsub.s32 0, %v1220
        %v1222 = vadd.s32 %v1217, 1
        %vm1223 = vcmp.gt.s32.totalorder %v1222, 0
        %v1224 = vsel %vm1223, %v1222, 0
        %v1225 = vshrl.u32 %v1224, 5
        %v1226 = vand.u32 %v1224, 31
        %v1227 = vsub.s32 32, %v1226
        %v1228 = vshrl.u32 683565275, %v1227
        %v1229 = vshll.u32 683565275, %v1226
        %v1230 = vshrl.u32 2475754826, %v1227
        %v1231 = vor.u32 %v1229, %v1230
        %v1232 = vshll.u32 2475754826, %v1226
        %v1233 = vshrl.u32 2131351028, %v1227
        %v1234 = vor.u32 %v1232, %v1233
        %v1235 = vshll.u32 2131351028, %v1226
        %v1236 = vshrl.u32 2102212464, %v1227
        %v1237 = vor.u32 %v1235, %v1236
        %v1238 = vshll.u32 2102212464, %v1226
        %v1239 = vshrl.u32 920167782, %v1227
        %v1240 = vor.u32 %v1238, %v1239
        %v1241 = vshll.u32 920167782, %v1226
        %v1242 = vshrl.u32 1326507024, %v1227
        %v1243 = vor.u32 %v1241, %v1242
        %vm1244 = vcmp.lt.s32.totalorder %v1225, 1
        %vm1245 = vcmp.lt.s32.totalorder %v1225, 2
        %vm1246 = vcmp.lt.s32.totalorder %v1225, 3
        %vm1247 = vcmp.lt.s32.totalorder %v1225, 4
        %v1248 = vsel %vm1244, %v1228, %v1231
        %v1249 = vsel %vm1247, %v1237, 2102212464
        %v1250 = vsel %vm1246, %v1234, %v1249
        %v1251 = vsel %vm1245, %v1248, %v1250
        %v1252 = vsel %vm1244, %v1231, %v1234
        %v1253 = vsel %vm1247, %v1240, 920167782
        %v1254 = vsel %vm1246, %v1237, %v1253
        %v1255 = vsel %vm1245, %v1252, %v1254
        %v1256 = vsel %vm1244, %v1234, %v1237
        %v1257 = vsel %vm1247, %v1243, 1326507024
        %v1258 = vsel %vm1246, %v1240, %v1257
        %v1259 = vsel %vm1245, %v1256, %v1258
        %v1260 = vshll.u32 %v1220, 8
        %v1261 = vmul.u32.u64.compose %v1260, %v1259
        %v1262 = vextract.low.u32 %v1261
        %v1263 = vextract.high.u32 %v1261
        %v1264 = vmul.u32.u64.compose %v1260, %v1255
        %v1265 = vextract.low.u32 %v1264
        %v1266 = vextract.high.u32 %v1264
        %v1267 = vmul.u32 %v1260, %v1251
        %v1268 = vadd.s32 %v1263, %v1265
        %vm1269 = vc.u32 %v1263, %v1265
        %v1270 = vadd.s32 %v1266, 1
        %v1271 = vsel %vm1269, %v1270, %v1266
        %v1272 = vadd.s32 %v1267, %v1271
        %v1273 = vadd.s32 %v1272, 536870912
        %v1274 = vshrl.u32 %v1273, 30
        %v1275 = vshll.u32 %v1274, 30
        %v1276 = vsub.s32 %v1272, %v1275
        %vm1277 = vcmp.lt.s32.totalorder %v1276, 0
        %v1278 = vsub.s32 0, %v1276
        %v1279 = vsel %vm1277, %v1278, %v1276
        %v1280 = vclz %v1279
        %v1281 = vsub.s32 %v1280, 2
        %vm1282 = vcmp.gt.s32.totalorder 0, %v1281
        %v1283 = vsel %vm1282, 0, %v1281
        %v1284 = vsub.s32 32, %v1283
        %v1285 = vshll.u32 %v1276, %v1283
        %v1286 = vshrl.u32 %v1268, %v1284
        %v1287 = vor.u32 %v1285, %v1286
        %v1288 = vsub.s32 4294967266, %v1283
        %v1289 = vadd.s32 %v1288, 127
        %v1290 = vshll.u32 %v1289, 23
        %v1291 = vor.u32 4788187, %v1290
        %v1292 = vand.u32 2147483647, %v1291
        %v1294 = vcvt.s32.f32 %v1287
        %v1295 = vmul.f32 %v1294, %v1292
        %v1296 = vxor.u32 %v1295, 2147483648
        %v1297 = vsel %vm1214, %v1296, %v1295
        %v1298 = vsub.s32 4, %v1274
        %v1299 = vsel %vm1214, %v1298, %v1274
        %v1300 = vsel %vm1213, %v475, %v1297
        %v1301 = vsel %vm1213, 0, %v1299
        %v1302 = vcosq.f32.pop %v1300
        %v1303 = vsinq.f32.pop %v1300
        %vm1304 = vweird.f32 %v475
        %v1305 = vadd.s32 %v1301, 3
        %v1306 = vand.u32 %v1305, 3
        %vm1307 = vcmp.lt.s32.totalorder %v1306, 2
        %vm1308 = vcmp.eq.s32.totalorder %v1306, 0
        %v1309 = vxor.u32 %v1303, 2147483648
        %v1310 = vsel %vm1308, %v1302, %v1309
        %vm1311 = vcmp.eq.s32.totalorder %v1306, 2
        %v1312 = vxor.u32 %v1302, 2147483648
        %v1313 = vsel %vm1311, %v1312, %v1303
        %v1314 = vsel %vm1307, %v1310, %v1313
        %v1315 = vsel %vm1304, nan, %v1314
        %v1316 = vand.u32 2147483647, %v476
        %vm1317 = vcmp.le.f32.partialorder %v1316, 0.7853982
        %vm1318 = vcmp.lt.s32.totalorder %v476, 0
        %v1319 = vand.u32 %v476, 2139095040
        %v1320 = vshrl.u32 %v1319, 23
        %v1321 = vsub.s32 %v1320, 127
        %v1322 = vand.u32 2147483647, %v476
        %v1323 = vand.u32 %v1322, 8388607
        %v1324 = vor.u32 %v1323, 8388608
        %v1325 = vsub.s32 0, %v1324
        %v1326 = vadd.s32 %v1321, 1
        %vm1327 = vcmp.gt.s32.totalorder %v1326, 0
        %v1328 = vsel %vm1327, %v1326, 0
        %v1329 = vshrl.u32 %v1328, 5
        %v1330 = vand.u32 %v1328, 31
        %v1331 = vsub.s32 32, %v1330
        %v1332 = vshrl.u32 683565275, %v1331
        %v1333 = vshll.u32 683565275, %v1330
        %v1334 = vshrl.u32 2475754826, %v1331
        %v1335 = vor.u32 %v1333, %v1334
        %v1336 = vshll.u32 2475754826, %v1330
        %v1337 = vshrl.u32 2131351028, %v1331
        %v1338 = vor.u32 %v1336, %v1337
        %v1339 = vshll.u32 2131351028, %v1330
        %v1340 = vshrl.u32 2102212464, %v1331
        %v1341 = vor.u32 %v1339, %v1340
        %v1342 = vshll.u32 2102212464, %v1330
        %v1343 = vshrl.u32 920167782, %v1331
        %v1344 = vor.u32 %v1342, %v1343
        %v1345 = vshll.u32 920167782, %v1330
        %v1346 = vshrl.u32 1326507024, %v1331
        %v1347 = vor.u32 %v1345, %v1346
        %vm1348 = vcmp.lt.s32.totalorder %v1329, 1
        %vm1349 = vcmp.lt.s32.totalorder %v1329, 2
        %vm1350 = vcmp.lt.s32.totalorder %v1329, 3
        %vm1351 = vcmp.lt.s32.totalorder %v1329, 4
        %v1352 = vsel %vm1348, %v1332, %v1335
        %v1353 = vsel %vm1351, %v1341, 2102212464
        %v1354 = vsel %vm1350, %v1338, %v1353
        %v1355 = vsel %vm1349, %v1352, %v1354
        %v1356 = vsel %vm1348, %v1335, %v1338
        %v1357 = vsel %vm1351, %v1344, 920167782
        %v1358 = vsel %vm1350, %v1341, %v1357
        %v1359 = vsel %vm1349, %v1356, %v1358
        %v1360 = vsel %vm1348, %v1338, %v1341
        %v1361 = vsel %vm1351, %v1347, 1326507024
        %v1362 = vsel %vm1350, %v1344, %v1361
        %v1363 = vsel %vm1349, %v1360, %v1362
        %v1364 = vshll.u32 %v1324, 8
        %v1365 = vmul.u32.u64.compose %v1364, %v1363
        %v1366 = vextract.low.u32 %v1365
        %v1367 = vextract.high.u32 %v1365
        %v1368 = vmul.u32.u64.compose %v1364, %v1359
        %v1369 = vextract.low.u32 %v1368
        %v1370 = vextract.high.u32 %v1368
        %v1371 = vmul.u32 %v1364, %v1355
        %v1372 = vadd.s32 %v1367, %v1369
        %vm1373 = vc.u32 %v1367, %v1369
        %v1374 = vadd.s32 %v1370, 1
        %v1375 = vsel %vm1373, %v1374, %v1370
        %v1376 = vadd.s32 %v1371, %v1375
        %v1377 = vadd.s32 %v1376, 536870912
        %v1378 = vshrl.u32 %v1377, 30
        %v1379 = vshll.u32 %v1378, 30
        %v1380 = vsub.s32 %v1376, %v1379
        %vm1381 = vcmp.lt.s32.totalorder %v1380, 0
        %v1382 = vsub.s32 0, %v1380
        %v1383 = vsel %vm1381, %v1382, %v1380
        %v1384 = vclz %v1383
        %v1385 = vsub.s32 %v1384, 2
        %vm1386 = vcmp.gt.s32.totalorder 0, %v1385
        %v1387 = vsel %vm1386, 0, %v1385
        %v1388 = vsub.s32 32, %v1387
        %v1389 = vshll.u32 %v1380, %v1387
        %v1390 = vshrl.u32 %v1372, %v1388
        %v1391 = vor.u32 %v1389, %v1390
        %v1392 = vsub.s32 4294967266, %v1387
        %v1393 = vadd.s32 %v1392, 127
        %v1394 = vshll.u32 %v1393, 23
        %v1395 = vor.u32 4788187, %v1394
        %v1396 = vand.u32 2147483647, %v1395
        %v1398 = vcvt.s32.f32 %v1391
        %v1399 = vmul.f32 %v1398, %v1396
        %v1400 = vxor.u32 %v1399, 2147483648
        %v1401 = vsel %vm1318, %v1400, %v1399
        %v1402 = vsub.s32 4, %v1378
        %v1403 = vsel %vm1318, %v1402, %v1378
        %v1404 = vsel %vm1317, %v476, %v1401
        %v1405 = vsel %vm1317, 0, %v1403
        %v1406 = vcosq.f32.pop %v1404
        %v1407 = vsinq.f32.pop %v1404
        %vm1408 = vweird.f32 %v476
        %v1409 = vadd.s32 %v1405, 3
        %v1410 = vand.u32 %v1409, 3
        %vm1411 = vcmp.lt.s32.totalorder %v1410, 2
        %vm1412 = vcmp.eq.s32.totalorder %v1410, 0
        %v1413 = vxor.u32 %v1407, 2147483648
        %v1414 = vsel %vm1412, %v1406, %v1413
        %vm1415 = vcmp.eq.s32.totalorder %v1410, 2
        %v1416 = vxor.u32 %v1406, 2147483648
        %v1417 = vsel %vm1415, %v1416, %v1407
        %v1418 = vsel %vm1411, %v1414, %v1417
        %v1419 = vsel %vm1408, nan, %v1418
        %v1420 = vand.u32 2147483647, %v477
        %vm1421 = vcmp.le.f32.partialorder %v1420, 0.7853982
        %vm1422 = vcmp.lt.s32.totalorder %v477, 0
        %v1423 = vand.u32 %v477, 2139095040
        %v1424 = vshrl.u32 %v1423, 23
        %v1425 = vsub.s32 %v1424, 127
        %v1426 = vand.u32 2147483647, %v477
        %v1427 = vand.u32 %v1426, 8388607
        %v1428 = vor.u32 %v1427, 8388608
        %v1429 = vsub.s32 0, %v1428
        %v1430 = vadd.s32 %v1425, 1
        %vm1431 = vcmp.gt.s32.totalorder %v1430, 0
        %v1432 = vsel %vm1431, %v1430, 0
        %v1433 = vshrl.u32 %v1432, 5
        %v1434 = vand.u32 %v1432, 31
        %v1435 = vsub.s32 32, %v1434
        %v1436 = vshrl.u32 683565275, %v1435
        %v1437 = vshll.u32 683565275, %v1434
        %v1438 = vshrl.u32 2475754826, %v1435
        %v1439 = vor.u32 %v1437, %v1438
        %v1440 = vshll.u32 2475754826, %v1434
        %v1441 = vshrl.u32 2131351028, %v1435
        %v1442 = vor.u32 %v1440, %v1441
        %v1443 = vshll.u32 2131351028, %v1434
        %v1444 = vshrl.u32 2102212464, %v1435
        %v1445 = vor.u32 %v1443, %v1444
        %v1446 = vshll.u32 2102212464, %v1434
        %v1447 = vshrl.u32 920167782, %v1435
        %v1448 = vor.u32 %v1446, %v1447
        %v1449 = vshll.u32 920167782, %v1434
        %v1450 = vshrl.u32 1326507024, %v1435
        %v1451 = vor.u32 %v1449, %v1450
        %vm1452 = vcmp.lt.s32.totalorder %v1433, 1
        %vm1453 = vcmp.lt.s32.totalorder %v1433, 2
        %vm1454 = vcmp.lt.s32.totalorder %v1433, 3
        %vm1455 = vcmp.lt.s32.totalorder %v1433, 4
        %v1456 = vsel %vm1452, %v1436, %v1439
        %v1457 = vsel %vm1455, %v1445, 2102212464
        %v1458 = vsel %vm1454, %v1442, %v1457
        %v1459 = vsel %vm1453, %v1456, %v1458
        %v1460 = vsel %vm1452, %v1439, %v1442
        %v1461 = vsel %vm1455, %v1448, 920167782
        %v1462 = vsel %vm1454, %v1445, %v1461
        %v1463 = vsel %vm1453, %v1460, %v1462
        %v1464 = vsel %vm1452, %v1442, %v1445
        %v1465 = vsel %vm1455, %v1451, 1326507024
        %v1466 = vsel %vm1454, %v1448, %v1465
        %v1467 = vsel %vm1453, %v1464, %v1466
        %v1468 = vshll.u32 %v1428, 8
        %v1469 = vmul.u32.u64.compose %v1468, %v1467
        %v1470 = vextract.low.u32 %v1469
        %v1471 = vextract.high.u32 %v1469
        %v1472 = vmul.u32.u64.compose %v1468, %v1463
        %v1473 = vextract.low.u32 %v1472
        %v1474 = vextract.high.u32 %v1472
        %v1475 = vmul.u32 %v1468, %v1459
        %v1476 = vadd.s32 %v1471, %v1473
        %vm1477 = vc.u32 %v1471, %v1473
        %v1478 = vadd.s32 %v1474, 1
        %v1479 = vsel %vm1477, %v1478, %v1474
        %v1480 = vadd.s32 %v1475, %v1479
        %v1481 = vadd.s32 %v1480, 536870912
        %v1482 = vshrl.u32 %v1481, 30
        %v1483 = vshll.u32 %v1482, 30
        %v1484 = vsub.s32 %v1480, %v1483
        %vm1485 = vcmp.lt.s32.totalorder %v1484, 0
        %v1486 = vsub.s32 0, %v1484
        %v1487 = vsel %vm1485, %v1486, %v1484
        %v1488 = vclz %v1487
        %v1489 = vsub.s32 %v1488, 2
        %vm1490 = vcmp.gt.s32.totalorder 0, %v1489
        %v1491 = vsel %vm1490, 0, %v1489
        %v1492 = vsub.s32 32, %v1491
        %v1493 = vshll.u32 %v1484, %v1491
        %v1494 = vshrl.u32 %v1476, %v1492
        %v1495 = vor.u32 %v1493, %v1494
        %v1496 = vsub.s32 4294967266, %v1491
        %v1497 = vadd.s32 %v1496, 127
        %v1498 = vshll.u32 %v1497, 23
        %v1499 = vor.u32 4788187, %v1498
        %v1500 = vand.u32 2147483647, %v1499
        %v1502 = vcvt.s32.f32 %v1495
        %v1503 = vmul.f32 %v1502, %v1500
        %v1504 = vxor.u32 %v1503, 2147483648
        %v1505 = vsel %vm1422, %v1504, %v1503
        %v1506 = vsub.s32 4, %v1482
        %v1507 = vsel %vm1422, %v1506, %v1482
        %v1508 = vsel %vm1421, %v477, %v1505
        %v1509 = vsel %vm1421, 0, %v1507
        %v1510 = vcosq.f32.pop %v1508
        %v1511 = vsinq.f32.pop %v1508
        %vm1512 = vweird.f32 %v477
        %v1513 = vadd.s32 %v1509, 3
        %v1514 = vand.u32 %v1513, 3
        %vm1515 = vcmp.lt.s32.totalorder %v1514, 2
        %vm1516 = vcmp.eq.s32.totalorder %v1514, 0
        %v1517 = vxor.u32 %v1511, 2147483648
        %v1518 = vsel %vm1516, %v1510, %v1517
        %vm1519 = vcmp.eq.s32.totalorder %v1514, 2
        %v1520 = vxor.u32 %v1510, 2147483648
        %v1521 = vsel %vm1519, %v1520, %v1511
        %v1522 = vsel %vm1515, %v1518, %v1521
        %v1523 = vsel %vm1512, nan, %v1522
        %v1524 = vand.u32 2147483647, %v478
        %vm1525 = vcmp.le.f32.partialorder %v1524, 0.7853982
        %vm1526 = vcmp.lt.s32.totalorder %v478, 0
        %v1527 = vand.u32 %v478, 2139095040
        %v1528 = vshrl.u32 %v1527, 23
        %v1529 = vsub.s32 %v1528, 127
        %v1530 = vand.u32 2147483647, %v478
        %v1531 = vand.u32 %v1530, 8388607
        %v1532 = vor.u32 %v1531, 8388608
        %v1533 = vsub.s32 0, %v1532
        %v1534 = vadd.s32 %v1529, 1
        %vm1535 = vcmp.gt.s32.totalorder %v1534, 0
        %v1536 = vsel %vm1535, %v1534, 0
        %v1537 = vshrl.u32 %v1536, 5
        %v1538 = vand.u32 %v1536, 31
        %v1539 = vsub.s32 32, %v1538
        %v1540 = vshrl.u32 683565275, %v1539
        %v1541 = vshll.u32 683565275, %v1538
        %v1542 = vshrl.u32 2475754826, %v1539
        %v1543 = vor.u32 %v1541, %v1542
        %v1544 = vshll.u32 2475754826, %v1538
        %v1545 = vshrl.u32 2131351028, %v1539
        %v1546 = vor.u32 %v1544, %v1545
        %v1547 = vshll.u32 2131351028, %v1538
        %v1548 = vshrl.u32 2102212464, %v1539
        %v1549 = vor.u32 %v1547, %v1548
        %v1550 = vshll.u32 2102212464, %v1538
        %v1551 = vshrl.u32 920167782, %v1539
        %v1552 = vor.u32 %v1550, %v1551
        %v1553 = vshll.u32 920167782, %v1538
        %v1554 = vshrl.u32 1326507024, %v1539
        %v1555 = vor.u32 %v1553, %v1554
        %vm1556 = vcmp.lt.s32.totalorder %v1537, 1
        %vm1557 = vcmp.lt.s32.totalorder %v1537, 2
        %vm1558 = vcmp.lt.s32.totalorder %v1537, 3
        %vm1559 = vcmp.lt.s32.totalorder %v1537, 4
        %v1560 = vsel %vm1556, %v1540, %v1543
        %v1561 = vsel %vm1559, %v1549, 2102212464
        %v1562 = vsel %vm1558, %v1546, %v1561
        %v1563 = vsel %vm1557, %v1560, %v1562
        %v1564 = vsel %vm1556, %v1543, %v1546
        %v1565 = vsel %vm1559, %v1552, 920167782
        %v1566 = vsel %vm1558, %v1549, %v1565
        %v1567 = vsel %vm1557, %v1564, %v1566
        %v1568 = vsel %vm1556, %v1546, %v1549
        %v1569 = vsel %vm1559, %v1555, 1326507024
        %v1570 = vsel %vm1558, %v1552, %v1569
        %v1571 = vsel %vm1557, %v1568, %v1570
        %v1572 = vshll.u32 %v1532, 8
        %v1573 = vmul.u32.u64.compose %v1572, %v1571
        %v1574 = vextract.low.u32 %v1573
        %v1575 = vextract.high.u32 %v1573
        %v1576 = vmul.u32.u64.compose %v1572, %v1567
        %v1577 = vextract.low.u32 %v1576
        %v1578 = vextract.high.u32 %v1576
        %v1579 = vmul.u32 %v1572, %v1563
        %v1580 = vadd.s32 %v1575, %v1577
        %vm1581 = vc.u32 %v1575, %v1577
        %v1582 = vadd.s32 %v1578, 1
        %v1583 = vsel %vm1581, %v1582, %v1578
        %v1584 = vadd.s32 %v1579, %v1583
        %v1585 = vadd.s32 %v1584, 536870912
        %v1586 = vshrl.u32 %v1585, 30
        %v1587 = vshll.u32 %v1586, 30
        %v1588 = vsub.s32 %v1584, %v1587
        %vm1589 = vcmp.lt.s32.totalorder %v1588, 0
        %v1590 = vsub.s32 0, %v1588
        %v1591 = vsel %vm1589, %v1590, %v1588
        %v1592 = vclz %v1591
        %v1593 = vsub.s32 %v1592, 2
        %vm1594 = vcmp.gt.s32.totalorder 0, %v1593
        %v1595 = vsel %vm1594, 0, %v1593
        %v1596 = vsub.s32 32, %v1595
        %v1597 = vshll.u32 %v1588, %v1595
        %v1598 = vshrl.u32 %v1580, %v1596
        %v1599 = vor.u32 %v1597, %v1598
        %v1600 = vsub.s32 4294967266, %v1595
        %v1601 = vadd.s32 %v1600, 127
        %v1602 = vshll.u32 %v1601, 23
        %v1603 = vor.u32 4788187, %v1602
        %v1604 = vand.u32 2147483647, %v1603
        %v1606 = vcvt.s32.f32 %v1599
        %v1607 = vmul.f32 %v1606, %v1604
        %v1608 = vxor.u32 %v1607, 2147483648
        %v1609 = vsel %vm1526, %v1608, %v1607
        %v1610 = vsub.s32 4, %v1586
        %v1611 = vsel %vm1526, %v1610, %v1586
        %v1612 = vsel %vm1525, %v478, %v1609
        %v1613 = vsel %vm1525, 0, %v1611
        %v1614 = vcosq.f32.pop %v1612
        %v1615 = vsinq.f32.pop %v1612
        %vm1616 = vweird.f32 %v478
        %v1617 = vadd.s32 %v1613, 3
        %v1618 = vand.u32 %v1617, 3
        %vm1619 = vcmp.lt.s32.totalorder %v1618, 2
        %vm1620 = vcmp.eq.s32.totalorder %v1618, 0
        %v1621 = vxor.u32 %v1615, 2147483648
        %v1622 = vsel %vm1620, %v1614, %v1621
        %vm1623 = vcmp.eq.s32.totalorder %v1618, 2
        %v1624 = vxor.u32 %v1614, 2147483648
        %v1625 = vsel %vm1623, %v1624, %v1615
        %v1626 = vsel %vm1619, %v1622, %v1625
        %v1627 = vsel %vm1616, nan, %v1626
        %v1628 = vand.u32 2147483647, %v479
        %vm1629 = vcmp.le.f32.partialorder %v1628, 0.7853982
        %vm1630 = vcmp.lt.s32.totalorder %v479, 0
        %v1631 = vand.u32 %v479, 2139095040
        %v1632 = vshrl.u32 %v1631, 23
        %v1633 = vsub.s32 %v1632, 127
        %v1634 = vand.u32 2147483647, %v479
        %v1635 = vand.u32 %v1634, 8388607
        %v1636 = vor.u32 %v1635, 8388608
        %v1637 = vsub.s32 0, %v1636
        %v1638 = vadd.s32 %v1633, 1
        %vm1639 = vcmp.gt.s32.totalorder %v1638, 0
        %v1640 = vsel %vm1639, %v1638, 0
        %v1641 = vshrl.u32 %v1640, 5
        %v1642 = vand.u32 %v1640, 31
        %v1643 = vsub.s32 32, %v1642
        %v1644 = vshrl.u32 683565275, %v1643
        %v1645 = vshll.u32 683565275, %v1642
        %v1646 = vshrl.u32 2475754826, %v1643
        %v1647 = vor.u32 %v1645, %v1646
        %v1648 = vshll.u32 2475754826, %v1642
        %v1649 = vshrl.u32 2131351028, %v1643
        %v1650 = vor.u32 %v1648, %v1649
        %v1651 = vshll.u32 2131351028, %v1642
        %v1652 = vshrl.u32 2102212464, %v1643
        %v1653 = vor.u32 %v1651, %v1652
        %v1654 = vshll.u32 2102212464, %v1642
        %v1655 = vshrl.u32 920167782, %v1643
        %v1656 = vor.u32 %v1654, %v1655
        %v1657 = vshll.u32 920167782, %v1642
        %v1658 = vshrl.u32 1326507024, %v1643
        %v1659 = vor.u32 %v1657, %v1658
        %vm1660 = vcmp.lt.s32.totalorder %v1641, 1
        %vm1661 = vcmp.lt.s32.totalorder %v1641, 2
        %vm1662 = vcmp.lt.s32.totalorder %v1641, 3
        %vm1663 = vcmp.lt.s32.totalorder %v1641, 4
        %v1664 = vsel %vm1660, %v1644, %v1647
        %v1665 = vsel %vm1663, %v1653, 2102212464
        %v1666 = vsel %vm1662, %v1650, %v1665
        %v1667 = vsel %vm1661, %v1664, %v1666
        %v1668 = vsel %vm1660, %v1647, %v1650
        %v1669 = vsel %vm1663, %v1656, 920167782
        %v1670 = vsel %vm1662, %v1653, %v1669
        %v1671 = vsel %vm1661, %v1668, %v1670
        %v1672 = vsel %vm1660, %v1650, %v1653
        %v1673 = vsel %vm1663, %v1659, 1326507024
        %v1674 = vsel %vm1662, %v1656, %v1673
        %v1675 = vsel %vm1661, %v1672, %v1674
        %v1676 = vshll.u32 %v1636, 8
        %v1677 = vmul.u32.u64.compose %v1676, %v1675
        %v1678 = vextract.low.u32 %v1677
        %v1679 = vextract.high.u32 %v1677
        %v1680 = vmul.u32.u64.compose %v1676, %v1671
        %v1681 = vextract.low.u32 %v1680
        %v1682 = vextract.high.u32 %v1680
        %v1683 = vmul.u32 %v1676, %v1667
        %v1684 = vadd.s32 %v1679, %v1681
        %vm1685 = vc.u32 %v1679, %v1681
        %v1686 = vadd.s32 %v1682, 1
        %v1687 = vsel %vm1685, %v1686, %v1682
        %v1688 = vadd.s32 %v1683, %v1687
        %v1689 = vadd.s32 %v1688, 536870912
        %v1690 = vshrl.u32 %v1689, 30
        %v1691 = vshll.u32 %v1690, 30
        %v1692 = vsub.s32 %v1688, %v1691
        %vm1693 = vcmp.lt.s32.totalorder %v1692, 0
        %v1694 = vsub.s32 0, %v1692
        %v1695 = vsel %vm1693, %v1694, %v1692
        %v1696 = vclz %v1695
        %v1697 = vsub.s32 %v1696, 2
        %vm1698 = vcmp.gt.s32.totalorder 0, %v1697
        %v1699 = vsel %vm1698, 0, %v1697
        %v1700 = vsub.s32 32, %v1699
        %v1701 = vshll.u32 %v1692, %v1699
        %v1702 = vshrl.u32 %v1684, %v1700
        %v1703 = vor.u32 %v1701, %v1702
        %v1704 = vsub.s32 4294967266, %v1699
        %v1705 = vadd.s32 %v1704, 127
        %v1706 = vshll.u32 %v1705, 23
        %v1707 = vor.u32 4788187, %v1706
        %v1708 = vand.u32 2147483647, %v1707
        %v1710 = vcvt.s32.f32 %v1703
        %v1711 = vmul.f32 %v1710, %v1708
        %v1712 = vxor.u32 %v1711, 2147483648
        %v1713 = vsel %vm1630, %v1712, %v1711
        %v1714 = vsub.s32 4, %v1690
        %v1715 = vsel %vm1630, %v1714, %v1690
        %v1716 = vsel %vm1629, %v479, %v1713
        %v1717 = vsel %vm1629, 0, %v1715
        %v1718 = vcosq.f32.pop %v1716
        %v1719 = vsinq.f32.pop %v1716
        %vm1720 = vweird.f32 %v479
        %v1721 = vadd.s32 %v1717, 3
        %v1722 = vand.u32 %v1721, 3
        %vm1723 = vcmp.lt.s32.totalorder %v1722, 2
        %vm1724 = vcmp.eq.s32.totalorder %v1722, 0
        %v1725 = vxor.u32 %v1719, 2147483648
        %v1726 = vsel %vm1724, %v1718, %v1725
        %vm1727 = vcmp.eq.s32.totalorder %v1722, 2
        %v1728 = vxor.u32 %v1718, 2147483648
        %v1729 = vsel %vm1727, %v1728, %v1719
        %v1730 = vsel %vm1723, %v1726, %v1729
        %v1731 = vsel %vm1720, nan, %v1730
        %v1732 = vand.u32 2147483647, %v480
        %vm1733 = vcmp.le.f32.partialorder %v1732, 0.7853982
        %vm1734 = vcmp.lt.s32.totalorder %v480, 0
        %v1735 = vand.u32 %v480, 2139095040
        %v1736 = vshrl.u32 %v1735, 23
        %v1737 = vsub.s32 %v1736, 127
        %v1738 = vand.u32 2147483647, %v480
        %v1739 = vand.u32 %v1738, 8388607
        %v1740 = vor.u32 %v1739, 8388608
        %v1741 = vsub.s32 0, %v1740
        %v1742 = vadd.s32 %v1737, 1
        %vm1743 = vcmp.gt.s32.totalorder %v1742, 0
        %v1744 = vsel %vm1743, %v1742, 0
        %v1745 = vshrl.u32 %v1744, 5
        %v1746 = vand.u32 %v1744, 31
        %v1747 = vsub.s32 32, %v1746
        %v1748 = vshrl.u32 683565275, %v1747
        %v1749 = vshll.u32 683565275, %v1746
        %v1750 = vshrl.u32 2475754826, %v1747
        %v1751 = vor.u32 %v1749, %v1750
        %v1752 = vshll.u32 2475754826, %v1746
        %v1753 = vshrl.u32 2131351028, %v1747
        %v1754 = vor.u32 %v1752, %v1753
        %v1755 = vshll.u32 2131351028, %v1746
        %v1756 = vshrl.u32 2102212464, %v1747
        %v1757 = vor.u32 %v1755, %v1756
        %v1758 = vshll.u32 2102212464, %v1746
        %v1759 = vshrl.u32 920167782, %v1747
        %v1760 = vor.u32 %v1758, %v1759
        %v1761 = vshll.u32 920167782, %v1746
        %v1762 = vshrl.u32 1326507024, %v1747
        %v1763 = vor.u32 %v1761, %v1762
        %vm1764 = vcmp.lt.s32.totalorder %v1745, 1
        %vm1765 = vcmp.lt.s32.totalorder %v1745, 2
        %vm1766 = vcmp.lt.s32.totalorder %v1745, 3
        %vm1767 = vcmp.lt.s32.totalorder %v1745, 4
        %v1768 = vsel %vm1764, %v1748, %v1751
        %v1769 = vsel %vm1767, %v1757, 2102212464
        %v1770 = vsel %vm1766, %v1754, %v1769
        %v1771 = vsel %vm1765, %v1768, %v1770
        %v1772 = vsel %vm1764, %v1751, %v1754
        %v1773 = vsel %vm1767, %v1760, 920167782
        %v1774 = vsel %vm1766, %v1757, %v1773
        %v1775 = vsel %vm1765, %v1772, %v1774
        %v1776 = vsel %vm1764, %v1754, %v1757
        %v1777 = vsel %vm1767, %v1763, 1326507024
        %v1778 = vsel %vm1766, %v1760, %v1777
        %v1779 = vsel %vm1765, %v1776, %v1778
        %v1780 = vshll.u32 %v1740, 8
        %v1781 = vmul.u32.u64.compose %v1780, %v1779
        %v1782 = vextract.low.u32 %v1781
        %v1783 = vextract.high.u32 %v1781
        %v1784 = vmul.u32.u64.compose %v1780, %v1775
        %v1785 = vextract.low.u32 %v1784
        %v1786 = vextract.high.u32 %v1784
        %v1787 = vmul.u32 %v1780, %v1771
        %v1788 = vadd.s32 %v1783, %v1785
        %vm1789 = vc.u32 %v1783, %v1785
        %v1790 = vadd.s32 %v1786, 1
        %v1791 = vsel %vm1789, %v1790, %v1786
        %v1792 = vadd.s32 %v1787, %v1791
        %v1793 = vadd.s32 %v1792, 536870912
        %v1794 = vshrl.u32 %v1793, 30
        %v1795 = vshll.u32 %v1794, 30
        %v1796 = vsub.s32 %v1792, %v1795
        %vm1797 = vcmp.lt.s32.totalorder %v1796, 0
        %v1798 = vsub.s32 0, %v1796
        %v1799 = vsel %vm1797, %v1798, %v1796
        %v1800 = vclz %v1799
        %v1801 = vsub.s32 %v1800, 2
        %vm1802 = vcmp.gt.s32.totalorder 0, %v1801
        %v1803 = vsel %vm1802, 0, %v1801
        %v1804 = vsub.s32 32, %v1803
        %v1805 = vshll.u32 %v1796, %v1803
        %v1806 = vshrl.u32 %v1788, %v1804
        %v1807 = vor.u32 %v1805, %v1806
        %v1808 = vsub.s32 4294967266, %v1803
        %v1809 = vadd.s32 %v1808, 127
        %v1810 = vshll.u32 %v1809, 23
        %v1811 = vor.u32 4788187, %v1810
        %v1812 = vand.u32 2147483647, %v1811
        %v1814 = vcvt.s32.f32 %v1807
        %v1815 = vmul.f32 %v1814, %v1812
        %v1816 = vxor.u32 %v1815, 2147483648
        %v1817 = vsel %vm1734, %v1816, %v1815
        %v1818 = vsub.s32 4, %v1794
        %v1819 = vsel %vm1734, %v1818, %v1794
        %v1820 = vsel %vm1733, %v480, %v1817
        %v1821 = vsel %vm1733, 0, %v1819
        %v1822 = vcosq.f32.pop %v1820
        %v1823 = vsinq.f32.pop %v1820
        %vm1824 = vweird.f32 %v480
        %v1825 = vadd.s32 %v1821, 3
        %v1826 = vand.u32 %v1825, 3
        %vm1827 = vcmp.lt.s32.totalorder %v1826, 2
        %vm1828 = vcmp.eq.s32.totalorder %v1826, 0
        %v1829 = vxor.u32 %v1823, 2147483648
        %v1830 = vsel %vm1828, %v1822, %v1829
        %vm1831 = vcmp.eq.s32.totalorder %v1826, 2
        %v1832 = vxor.u32 %v1822, 2147483648
        %v1833 = vsel %vm1831, %v1832, %v1823
        %v1834 = vsel %vm1827, %v1830, %v1833
        %v1835 = vsel %vm1824, nan, %v1834
        %v1836 = vand.u32 2147483647, %v481
        %vm1837 = vcmp.le.f32.partialorder %v1836, 0.7853982
        %vm1838 = vcmp.lt.s32.totalorder %v481, 0
        %v1839 = vand.u32 %v481, 2139095040
        %v1840 = vshrl.u32 %v1839, 23
        %v1841 = vsub.s32 %v1840, 127
        %v1842 = vand.u32 2147483647, %v481
        %v1843 = vand.u32 %v1842, 8388607
        %v1844 = vor.u32 %v1843, 8388608
        %v1845 = vsub.s32 0, %v1844
        %v1846 = vadd.s32 %v1841, 1
        %vm1847 = vcmp.gt.s32.totalorder %v1846, 0
        %v1848 = vsel %vm1847, %v1846, 0
        %v1849 = vshrl.u32 %v1848, 5
        %v1850 = vand.u32 %v1848, 31
        %v1851 = vsub.s32 32, %v1850
        %v1852 = vshrl.u32 683565275, %v1851
        %v1853 = vshll.u32 683565275, %v1850
        %v1854 = vshrl.u32 2475754826, %v1851
        %v1855 = vor.u32 %v1853, %v1854
        %v1856 = vshll.u32 2475754826, %v1850
        %v1857 = vshrl.u32 2131351028, %v1851
        %v1858 = vor.u32 %v1856, %v1857
        %v1859 = vshll.u32 2131351028, %v1850
        %v1860 = vshrl.u32 2102212464, %v1851
        %v1861 = vor.u32 %v1859, %v1860
        %v1862 = vshll.u32 2102212464, %v1850
        %v1863 = vshrl.u32 920167782, %v1851
        %v1864 = vor.u32 %v1862, %v1863
        %v1865 = vshll.u32 920167782, %v1850
        %v1866 = vshrl.u32 1326507024, %v1851
        %v1867 = vor.u32 %v1865, %v1866
        %vm1868 = vcmp.lt.s32.totalorder %v1849, 1
        %vm1869 = vcmp.lt.s32.totalorder %v1849, 2
        %vm1870 = vcmp.lt.s32.totalorder %v1849, 3
        %vm1871 = vcmp.lt.s32.totalorder %v1849, 4
        %v1872 = vsel %vm1868, %v1852, %v1855
        %v1873 = vsel %vm1871, %v1861, 2102212464
        %v1874 = vsel %vm1870, %v1858, %v1873
        %v1875 = vsel %vm1869, %v1872, %v1874
        %v1876 = vsel %vm1868, %v1855, %v1858
        %v1877 = vsel %vm1871, %v1864, 920167782
        %v1878 = vsel %vm1870, %v1861, %v1877
        %v1879 = vsel %vm1869, %v1876, %v1878
        %v1880 = vsel %vm1868, %v1858, %v1861
        %v1881 = vsel %vm1871, %v1867, 1326507024
        %v1882 = vsel %vm1870, %v1864, %v1881
        %v1883 = vsel %vm1869, %v1880, %v1882
        %v1884 = vshll.u32 %v1844, 8
        %v1885 = vmul.u32.u64.compose %v1884, %v1883
        %v1886 = vextract.low.u32 %v1885
        %v1887 = vextract.high.u32 %v1885
        %v1888 = vmul.u32.u64.compose %v1884, %v1879
        %v1889 = vextract.low.u32 %v1888
        %v1890 = vextract.high.u32 %v1888
        %v1891 = vmul.u32 %v1884, %v1875
        %v1892 = vadd.s32 %v1887, %v1889
        %vm1893 = vc.u32 %v1887, %v1889
        %v1894 = vadd.s32 %v1890, 1
        %v1895 = vsel %vm1893, %v1894, %v1890
        %v1896 = vadd.s32 %v1891, %v1895
        %v1897 = vadd.s32 %v1896, 536870912
        %v1898 = vshrl.u32 %v1897, 30
        %v1899 = vshll.u32 %v1898, 30
        %v1900 = vsub.s32 %v1896, %v1899
        %vm1901 = vcmp.lt.s32.totalorder %v1900, 0
        %v1902 = vsub.s32 0, %v1900
        %v1903 = vsel %vm1901, %v1902, %v1900
        %v1904 = vclz %v1903
        %v1905 = vsub.s32 %v1904, 2
        %vm1906 = vcmp.gt.s32.totalorder 0, %v1905
        %v1907 = vsel %vm1906, 0, %v1905
        %v1908 = vsub.s32 32, %v1907
        %v1909 = vshll.u32 %v1900, %v1907
        %v1910 = vshrl.u32 %v1892, %v1908
        %v1911 = vor.u32 %v1909, %v1910
        %v1912 = vsub.s32 4294967266, %v1907
        %v1913 = vadd.s32 %v1912, 127
        %v1914 = vshll.u32 %v1913, 23
        %v1915 = vor.u32 4788187, %v1914
        %v1916 = vand.u32 2147483647, %v1915
        %v1918 = vcvt.s32.f32 %v1911
        %v1919 = vmul.f32 %v1918, %v1916
        %v1920 = vxor.u32 %v1919, 2147483648
        %v1921 = vsel %vm1838, %v1920, %v1919
        %v1922 = vsub.s32 4, %v1898
        %v1923 = vsel %vm1838, %v1922, %v1898
        %v1924 = vsel %vm1837, %v481, %v1921
        %v1925 = vsel %vm1837, 0, %v1923
        %v1926 = vcosq.f32.pop %v1924
        %v1927 = vsinq.f32.pop %v1924
        %vm1928 = vweird.f32 %v481
        %v1929 = vadd.s32 %v1925, 3
        %v1930 = vand.u32 %v1929, 3
        %vm1931 = vcmp.lt.s32.totalorder %v1930, 2
        %vm1932 = vcmp.eq.s32.totalorder %v1930, 0
        %v1933 = vxor.u32 %v1927, 2147483648
        %v1934 = vsel %vm1932, %v1926, %v1933
        %vm1935 = vcmp.eq.s32.totalorder %v1930, 2
        %v1936 = vxor.u32 %v1926, 2147483648
        %v1937 = vsel %vm1935, %v1936, %v1927
        %v1938 = vsel %vm1931, %v1934, %v1937
        %v1939 = vsel %vm1928, nan, %v1938
        %v1940 = vand.u32 2147483647, %v482
        %vm1941 = vcmp.le.f32.partialorder %v1940, 0.7853982
        %vm1942 = vcmp.lt.s32.totalorder %v482, 0
        %v1943 = vand.u32 %v482, 2139095040
        %v1944 = vshrl.u32 %v1943, 23
        %v1945 = vsub.s32 %v1944, 127
        %v1946 = vand.u32 2147483647, %v482
        %v1947 = vand.u32 %v1946, 8388607
        %v1948 = vor.u32 %v1947, 8388608
        %v1949 = vsub.s32 0, %v1948
        %v1950 = vadd.s32 %v1945, 1
        %vm1951 = vcmp.gt.s32.totalorder %v1950, 0
        %v1952 = vsel %vm1951, %v1950, 0
        %v1953 = vshrl.u32 %v1952, 5
        %v1954 = vand.u32 %v1952, 31
        %v1955 = vsub.s32 32, %v1954
        %v1956 = vshrl.u32 683565275, %v1955
        %v1957 = vshll.u32 683565275, %v1954
        %v1958 = vshrl.u32 2475754826, %v1955
        %v1959 = vor.u32 %v1957, %v1958
        %v1960 = vshll.u32 2475754826, %v1954
        %v1961 = vshrl.u32 2131351028, %v1955
        %v1962 = vor.u32 %v1960, %v1961
        %v1963 = vshll.u32 2131351028, %v1954
        %v1964 = vshrl.u32 2102212464, %v1955
        %v1965 = vor.u32 %v1963, %v1964
        %v1966 = vshll.u32 2102212464, %v1954
        %v1967 = vshrl.u32 920167782, %v1955
        %v1968 = vor.u32 %v1966, %v1967
        %v1969 = vshll.u32 920167782, %v1954
        %v1970 = vshrl.u32 1326507024, %v1955
        %v1971 = vor.u32 %v1969, %v1970
        %vm1972 = vcmp.lt.s32.totalorder %v1953, 1
        %vm1973 = vcmp.lt.s32.totalorder %v1953, 2
        %vm1974 = vcmp.lt.s32.totalorder %v1953, 3
        %vm1975 = vcmp.lt.s32.totalorder %v1953, 4
        %v1976 = vsel %vm1972, %v1956, %v1959
        %v1977 = vsel %vm1975, %v1965, 2102212464
        %v1978 = vsel %vm1974, %v1962, %v1977
        %v1979 = vsel %vm1973, %v1976, %v1978
        %v1980 = vsel %vm1972, %v1959, %v1962
        %v1981 = vsel %vm1975, %v1968, 920167782
        %v1982 = vsel %vm1974, %v1965, %v1981
        %v1983 = vsel %vm1973, %v1980, %v1982
        %v1984 = vsel %vm1972, %v1962, %v1965
        %v1985 = vsel %vm1975, %v1971, 1326507024
        %v1986 = vsel %vm1974, %v1968, %v1985
        %v1987 = vsel %vm1973, %v1984, %v1986
        %v1988 = vshll.u32 %v1948, 8
        %v1989 = vmul.u32.u64.compose %v1988, %v1987
        %v1990 = vextract.low.u32 %v1989
        %v1991 = vextract.high.u32 %v1989
        %v1992 = vmul.u32.u64.compose %v1988, %v1983
        %v1993 = vextract.low.u32 %v1992
        %v1994 = vextract.high.u32 %v1992
        %v1995 = vmul.u32 %v1988, %v1979
        %v1996 = vadd.s32 %v1991, %v1993
        %vm1997 = vc.u32 %v1991, %v1993
        %v1998 = vadd.s32 %v1994, 1
        %v1999 = vsel %vm1997, %v1998, %v1994
        %v2000 = vadd.s32 %v1995, %v1999
        %v2001 = vadd.s32 %v2000, 536870912
        %v2002 = vshrl.u32 %v2001, 30
        %v2003 = vshll.u32 %v2002, 30
        %v2004 = vsub.s32 %v2000, %v2003
        %vm2005 = vcmp.lt.s32.totalorder %v2004, 0
        %v2006 = vsub.s32 0, %v2004
        %v2007 = vsel %vm2005, %v2006, %v2004
        %v2008 = vclz %v2007
        %v2009 = vsub.s32 %v2008, 2
        %vm2010 = vcmp.gt.s32.totalorder 0, %v2009
        %v2011 = vsel %vm2010, 0, %v2009
        %v2012 = vsub.s32 32, %v2011
        %v2013 = vshll.u32 %v2004, %v2011
        %v2014 = vshrl.u32 %v1996, %v2012
        %v2015 = vor.u32 %v2013, %v2014
        %v2016 = vsub.s32 4294967266, %v2011
        %v2017 = vadd.s32 %v2016, 127
        %v2018 = vshll.u32 %v2017, 23
        %v2019 = vor.u32 4788187, %v2018
        %v2020 = vand.u32 2147483647, %v2019
        %v2022 = vcvt.s32.f32 %v2015
        %v2023 = vmul.f32 %v2022, %v2020
        %v2024 = vxor.u32 %v2023, 2147483648
        %v2025 = vsel %vm1942, %v2024, %v2023
        %v2026 = vsub.s32 4, %v2002
        %v2027 = vsel %vm1942, %v2026, %v2002
        %v2028 = vsel %vm1941, %v482, %v2025
        %v2029 = vsel %vm1941, 0, %v2027
        %v2030 = vcosq.f32.pop %v2028
        %v2031 = vsinq.f32.pop %v2028
        %vm2032 = vweird.f32 %v482
        %v2033 = vadd.s32 %v2029, 3
        %v2034 = vand.u32 %v2033, 3
        %vm2035 = vcmp.lt.s32.totalorder %v2034, 2
        %vm2036 = vcmp.eq.s32.totalorder %v2034, 0
        %v2037 = vxor.u32 %v2031, 2147483648
        %v2038 = vsel %vm2036, %v2030, %v2037
        %vm2039 = vcmp.eq.s32.totalorder %v2034, 2
        %v2040 = vxor.u32 %v2030, 2147483648
        %v2041 = vsel %vm2039, %v2040, %v2031
        %v2042 = vsel %vm2035, %v2038, %v2041
        %v2043 = vsel %vm2032, nan, %v2042
        %v2044 = vand.u32 2147483647, %v483
        %vm2045 = vcmp.le.f32.partialorder %v2044, 0.7853982
        %vm2046 = vcmp.lt.s32.totalorder %v483, 0
        %v2047 = vand.u32 %v483, 2139095040
        %v2048 = vshrl.u32 %v2047, 23
        %v2049 = vsub.s32 %v2048, 127
        %v2050 = vand.u32 2147483647, %v483
        %v2051 = vand.u32 %v2050, 8388607
        %v2052 = vor.u32 %v2051, 8388608
        %v2053 = vsub.s32 0, %v2052
        %v2054 = vadd.s32 %v2049, 1
        %vm2055 = vcmp.gt.s32.totalorder %v2054, 0
        %v2056 = vsel %vm2055, %v2054, 0
        %v2057 = vshrl.u32 %v2056, 5
        %v2058 = vand.u32 %v2056, 31
        %v2059 = vsub.s32 32, %v2058
        %v2060 = vshrl.u32 683565275, %v2059
        %v2061 = vshll.u32 683565275, %v2058
        %v2062 = vshrl.u32 2475754826, %v2059
        %v2063 = vor.u32 %v2061, %v2062
        %v2064 = vshll.u32 2475754826, %v2058
        %v2065 = vshrl.u32 2131351028, %v2059
        %v2066 = vor.u32 %v2064, %v2065
        %v2067 = vshll.u32 2131351028, %v2058
        %v2068 = vshrl.u32 2102212464, %v2059
        %v2069 = vor.u32 %v2067, %v2068
        %v2070 = vshll.u32 2102212464, %v2058
        %v2071 = vshrl.u32 920167782, %v2059
        %v2072 = vor.u32 %v2070, %v2071
        %v2073 = vshll.u32 920167782, %v2058
        %v2074 = vshrl.u32 1326507024, %v2059
        %v2075 = vor.u32 %v2073, %v2074
        %vm2076 = vcmp.lt.s32.totalorder %v2057, 1
        %vm2077 = vcmp.lt.s32.totalorder %v2057, 2
        %vm2078 = vcmp.lt.s32.totalorder %v2057, 3
        %vm2079 = vcmp.lt.s32.totalorder %v2057, 4
        %v2080 = vsel %vm2076, %v2060, %v2063
        %v2081 = vsel %vm2079, %v2069, 2102212464
        %v2082 = vsel %vm2078, %v2066, %v2081
        %v2083 = vsel %vm2077, %v2080, %v2082
        %v2084 = vsel %vm2076, %v2063, %v2066
        %v2085 = vsel %vm2079, %v2072, 920167782
        %v2086 = vsel %vm2078, %v2069, %v2085
        %v2087 = vsel %vm2077, %v2084, %v2086
        %v2088 = vsel %vm2076, %v2066, %v2069
        %v2089 = vsel %vm2079, %v2075, 1326507024
        %v2090 = vsel %vm2078, %v2072, %v2089
        %v2091 = vsel %vm2077, %v2088, %v2090
        %v2092 = vshll.u32 %v2052, 8
        %v2093 = vmul.u32.u64.compose %v2092, %v2091
        %v2094 = vextract.low.u32 %v2093
        %v2095 = vextract.high.u32 %v2093
        %v2096 = vmul.u32.u64.compose %v2092, %v2087
        %v2097 = vextract.low.u32 %v2096
        %v2098 = vextract.high.u32 %v2096
        %v2099 = vmul.u32 %v2092, %v2083
        %v2100 = vadd.s32 %v2095, %v2097
        %vm2101 = vc.u32 %v2095, %v2097
        %v2102 = vadd.s32 %v2098, 1
        %v2103 = vsel %vm2101, %v2102, %v2098
        %v2104 = vadd.s32 %v2099, %v2103
        %v2105 = vadd.s32 %v2104, 536870912
        %v2106 = vshrl.u32 %v2105, 30
        %v2107 = vshll.u32 %v2106, 30
        %v2108 = vsub.s32 %v2104, %v2107
        %vm2109 = vcmp.lt.s32.totalorder %v2108, 0
        %v2110 = vsub.s32 0, %v2108
        %v2111 = vsel %vm2109, %v2110, %v2108
        %v2112 = vclz %v2111
        %v2113 = vsub.s32 %v2112, 2
        %vm2114 = vcmp.gt.s32.totalorder 0, %v2113
        %v2115 = vsel %vm2114, 0, %v2113
        %v2116 = vsub.s32 32, %v2115
        %v2117 = vshll.u32 %v2108, %v2115
        %v2118 = vshrl.u32 %v2100, %v2116
        %v2119 = vor.u32 %v2117, %v2118
        %v2120 = vsub.s32 4294967266, %v2115
        %v2121 = vadd.s32 %v2120, 127
        %v2122 = vshll.u32 %v2121, 23
        %v2123 = vor.u32 4788187, %v2122
        %v2124 = vand.u32 2147483647, %v2123
        %v2126 = vcvt.s32.f32 %v2119
        %v2127 = vmul.f32 %v2126, %v2124
        %v2128 = vxor.u32 %v2127, 2147483648
        %v2129 = vsel %vm2046, %v2128, %v2127
        %v2130 = vsub.s32 4, %v2106
        %v2131 = vsel %vm2046, %v2130, %v2106
        %v2132 = vsel %vm2045, %v483, %v2129
        %v2133 = vsel %vm2045, 0, %v2131
        %v2134 = vcosq.f32.pop %v2132
        %v2135 = vsinq.f32.pop %v2132
        %vm2136 = vweird.f32 %v483
        %v2137 = vadd.s32 %v2133, 3
        %v2138 = vand.u32 %v2137, 3
        %vm2139 = vcmp.lt.s32.totalorder %v2138, 2
        %vm2140 = vcmp.eq.s32.totalorder %v2138, 0
        %v2141 = vxor.u32 %v2135, 2147483648
        %v2142 = vsel %vm2140, %v2134, %v2141
        %vm2143 = vcmp.eq.s32.totalorder %v2138, 2
        %v2144 = vxor.u32 %v2134, 2147483648
        %v2145 = vsel %vm2143, %v2144, %v2135
        %v2146 = vsel %vm2139, %v2142, %v2145
        %v2147 = vsel %vm2136, nan, %v2146
        %v2148 = vld [vmem:[%s3] sm:$0xff]
        %v2149 = vld [vmem:[%s3 + $0x8] sm:$0xff]
        %v2150 = vld [vmem:[%s3 + $0x10] sm:$0xff]
        %v2151 = vld [vmem:[%s3 + $0x18] sm:$0xff]
        %v2152 = vld [vmem:[%s4] sm:$0xff]
        %v2153 = vld [vmem:[%s4 + $0x8] sm:$0xff]
        %v2154 = vld [vmem:[%s4 + $0x10] sm:$0xff]
        %v2155 = vld [vmem:[%s4 + $0x18] sm:$0xff]
        %2157 = vset.pattern.permute.xlu0 0
        %2158 = vperm.xlu0 %2157, %v2152
        %v2159 = vpop.permute.xlu0 %2158
        %2162 = vset.pattern.permute.xlu0 0
        %2163 = vperm.xlu0 %2162, %v2153
        %v2164 = vpop.permute.xlu0 %2163
        %2167 = vset.pattern.permute.xlu0 0
        %2168 = vperm.xlu0 %2167, %v2154
        %v2169 = vpop.permute.xlu0 %2168
        %2172 = vset.pattern.permute.xlu0 0
        %2173 = vperm.xlu0 %2172, %v2155
        %v2174 = vpop.permute.xlu0 %2173
        %vm2176 = vcmask 261120
        %v2178 = vsel %vm2176, %v2148, 0
        %v2181 = vsel %vm2176, %v2149, 0
        %v2184 = vsel %vm2176, %v2150, 0
        %v2187 = vsel %vm2176, %v2151, 0
        %2189 = vmatprep.subr.mxu0 %v691
        %2190 = vmatpush1.msra.mxu0 %v587
        %2191 = vmatprep.subr.mxu0 %v1107
        %2192 = vmatpush1.msra.mxu0 %v1003
        %2193 = vmatprep.subr.mxu0 %v1523
        %2194 = vmatpush1.msra.mxu0 %v1419
        %2195 = vmatprep.subr.mxu0 %v1939
        %2196 = vmatpush1.msra.mxu0 %v1835
        %2197 = vmatprep.subr.mxu0 0.0
        %2198 = vmatpush1.msra.mxu0 0.0
        %2199 = vmatprep.subr.mxu0 0.0
        %2200 = vmatpush1.msra.mxu0 0.0
        %2201 = vmatprep.subr.mxu0 0.0
        %2202 = vmatpush1.msra.mxu0 0.0
        %2203 = vmatprep.subr.mxu0 0.0
        %2204 = vmatpush1.msra.mxu0 0.0
        %2205 = vmatprep.subr.mxu0 0.0
        %2206 = vmatpush1.msra.mxu0 0.0
        %2207 = vmatprep.subr.mxu0 0.0
        %2208 = vmatpush1.msra.mxu0 0.0
        %2209 = vmatprep.subr.mxu0 0.0
        %2210 = vmatpush1.msra.mxu0 0.0
        %2211 = vmatprep.subr.mxu0 0.0
        %2212 = vmatpush1.msra.mxu0 0.0
        %2213 = vmatprep.subr.mxu0 0.0
        %2214 = vmatpush1.msra.mxu0 0.0
        %2215 = vmatprep.subr.mxu0 0.0
        %2216 = vmatpush1.msra.mxu0 0.0
        %2217 = vmatprep.subr.mxu0 0.0
        %2218 = vmatpush1.msra.mxu0 0.0
        %2219 = vmatprep.subr.mxu0 0.0
        %2220 = vmatpush1.msra.mxu0 0.0
        %2221 = vmatprep.subr.mxu0 0.0
        %2222 = vmatpush1.msra.mxu0 0.0
        %2223 = vmatprep.subr.mxu0 0.0
        %2224 = vmatpush1.msra.mxu0 0.0
        %2225 = vmatprep.subr.mxu0 0.0
        %2226 = vmatpush1.msra.mxu0 0.0
        %2227 = vmatprep.subr.mxu0 0.0
        %2228 = vmatpush1.msra.mxu0 0.0
        %2229 = vmatprep.subr.mxu0 0.0
        %2230 = vmatpush1.msra.mxu0 0.0
        %2231 = vmatprep.subr.mxu0 0.0
        %2232 = vmatpush1.msra.mxu0 0.0
        %2233 = vmatprep.subr.mxu0 0.0
        %2234 = vmatpush1.msra.mxu0 0.0
        %2235 = vmatprep.subr.mxu0 0.0
        %2236 = vmatpush1.msra.mxu0 0.0
        %2237 = vmatprep.subr.mxu0 0.0
        %2238 = vmatpush1.msra.mxu0 0.0
        %2239 = vmatprep.subr.mxu0 0.0
        %2240 = vmatpush1.msra.mxu0 0.0
        %2241 = vmatprep.subr.mxu0 0.0
        %2242 = vmatpush1.msra.mxu0 0.0
        %2243 = vmatprep.subr.mxu0 0.0
        %2244 = vmatpush1.msra.mxu0 0.0
        %2245 = vmatprep.subr.mxu0 0.0
        %2246 = vmatpush1.msra.mxu0 0.0
        %2247 = vmatprep.subr.mxu0 0.0
        %2248 = vmatpush1.msra.mxu0 0.0
        %2249 = vmatprep.subr.mxu0 0.0
        %2250 = vmatpush1.msra.mxu0 0.0
        %2251 = vmatprep.subr.mxu0 0.0
        %2252 = vmatpush1.msra.mxu0 0.0
        %2253 = vmatprep.mubr.f32.mxu0 0.0
        %2254 = vmatmul.mubr.f32.gmra.mrb[0].mxu0 %v2178
        %v2255 = vpop.f32.mrb[0].mxu0
        %v2256 = vadd.f32 %v2159, %v2255
        %v2257 = vpop.f32.mrb[0].mxu0
        %v2258 = vadd.f32 %v2159, %v2257
        %2259 = vmatprep.mubr.f32.mxu0 0.0
        %2260 = vmatmul.mubr.f32.gmra.mrb[0].mxu0 %v2181
        %v2261 = vpop.f32.mrb[0].mxu0
        %v2262 = vadd.f32 %v2164, %v2261
        %v2263 = vpop.f32.mrb[0].mxu0
        %v2264 = vadd.f32 %v2164, %v2263
        %2265 = vmatprep.mubr.f32.mxu0 0.0
        %2266 = vmatmul.mubr.f32.gmra.mrb[0].mxu0 %v2184
        %v2267 = vpop.f32.mrb[0].mxu0
        %v2268 = vadd.f32 %v2169, %v2267
        %v2269 = vpop.f32.mrb[0].mxu0
        %v2270 = vadd.f32 %v2169, %v2269
        %2271 = vmatprep.mubr.f32.mxu0 0.0
        %2272 = vmatmul.mubr.f32.gmra.mrb[0].mxu0 %v2187
        %v2273 = vpop.f32.mrb[0].mxu0
        %v2274 = vadd.f32 %v2174, %v2273
        %v2275 = vpop.f32.mrb[0].mxu0
        %v2276 = vadd.f32 %v2174, %v2275
        %2277 = vdwg.mxu0
        %2278 = vmatprep.subr.mxu0 %v899
        %2279 = vmatpush1.msra.mxu0 %v795
        %2280 = vmatprep.subr.mxu0 %v1315
        %2281 = vmatpush1.msra.mxu0 %v1211
        %2282 = vmatprep.subr.mxu0 %v1731
        %2283 = vmatpush1.msra.mxu0 %v1627
        %2284 = vmatprep.subr.mxu0 %v2147
        %2285 = vmatpush1.msra.mxu0 %v2043
        %2286 = vmatprep.subr.mxu0 0.0
        %2287 = vmatpush1.msra.mxu0 0.0
        %2288 = vmatprep.subr.mxu0 0.0
        %2289 = vmatpush1.msra.mxu0 0.0
        %2290 = vmatprep.subr.mxu0 0.0
        %2291 = vmatpush1.msra.mxu0 0.0
        %2292 = vmatprep.subr.mxu0 0.0
        %2293 = vmatpush1.msra.mxu0 0.0
        %2294 = vmatprep.subr.mxu0 0.0
        %2295 = vmatpush1.msra.mxu0 0.0
        %2296 = vmatprep.subr.mxu0 0.0
        %2297 = vmatpush1.msra.mxu0 0.0
        %2298 = vmatprep.subr.mxu0 0.0
        %2299 = vmatpush1.msra.mxu0 0.0
        %2300 = vmatprep.subr.mxu0 0.0
        %2301 = vmatpush1.msra.mxu0 0.0
        %2302 = vmatprep.subr.mxu0 0.0
        %2303 = vmatpush1.msra.mxu0 0.0
        %2304 = vmatprep.subr.mxu0 0.0
        %2305 = vmatpush1.msra.mxu0 0.0
        %2306 = vmatprep.subr.mxu0 0.0
        %2307 = vmatpush1.msra.mxu0 0.0
        %2308 = vmatprep.subr.mxu0 0.0
        %2309 = vmatpush1.msra.mxu0 0.0
        %2310 = vmatprep.subr.mxu0 0.0
        %2311 = vmatpush1.msra.mxu0 0.0
        %2312 = vmatprep.subr.mxu0 0.0
        %2313 = vmatpush1.msra.mxu0 0.0
        %2314 = vmatprep.subr.mxu0 0.0
        %2315 = vmatpush1.msra.mxu0 0.0
        %2316 = vmatprep.subr.mxu0 0.0
        %2317 = vmatpush1.msra.mxu0 0.0
        %2318 = vmatprep.subr.mxu0 0.0
        %2319 = vmatpush1.msra.mxu0 0.0
        %2320 = vmatprep.subr.mxu0 0.0
        %2321 = vmatpush1.msra.mxu0 0.0
        %2322 = vmatprep.subr.mxu0 0.0
        %2323 = vmatpush1.msra.mxu0 0.0
        %2324 = vmatprep.subr.mxu0 0.0
        %2325 = vmatpush1.msra.mxu0 0.0
        %2326 = vmatprep.subr.mxu0 0.0
        %2327 = vmatpush1.msra.mxu0 0.0
        %2328 = vmatprep.subr.mxu0 0.0
        %2329 = vmatpush1.msra.mxu0 0.0
        %2330 = vmatprep.subr.mxu0 0.0
        %2331 = vmatpush1.msra.mxu0 0.0
        %2332 = vmatprep.subr.mxu0 0.0
        %2333 = vmatpush1.msra.mxu0 0.0
        %2334 = vmatprep.subr.mxu0 0.0
        %2335 = vmatpush1.msra.mxu0 0.0
        %2336 = vmatprep.subr.mxu0 0.0
        %2337 = vmatpush1.msra.mxu0 0.0
        %2338 = vmatprep.subr.mxu0 0.0
        %2339 = vmatpush1.msra.mxu0 0.0
        %2340 = vmatprep.subr.mxu0 0.0
        %2341 = vmatpush1.msra.mxu0 0.0
        %2342 = vmatprep.mubr.f32.mxu0 0.0
        %2343 = vmatmul.mubr.f32.gmra.mrb[0].mxu0 %v2178
        %v2344 = vpop.f32.mrb[0].mxu0
        %v2345 = vadd.f32 %v2159, %v2344
        %v2346 = vpop.f32.mrb[0].mxu0
        %v2347 = vadd.f32 %v2159, %v2346
        %2348 = vmatprep.mubr.f32.mxu0 0.0
        %2349 = vmatmul.mubr.f32.gmra.mrb[0].mxu0 %v2181
        %v2350 = vpop.f32.mrb[0].mxu0
        %v2351 = vadd.f32 %v2164, %v2350
        %v2352 = vpop.f32.mrb[0].mxu0
        %v2353 = vadd.f32 %v2164, %v2352
        %2354 = vmatprep.mubr.f32.mxu0 0.0
        %2355 = vmatmul.mubr.f32.gmra.mrb[0].mxu0 %v2184
        %v2356 = vpop.f32.mrb[0].mxu0
        %v2357 = vadd.f32 %v2169, %v2356
        %v2358 = vpop.f32.mrb[0].mxu0
        %v2359 = vadd.f32 %v2169, %v2358
        %2360 = vmatprep.mubr.f32.mxu0 0.0
        %2361 = vmatmul.mubr.f32.gmra.mrb[0].mxu0 %v2187
        %v2362 = vpop.f32.mrb[0].mxu0
        %v2363 = vadd.f32 %v2174, %v2362
        %v2364 = vpop.f32.mrb[0].mxu0
        %v2365 = vadd.f32 %v2174, %v2364
        %2366 = vdwg.mxu0
        %v2367 = vand.u32 2147483647, %v2256
        %vm2368 = vcmp.le.f32.partialorder %v2367, 0.7853982
        %vm2369 = vcmp.lt.s32.totalorder %v2256, 0
        %v2370 = vand.u32 %v2256, 2139095040
        %v2371 = vshrl.u32 %v2370, 23
        %v2372 = vsub.s32 %v2371, 127
        %v2373 = vand.u32 2147483647, %v2256
        %v2374 = vand.u32 %v2373, 8388607
        %v2375 = vor.u32 %v2374, 8388608
        %v2376 = vsub.s32 0, %v2375
        %v2377 = vadd.s32 %v2372, 1
        %vm2378 = vcmp.gt.s32.totalorder %v2377, 0
        %v2379 = vsel %vm2378, %v2377, 0
        %v2380 = vshrl.u32 %v2379, 5
        %v2381 = vand.u32 %v2379, 31
        %v2382 = vsub.s32 32, %v2381
        %v2383 = vshrl.u32 683565275, %v2382
        %v2384 = vshll.u32 683565275, %v2381
        %v2385 = vshrl.u32 2475754826, %v2382
        %v2386 = vor.u32 %v2384, %v2385
        %v2387 = vshll.u32 2475754826, %v2381
        %v2388 = vshrl.u32 2131351028, %v2382
        %v2389 = vor.u32 %v2387, %v2388
        %v2390 = vshll.u32 2131351028, %v2381
        %v2391 = vshrl.u32 2102212464, %v2382
        %v2392 = vor.u32 %v2390, %v2391
        %v2393 = vshll.u32 2102212464, %v2381
        %v2394 = vshrl.u32 920167782, %v2382
        %v2395 = vor.u32 %v2393, %v2394
        %v2396 = vshll.u32 920167782, %v2381
        %v2397 = vshrl.u32 1326507024, %v2382
        %v2398 = vor.u32 %v2396, %v2397
        %vm2399 = vcmp.lt.s32.totalorder %v2380, 1
        %vm2400 = vcmp.lt.s32.totalorder %v2380, 2
        %vm2401 = vcmp.lt.s32.totalorder %v2380, 3
        %vm2402 = vcmp.lt.s32.totalorder %v2380, 4
        %v2403 = vsel %vm2399, %v2383, %v2386
        %v2404 = vsel %vm2402, %v2392, 2102212464
        %v2405 = vsel %vm2401, %v2389, %v2404
        %v2406 = vsel %vm2400, %v2403, %v2405
        %v2407 = vsel %vm2399, %v2386, %v2389
        %v2408 = vsel %vm2402, %v2395, 920167782
        %v2409 = vsel %vm2401, %v2392, %v2408
        %v2410 = vsel %vm2400, %v2407, %v2409
        %v2411 = vsel %vm2399, %v2389, %v2392
        %v2412 = vsel %vm2402, %v2398, 1326507024
        %v2413 = vsel %vm2401, %v2395, %v2412
        %v2414 = vsel %vm2400, %v2411, %v2413
        %v2415 = vshll.u32 %v2375, 8
        %v2416 = vmul.u32.u64.compose %v2415, %v2414
        %v2417 = vextract.low.u32 %v2416
        %v2418 = vextract.high.u32 %v2416
        %v2419 = vmul.u32.u64.compose %v2415, %v2410
        %v2420 = vextract.low.u32 %v2419
        %v2421 = vextract.high.u32 %v2419
        %v2422 = vmul.u32 %v2415, %v2406
        %v2423 = vadd.s32 %v2418, %v2420
        %vm2424 = vc.u32 %v2418, %v2420
        %v2425 = vadd.s32 %v2421, 1
        %v2426 = vsel %vm2424, %v2425, %v2421
        %v2427 = vadd.s32 %v2422, %v2426
        %v2428 = vadd.s32 %v2427, 536870912
        %v2429 = vshrl.u32 %v2428, 30
        %v2430 = vshll.u32 %v2429, 30
        %v2431 = vsub.s32 %v2427, %v2430
        %vm2432 = vcmp.lt.s32.totalorder %v2431, 0
        %v2433 = vsub.s32 0, %v2431
        %v2434 = vsel %vm2432, %v2433, %v2431
        %v2435 = vclz %v2434
        %v2436 = vsub.s32 %v2435, 2
        %vm2437 = vcmp.gt.s32.totalorder 0, %v2436
        %v2438 = vsel %vm2437, 0, %v2436
        %v2439 = vsub.s32 32, %v2438
        %v2440 = vshll.u32 %v2431, %v2438
        %v2441 = vshrl.u32 %v2423, %v2439
        %v2442 = vor.u32 %v2440, %v2441
        %v2443 = vsub.s32 4294967266, %v2438
        %v2444 = vadd.s32 %v2443, 127
        %v2445 = vshll.u32 %v2444, 23
        %v2446 = vor.u32 4788187, %v2445
        %v2447 = vand.u32 2147483647, %v2446
        %v2449 = vcvt.s32.f32 %v2442
        %v2450 = vmul.f32 %v2449, %v2447
        %v2451 = vxor.u32 %v2450, 2147483648
        %v2452 = vsel %vm2369, %v2451, %v2450
        %v2453 = vsub.s32 4, %v2429
        %v2454 = vsel %vm2369, %v2453, %v2429
        %v2455 = vsel %vm2368, %v2256, %v2452
        %v2456 = vsel %vm2368, 0, %v2454
        %v2457 = vcosq.f32.pop %v2455
        %v2458 = vsinq.f32.pop %v2455
        %vm2459 = vweird.f32 %v2256
        %v2460 = vadd.s32 %v2456, 3
        %v2461 = vand.u32 %v2460, 3
        %vm2462 = vcmp.lt.s32.totalorder %v2461, 2
        %vm2463 = vcmp.eq.s32.totalorder %v2461, 0
        %v2464 = vxor.u32 %v2458, 2147483648
        %v2465 = vsel %vm2463, %v2457, %v2464
        %vm2466 = vcmp.eq.s32.totalorder %v2461, 2
        %v2467 = vxor.u32 %v2457, 2147483648
        %v2468 = vsel %vm2466, %v2467, %v2458
        %v2469 = vsel %vm2462, %v2465, %v2468
        %v2470 = vsel %vm2459, nan, %v2469
        %v2471 = vand.u32 2147483647, %v2258
        %vm2472 = vcmp.le.f32.partialorder %v2471, 0.7853982
        %vm2473 = vcmp.lt.s32.totalorder %v2258, 0
        %v2474 = vand.u32 %v2258, 2139095040
        %v2475 = vshrl.u32 %v2474, 23
        %v2476 = vsub.s32 %v2475, 127
        %v2477 = vand.u32 2147483647, %v2258
        %v2478 = vand.u32 %v2477, 8388607
        %v2479 = vor.u32 %v2478, 8388608
        %v2480 = vsub.s32 0, %v2479
        %v2481 = vadd.s32 %v2476, 1
        %vm2482 = vcmp.gt.s32.totalorder %v2481, 0
        %v2483 = vsel %vm2482, %v2481, 0
        %v2484 = vshrl.u32 %v2483, 5
        %v2485 = vand.u32 %v2483, 31
        %v2486 = vsub.s32 32, %v2485
        %v2487 = vshrl.u32 683565275, %v2486
        %v2488 = vshll.u32 683565275, %v2485
        %v2489 = vshrl.u32 2475754826, %v2486
        %v2490 = vor.u32 %v2488, %v2489
        %v2491 = vshll.u32 2475754826, %v2485
        %v2492 = vshrl.u32 2131351028, %v2486
        %v2493 = vor.u32 %v2491, %v2492
        %v2494 = vshll.u32 2131351028, %v2485
        %v2495 = vshrl.u32 2102212464, %v2486
        %v2496 = vor.u32 %v2494, %v2495
        %v2497 = vshll.u32 2102212464, %v2485
        %v2498 = vshrl.u32 920167782, %v2486
        %v2499 = vor.u32 %v2497, %v2498
        %v2500 = vshll.u32 920167782, %v2485
        %v2501 = vshrl.u32 1326507024, %v2486
        %v2502 = vor.u32 %v2500, %v2501
        %vm2503 = vcmp.lt.s32.totalorder %v2484, 1
        %vm2504 = vcmp.lt.s32.totalorder %v2484, 2
        %vm2505 = vcmp.lt.s32.totalorder %v2484, 3
        %vm2506 = vcmp.lt.s32.totalorder %v2484, 4
        %v2507 = vsel %vm2503, %v2487, %v2490
        %v2508 = vsel %vm2506, %v2496, 2102212464
        %v2509 = vsel %vm2505, %v2493, %v2508
        %v2510 = vsel %vm2504, %v2507, %v2509
        %v2511 = vsel %vm2503, %v2490, %v2493
        %v2512 = vsel %vm2506, %v2499, 920167782
        %v2513 = vsel %vm2505, %v2496, %v2512
        %v2514 = vsel %vm2504, %v2511, %v2513
        %v2515 = vsel %vm2503, %v2493, %v2496
        %v2516 = vsel %vm2506, %v2502, 1326507024
        %v2517 = vsel %vm2505, %v2499, %v2516
        %v2518 = vsel %vm2504, %v2515, %v2517
        %v2519 = vshll.u32 %v2479, 8
        %v2520 = vmul.u32.u64.compose %v2519, %v2518
        %v2521 = vextract.low.u32 %v2520
        %v2522 = vextract.high.u32 %v2520
        %v2523 = vmul.u32.u64.compose %v2519, %v2514
        %v2524 = vextract.low.u32 %v2523
        %v2525 = vextract.high.u32 %v2523
        %v2526 = vmul.u32 %v2519, %v2510
        %v2527 = vadd.s32 %v2522, %v2524
        %vm2528 = vc.u32 %v2522, %v2524
        %v2529 = vadd.s32 %v2525, 1
        %v2530 = vsel %vm2528, %v2529, %v2525
        %v2531 = vadd.s32 %v2526, %v2530
        %v2532 = vadd.s32 %v2531, 536870912
        %v2533 = vshrl.u32 %v2532, 30
        %v2534 = vshll.u32 %v2533, 30
        %v2535 = vsub.s32 %v2531, %v2534
        %vm2536 = vcmp.lt.s32.totalorder %v2535, 0
        %v2537 = vsub.s32 0, %v2535
        %v2538 = vsel %vm2536, %v2537, %v2535
        %v2539 = vclz %v2538
        %v2540 = vsub.s32 %v2539, 2
        %vm2541 = vcmp.gt.s32.totalorder 0, %v2540
        %v2542 = vsel %vm2541, 0, %v2540
        %v2543 = vsub.s32 32, %v2542
        %v2544 = vshll.u32 %v2535, %v2542
        %v2545 = vshrl.u32 %v2527, %v2543
        %v2546 = vor.u32 %v2544, %v2545
        %v2547 = vsub.s32 4294967266, %v2542
        %v2548 = vadd.s32 %v2547, 127
        %v2549 = vshll.u32 %v2548, 23
        %v2550 = vor.u32 4788187, %v2549
        %v2551 = vand.u32 2147483647, %v2550
        %v2553 = vcvt.s32.f32 %v2546
        %v2554 = vmul.f32 %v2553, %v2551
        %v2555 = vxor.u32 %v2554, 2147483648
        %v2556 = vsel %vm2473, %v2555, %v2554
        %v2557 = vsub.s32 4, %v2533
        %v2558 = vsel %vm2473, %v2557, %v2533
        %v2559 = vsel %vm2472, %v2258, %v2556
        %v2560 = vsel %vm2472, 0, %v2558
        %v2561 = vcosq.f32.pop %v2559
        %v2562 = vsinq.f32.pop %v2559
        %vm2563 = vweird.f32 %v2258
        %v2564 = vadd.s32 %v2560, 3
        %v2565 = vand.u32 %v2564, 3
        %vm2566 = vcmp.lt.s32.totalorder %v2565, 2
        %vm2567 = vcmp.eq.s32.totalorder %v2565, 0
        %v2568 = vxor.u32 %v2562, 2147483648
        %v2569 = vsel %vm2567, %v2561, %v2568
        %vm2570 = vcmp.eq.s32.totalorder %v2565, 2
        %v2571 = vxor.u32 %v2561, 2147483648
        %v2572 = vsel %vm2570, %v2571, %v2562
        %v2573 = vsel %vm2566, %v2569, %v2572
        %v2574 = vsel %vm2563, nan, %v2573
        %v2575 = vand.u32 2147483647, %v2345
        %vm2576 = vcmp.le.f32.partialorder %v2575, 0.7853982
        %vm2577 = vcmp.lt.s32.totalorder %v2345, 0
        %v2578 = vand.u32 %v2345, 2139095040
        %v2579 = vshrl.u32 %v2578, 23
        %v2580 = vsub.s32 %v2579, 127
        %v2581 = vand.u32 2147483647, %v2345
        %v2582 = vand.u32 %v2581, 8388607
        %v2583 = vor.u32 %v2582, 8388608
        %v2584 = vsub.s32 0, %v2583
        %v2585 = vadd.s32 %v2580, 1
        %vm2586 = vcmp.gt.s32.totalorder %v2585, 0
        %v2587 = vsel %vm2586, %v2585, 0
        %v2588 = vshrl.u32 %v2587, 5
        %v2589 = vand.u32 %v2587, 31
        %v2590 = vsub.s32 32, %v2589
        %v2591 = vshrl.u32 683565275, %v2590
        %v2592 = vshll.u32 683565275, %v2589
        %v2593 = vshrl.u32 2475754826, %v2590
        %v2594 = vor.u32 %v2592, %v2593
        %v2595 = vshll.u32 2475754826, %v2589
        %v2596 = vshrl.u32 2131351028, %v2590
        %v2597 = vor.u32 %v2595, %v2596
        %v2598 = vshll.u32 2131351028, %v2589
        %v2599 = vshrl.u32 2102212464, %v2590
        %v2600 = vor.u32 %v2598, %v2599
        %v2601 = vshll.u32 2102212464, %v2589
        %v2602 = vshrl.u32 920167782, %v2590
        %v2603 = vor.u32 %v2601, %v2602
        %v2604 = vshll.u32 920167782, %v2589
        %v2605 = vshrl.u32 1326507024, %v2590
        %v2606 = vor.u32 %v2604, %v2605
        %vm2607 = vcmp.lt.s32.totalorder %v2588, 1
        %vm2608 = vcmp.lt.s32.totalorder %v2588, 2
        %vm2609 = vcmp.lt.s32.totalorder %v2588, 3
        %vm2610 = vcmp.lt.s32.totalorder %v2588, 4
        %v2611 = vsel %vm2607, %v2591, %v2594
        %v2612 = vsel %vm2610, %v2600, 2102212464
        %v2613 = vsel %vm2609, %v2597, %v2612
        %v2614 = vsel %vm2608, %v2611, %v2613
        %v2615 = vsel %vm2607, %v2594, %v2597
        %v2616 = vsel %vm2610, %v2603, 920167782
        %v2617 = vsel %vm2609, %v2600, %v2616
        %v2618 = vsel %vm2608, %v2615, %v2617
        %v2619 = vsel %vm2607, %v2597, %v2600
        %v2620 = vsel %vm2610, %v2606, 1326507024
        %v2621 = vsel %vm2609, %v2603, %v2620
        %v2622 = vsel %vm2608, %v2619, %v2621
        %v2623 = vshll.u32 %v2583, 8
        %v2624 = vmul.u32.u64.compose %v2623, %v2622
        %v2625 = vextract.low.u32 %v2624
        %v2626 = vextract.high.u32 %v2624
        %v2627 = vmul.u32.u64.compose %v2623, %v2618
        %v2628 = vextract.low.u32 %v2627
        %v2629 = vextract.high.u32 %v2627
        %v2630 = vmul.u32 %v2623, %v2614
        %v2631 = vadd.s32 %v2626, %v2628
        %vm2632 = vc.u32 %v2626, %v2628
        %v2633 = vadd.s32 %v2629, 1
        %v2634 = vsel %vm2632, %v2633, %v2629
        %v2635 = vadd.s32 %v2630, %v2634
        %v2636 = vadd.s32 %v2635, 536870912
        %v2637 = vshrl.u32 %v2636, 30
        %v2638 = vshll.u32 %v2637, 30
        %v2639 = vsub.s32 %v2635, %v2638
        %vm2640 = vcmp.lt.s32.totalorder %v2639, 0
        %v2641 = vsub.s32 0, %v2639
        %v2642 = vsel %vm2640, %v2641, %v2639
        %v2643 = vclz %v2642
        %v2644 = vsub.s32 %v2643, 2
        %vm2645 = vcmp.gt.s32.totalorder 0, %v2644
        %v2646 = vsel %vm2645, 0, %v2644
        %v2647 = vsub.s32 32, %v2646
        %v2648 = vshll.u32 %v2639, %v2646
        %v2649 = vshrl.u32 %v2631, %v2647
        %v2650 = vor.u32 %v2648, %v2649
        %v2651 = vsub.s32 4294967266, %v2646
        %v2652 = vadd.s32 %v2651, 127
        %v2653 = vshll.u32 %v2652, 23
        %v2654 = vor.u32 4788187, %v2653
        %v2655 = vand.u32 2147483647, %v2654
        %v2657 = vcvt.s32.f32 %v2650
        %v2658 = vmul.f32 %v2657, %v2655
        %v2659 = vxor.u32 %v2658, 2147483648
        %v2660 = vsel %vm2577, %v2659, %v2658
        %v2661 = vsub.s32 4, %v2637
        %v2662 = vsel %vm2577, %v2661, %v2637
        %v2663 = vsel %vm2576, %v2345, %v2660
        %v2664 = vsel %vm2576, 0, %v2662
        %v2665 = vcosq.f32.pop %v2663
        %v2666 = vsinq.f32.pop %v2663
        %vm2667 = vweird.f32 %v2345
        %v2668 = vadd.s32 %v2664, 3
        %v2669 = vand.u32 %v2668, 3
        %vm2670 = vcmp.lt.s32.totalorder %v2669, 2
        %vm2671 = vcmp.eq.s32.totalorder %v2669, 0
        %v2672 = vxor.u32 %v2666, 2147483648
        %v2673 = vsel %vm2671, %v2665, %v2672
        %vm2674 = vcmp.eq.s32.totalorder %v2669, 2
        %v2675 = vxor.u32 %v2665, 2147483648
        %v2676 = vsel %vm2674, %v2675, %v2666
        %v2677 = vsel %vm2670, %v2673, %v2676
        %v2678 = vsel %vm2667, nan, %v2677
        %v2679 = vand.u32 2147483647, %v2347
        %vm2680 = vcmp.le.f32.partialorder %v2679, 0.7853982
        %vm2681 = vcmp.lt.s32.totalorder %v2347, 0
        %v2682 = vand.u32 %v2347, 2139095040
        %v2683 = vshrl.u32 %v2682, 23
        %v2684 = vsub.s32 %v2683, 127
        %v2685 = vand.u32 2147483647, %v2347
        %v2686 = vand.u32 %v2685, 8388607
        %v2687 = vor.u32 %v2686, 8388608
        %v2688 = vsub.s32 0, %v2687
        %v2689 = vadd.s32 %v2684, 1
        %vm2690 = vcmp.gt.s32.totalorder %v2689, 0
        %v2691 = vsel %vm2690, %v2689, 0
        %v2692 = vshrl.u32 %v2691, 5
        %v2693 = vand.u32 %v2691, 31
        %v2694 = vsub.s32 32, %v2693
        %v2695 = vshrl.u32 683565275, %v2694
        %v2696 = vshll.u32 683565275, %v2693
        %v2697 = vshrl.u32 2475754826, %v2694
        %v2698 = vor.u32 %v2696, %v2697
        %v2699 = vshll.u32 2475754826, %v2693
        %v2700 = vshrl.u32 2131351028, %v2694
        %v2701 = vor.u32 %v2699, %v2700
        %v2702 = vshll.u32 2131351028, %v2693
        %v2703 = vshrl.u32 2102212464, %v2694
        %v2704 = vor.u32 %v2702, %v2703
        %v2705 = vshll.u32 2102212464, %v2693
        %v2706 = vshrl.u32 920167782, %v2694
        %v2707 = vor.u32 %v2705, %v2706
        %v2708 = vshll.u32 920167782, %v2693
        %v2709 = vshrl.u32 1326507024, %v2694
        %v2710 = vor.u32 %v2708, %v2709
        %vm2711 = vcmp.lt.s32.totalorder %v2692, 1
        %vm2712 = vcmp.lt.s32.totalorder %v2692, 2
        %vm2713 = vcmp.lt.s32.totalorder %v2692, 3
        %vm2714 = vcmp.lt.s32.totalorder %v2692, 4
        %v2715 = vsel %vm2711, %v2695, %v2698
        %v2716 = vsel %vm2714, %v2704, 2102212464
        %v2717 = vsel %vm2713, %v2701, %v2716
        %v2718 = vsel %vm2712, %v2715, %v2717
        %v2719 = vsel %vm2711, %v2698, %v2701
        %v2720 = vsel %vm2714, %v2707, 920167782
        %v2721 = vsel %vm2713, %v2704, %v2720
        %v2722 = vsel %vm2712, %v2719, %v2721
        %v2723 = vsel %vm2711, %v2701, %v2704
        %v2724 = vsel %vm2714, %v2710, 1326507024
        %v2725 = vsel %vm2713, %v2707, %v2724
        %v2726 = vsel %vm2712, %v2723, %v2725
        %v2727 = vshll.u32 %v2687, 8
        %v2728 = vmul.u32.u64.compose %v2727, %v2726
        %v2729 = vextract.low.u32 %v2728
        %v2730 = vextract.high.u32 %v2728
        %v2731 = vmul.u32.u64.compose %v2727, %v2722
        %v2732 = vextract.low.u32 %v2731
        %v2733 = vextract.high.u32 %v2731
        %v2734 = vmul.u32 %v2727, %v2718
        %v2735 = vadd.s32 %v2730, %v2732
        %vm2736 = vc.u32 %v2730, %v2732
        %v2737 = vadd.s32 %v2733, 1
        %v2738 = vsel %vm2736, %v2737, %v2733
        %v2739 = vadd.s32 %v2734, %v2738
        %v2740 = vadd.s32 %v2739, 536870912
        %v2741 = vshrl.u32 %v2740, 30
        %v2742 = vshll.u32 %v2741, 30
        %v2743 = vsub.s32 %v2739, %v2742
        %vm2744 = vcmp.lt.s32.totalorder %v2743, 0
        %v2745 = vsub.s32 0, %v2743
        %v2746 = vsel %vm2744, %v2745, %v2743
        %v2747 = vclz %v2746
        %v2748 = vsub.s32 %v2747, 2
        %vm2749 = vcmp.gt.s32.totalorder 0, %v2748
        %v2750 = vsel %vm2749, 0, %v2748
        %v2751 = vsub.s32 32, %v2750
        %v2752 = vshll.u32 %v2743, %v2750
        %v2753 = vshrl.u32 %v2735, %v2751
        %v2754 = vor.u32 %v2752, %v2753
        %v2755 = vsub.s32 4294967266, %v2750
        %v2756 = vadd.s32 %v2755, 127
        %v2757 = vshll.u32 %v2756, 23
        %v2758 = vor.u32 4788187, %v2757
        %v2759 = vand.u32 2147483647, %v2758
        %v2761 = vcvt.s32.f32 %v2754
        %v2762 = vmul.f32 %v2761, %v2759
        %v2763 = vxor.u32 %v2762, 2147483648
        %v2764 = vsel %vm2681, %v2763, %v2762
        %v2765 = vsub.s32 4, %v2741
        %v2766 = vsel %vm2681, %v2765, %v2741
        %v2767 = vsel %vm2680, %v2347, %v2764
        %v2768 = vsel %vm2680, 0, %v2766
        %v2769 = vcosq.f32.pop %v2767
        %v2770 = vsinq.f32.pop %v2767
        %vm2771 = vweird.f32 %v2347
        %v2772 = vadd.s32 %v2768, 3
        %v2773 = vand.u32 %v2772, 3
        %vm2774 = vcmp.lt.s32.totalorder %v2773, 2
        %vm2775 = vcmp.eq.s32.totalorder %v2773, 0
        %v2776 = vxor.u32 %v2770, 2147483648
        %v2777 = vsel %vm2775, %v2769, %v2776
        %vm2778 = vcmp.eq.s32.totalorder %v2773, 2
        %v2779 = vxor.u32 %v2769, 2147483648
        %v2780 = vsel %vm2778, %v2779, %v2770
        %v2781 = vsel %vm2774, %v2777, %v2780
        %v2782 = vsel %vm2771, nan, %v2781
        %v2783 = vand.u32 2147483647, %v2262
        %vm2784 = vcmp.le.f32.partialorder %v2783, 0.7853982
        %vm2785 = vcmp.lt.s32.totalorder %v2262, 0
        %v2786 = vand.u32 %v2262, 2139095040
        %v2787 = vshrl.u32 %v2786, 23
        %v2788 = vsub.s32 %v2787, 127
        %v2789 = vand.u32 2147483647, %v2262
        %v2790 = vand.u32 %v2789, 8388607
        %v2791 = vor.u32 %v2790, 8388608
        %v2792 = vsub.s32 0, %v2791
        %v2793 = vadd.s32 %v2788, 1
        %vm2794 = vcmp.gt.s32.totalorder %v2793, 0
        %v2795 = vsel %vm2794, %v2793, 0
        %v2796 = vshrl.u32 %v2795, 5
        %v2797 = vand.u32 %v2795, 31
        %v2798 = vsub.s32 32, %v2797
        %v2799 = vshrl.u32 683565275, %v2798
        %v2800 = vshll.u32 683565275, %v2797
        %v2801 = vshrl.u32 2475754826, %v2798
        %v2802 = vor.u32 %v2800, %v2801
        %v2803 = vshll.u32 2475754826, %v2797
        %v2804 = vshrl.u32 2131351028, %v2798
        %v2805 = vor.u32 %v2803, %v2804
        %v2806 = vshll.u32 2131351028, %v2797
        %v2807 = vshrl.u32 2102212464, %v2798
        %v2808 = vor.u32 %v2806, %v2807
        %v2809 = vshll.u32 2102212464, %v2797
        %v2810 = vshrl.u32 920167782, %v2798
        %v2811 = vor.u32 %v2809, %v2810
        %v2812 = vshll.u32 920167782, %v2797
        %v2813 = vshrl.u32 1326507024, %v2798
        %v2814 = vor.u32 %v2812, %v2813
        %vm2815 = vcmp.lt.s32.totalorder %v2796, 1
        %vm2816 = vcmp.lt.s32.totalorder %v2796, 2
        %vm2817 = vcmp.lt.s32.totalorder %v2796, 3
        %vm2818 = vcmp.lt.s32.totalorder %v2796, 4
        %v2819 = vsel %vm2815, %v2799, %v2802
        %v2820 = vsel %vm2818, %v2808, 2102212464
        %v2821 = vsel %vm2817, %v2805, %v2820
        %v2822 = vsel %vm2816, %v2819, %v2821
        %v2823 = vsel %vm2815, %v2802, %v2805
        %v2824 = vsel %vm2818, %v2811, 920167782
        %v2825 = vsel %vm2817, %v2808, %v2824
        %v2826 = vsel %vm2816, %v2823, %v2825
        %v2827 = vsel %vm2815, %v2805, %v2808
        %v2828 = vsel %vm2818, %v2814, 1326507024
        %v2829 = vsel %vm2817, %v2811, %v2828
        %v2830 = vsel %vm2816, %v2827, %v2829
        %v2831 = vshll.u32 %v2791, 8
        %v2832 = vmul.u32.u64.compose %v2831, %v2830
        %v2833 = vextract.low.u32 %v2832
        %v2834 = vextract.high.u32 %v2832
        %v2835 = vmul.u32.u64.compose %v2831, %v2826
        %v2836 = vextract.low.u32 %v2835
        %v2837 = vextract.high.u32 %v2835
        %v2838 = vmul.u32 %v2831, %v2822
        %v2839 = vadd.s32 %v2834, %v2836
        %vm2840 = vc.u32 %v2834, %v2836
        %v2841 = vadd.s32 %v2837, 1
        %v2842 = vsel %vm2840, %v2841, %v2837
        %v2843 = vadd.s32 %v2838, %v2842
        %v2844 = vadd.s32 %v2843, 536870912
        %v2845 = vshrl.u32 %v2844, 30
        %v2846 = vshll.u32 %v2845, 30
        %v2847 = vsub.s32 %v2843, %v2846
        %vm2848 = vcmp.lt.s32.totalorder %v2847, 0
        %v2849 = vsub.s32 0, %v2847
        %v2850 = vsel %vm2848, %v2849, %v2847
        %v2851 = vclz %v2850
        %v2852 = vsub.s32 %v2851, 2
        %vm2853 = vcmp.gt.s32.totalorder 0, %v2852
        %v2854 = vsel %vm2853, 0, %v2852
        %v2855 = vsub.s32 32, %v2854
        %v2856 = vshll.u32 %v2847, %v2854
        %v2857 = vshrl.u32 %v2839, %v2855
        %v2858 = vor.u32 %v2856, %v2857
        %v2859 = vsub.s32 4294967266, %v2854
        %v2860 = vadd.s32 %v2859, 127
        %v2861 = vshll.u32 %v2860, 23
        %v2862 = vor.u32 4788187, %v2861
        %v2863 = vand.u32 2147483647, %v2862
        %v2865 = vcvt.s32.f32 %v2858
        %v2866 = vmul.f32 %v2865, %v2863
        %v2867 = vxor.u32 %v2866, 2147483648
        %v2868 = vsel %vm2785, %v2867, %v2866
        %v2869 = vsub.s32 4, %v2845
        %v2870 = vsel %vm2785, %v2869, %v2845
        %v2871 = vsel %vm2784, %v2262, %v2868
        %v2872 = vsel %vm2784, 0, %v2870
        %v2873 = vcosq.f32.pop %v2871
        %v2874 = vsinq.f32.pop %v2871
        %vm2875 = vweird.f32 %v2262
        %v2876 = vadd.s32 %v2872, 3
        %v2877 = vand.u32 %v2876, 3
        %vm2878 = vcmp.lt.s32.totalorder %v2877, 2
        %vm2879 = vcmp.eq.s32.totalorder %v2877, 0
        %v2880 = vxor.u32 %v2874, 2147483648
        %v2881 = vsel %vm2879, %v2873, %v2880
        %vm2882 = vcmp.eq.s32.totalorder %v2877, 2
        %v2883 = vxor.u32 %v2873, 2147483648
        %v2884 = vsel %vm2882, %v2883, %v2874
        %v2885 = vsel %vm2878, %v2881, %v2884
        %v2886 = vsel %vm2875, nan, %v2885
        %v2887 = vand.u32 2147483647, %v2264
        %vm2888 = vcmp.le.f32.partialorder %v2887, 0.7853982
        %vm2889 = vcmp.lt.s32.totalorder %v2264, 0
        %v2890 = vand.u32 %v2264, 2139095040
        %v2891 = vshrl.u32 %v2890, 23
        %v2892 = vsub.s32 %v2891, 127
        %v2893 = vand.u32 2147483647, %v2264
        %v2894 = vand.u32 %v2893, 8388607
        %v2895 = vor.u32 %v2894, 8388608
        %v2896 = vsub.s32 0, %v2895
        %v2897 = vadd.s32 %v2892, 1
        %vm2898 = vcmp.gt.s32.totalorder %v2897, 0
        %v2899 = vsel %vm2898, %v2897, 0
        %v2900 = vshrl.u32 %v2899, 5
        %v2901 = vand.u32 %v2899, 31
        %v2902 = vsub.s32 32, %v2901
        %v2903 = vshrl.u32 683565275, %v2902
        %v2904 = vshll.u32 683565275, %v2901
        %v2905 = vshrl.u32 2475754826, %v2902
        %v2906 = vor.u32 %v2904, %v2905
        %v2907 = vshll.u32 2475754826, %v2901
        %v2908 = vshrl.u32 2131351028, %v2902
        %v2909 = vor.u32 %v2907, %v2908
        %v2910 = vshll.u32 2131351028, %v2901
        %v2911 = vshrl.u32 2102212464, %v2902
        %v2912 = vor.u32 %v2910, %v2911
        %v2913 = vshll.u32 2102212464, %v2901
        %v2914 = vshrl.u32 920167782, %v2902
        %v2915 = vor.u32 %v2913, %v2914
        %v2916 = vshll.u32 920167782, %v2901
        %v2917 = vshrl.u32 1326507024, %v2902
        %v2918 = vor.u32 %v2916, %v2917
        %vm2919 = vcmp.lt.s32.totalorder %v2900, 1
        %vm2920 = vcmp.lt.s32.totalorder %v2900, 2
        %vm2921 = vcmp.lt.s32.totalorder %v2900, 3
        %vm2922 = vcmp.lt.s32.totalorder %v2900, 4
        %v2923 = vsel %vm2919, %v2903, %v2906
        %v2924 = vsel %vm2922, %v2912, 2102212464
        %v2925 = vsel %vm2921, %v2909, %v2924
        %v2926 = vsel %vm2920, %v2923, %v2925
        %v2927 = vsel %vm2919, %v2906, %v2909
        %v2928 = vsel %vm2922, %v2915, 920167782
        %v2929 = vsel %vm2921, %v2912, %v2928
        %v2930 = vsel %vm2920, %v2927, %v2929
        %v2931 = vsel %vm2919, %v2909, %v2912
        %v2932 = vsel %vm2922, %v2918, 1326507024
        %v2933 = vsel %vm2921, %v2915, %v2932
        %v2934 = vsel %vm2920, %v2931, %v2933
        %v2935 = vshll.u32 %v2895, 8
        %v2936 = vmul.u32.u64.compose %v2935, %v2934
        %v2937 = vextract.low.u32 %v2936
        %v2938 = vextract.high.u32 %v2936
        %v2939 = vmul.u32.u64.compose %v2935, %v2930
        %v2940 = vextract.low.u32 %v2939
        %v2941 = vextract.high.u32 %v2939
        %v2942 = vmul.u32 %v2935, %v2926
        %v2943 = vadd.s32 %v2938, %v2940
        %vm2944 = vc.u32 %v2938, %v2940
        %v2945 = vadd.s32 %v2941, 1
        %v2946 = vsel %vm2944, %v2945, %v2941
        %v2947 = vadd.s32 %v2942, %v2946
        %v2948 = vadd.s32 %v2947, 536870912
        %v2949 = vshrl.u32 %v2948, 30
        %v2950 = vshll.u32 %v2949, 30
        %v2951 = vsub.s32 %v2947, %v2950
        %vm2952 = vcmp.lt.s32.totalorder %v2951, 0
        %v2953 = vsub.s32 0, %v2951
        %v2954 = vsel %vm2952, %v2953, %v2951
        %v2955 = vclz %v2954
        %v2956 = vsub.s32 %v2955, 2
        %vm2957 = vcmp.gt.s32.totalorder 0, %v2956
        %v2958 = vsel %vm2957, 0, %v2956
        %v2959 = vsub.s32 32, %v2958
        %v2960 = vshll.u32 %v2951, %v2958
        %v2961 = vshrl.u32 %v2943, %v2959
        %v2962 = vor.u32 %v2960, %v2961
        %v2963 = vsub.s32 4294967266, %v2958
        %v2964 = vadd.s32 %v2963, 127
        %v2965 = vshll.u32 %v2964, 23
        %v2966 = vor.u32 4788187, %v2965
        %v2967 = vand.u32 2147483647, %v2966
        %v2969 = vcvt.s32.f32 %v2962
        %v2970 = vmul.f32 %v2969, %v2967
        %v2971 = vxor.u32 %v2970, 2147483648
        %v2972 = vsel %vm2889, %v2971, %v2970
        %v2973 = vsub.s32 4, %v2949
        %v2974 = vsel %vm2889, %v2973, %v2949
        %v2975 = vsel %vm2888, %v2264, %v2972
        %v2976 = vsel %vm2888, 0, %v2974
        %v2977 = vcosq.f32.pop %v2975
        %v2978 = vsinq.f32.pop %v2975
        %vm2979 = vweird.f32 %v2264
        %v2980 = vadd.s32 %v2976, 3
        %v2981 = vand.u32 %v2980, 3
        %vm2982 = vcmp.lt.s32.totalorder %v2981, 2
        %vm2983 = vcmp.eq.s32.totalorder %v2981, 0
        %v2984 = vxor.u32 %v2978, 2147483648
        %v2985 = vsel %vm2983, %v2977, %v2984
        %vm2986 = vcmp.eq.s32.totalorder %v2981, 2
        %v2987 = vxor.u32 %v2977, 2147483648
        %v2988 = vsel %vm2986, %v2987, %v2978
        %v2989 = vsel %vm2982, %v2985, %v2988
        %v2990 = vsel %vm2979, nan, %v2989
        %v2991 = vand.u32 2147483647, %v2351
        %vm2992 = vcmp.le.f32.partialorder %v2991, 0.7853982
        %vm2993 = vcmp.lt.s32.totalorder %v2351, 0
        %v2994 = vand.u32 %v2351, 2139095040
        %v2995 = vshrl.u32 %v2994, 23
        %v2996 = vsub.s32 %v2995, 127
        %v2997 = vand.u32 2147483647, %v2351
        %v2998 = vand.u32 %v2997, 8388607
        %v2999 = vor.u32 %v2998, 8388608
        %v3000 = vsub.s32 0, %v2999
        %v3001 = vadd.s32 %v2996, 1
        %vm3002 = vcmp.gt.s32.totalorder %v3001, 0
        %v3003 = vsel %vm3002, %v3001, 0
        %v3004 = vshrl.u32 %v3003, 5
        %v3005 = vand.u32 %v3003, 31
        %v3006 = vsub.s32 32, %v3005
        %v3007 = vshrl.u32 683565275, %v3006
        %v3008 = vshll.u32 683565275, %v3005
        %v3009 = vshrl.u32 2475754826, %v3006
        %v3010 = vor.u32 %v3008, %v3009
        %v3011 = vshll.u32 2475754826, %v3005
        %v3012 = vshrl.u32 2131351028, %v3006
        %v3013 = vor.u32 %v3011, %v3012
        %v3014 = vshll.u32 2131351028, %v3005
        %v3015 = vshrl.u32 2102212464, %v3006
        %v3016 = vor.u32 %v3014, %v3015
        %v3017 = vshll.u32 2102212464, %v3005
        %v3018 = vshrl.u32 920167782, %v3006
        %v3019 = vor.u32 %v3017, %v3018
        %v3020 = vshll.u32 920167782, %v3005
        %v3021 = vshrl.u32 1326507024, %v3006
        %v3022 = vor.u32 %v3020, %v3021
        %vm3023 = vcmp.lt.s32.totalorder %v3004, 1
        %vm3024 = vcmp.lt.s32.totalorder %v3004, 2
        %vm3025 = vcmp.lt.s32.totalorder %v3004, 3
        %vm3026 = vcmp.lt.s32.totalorder %v3004, 4
        %v3027 = vsel %vm3023, %v3007, %v3010
        %v3028 = vsel %vm3026, %v3016, 2102212464
        %v3029 = vsel %vm3025, %v3013, %v3028
        %v3030 = vsel %vm3024, %v3027, %v3029
        %v3031 = vsel %vm3023, %v3010, %v3013
        %v3032 = vsel %vm3026, %v3019, 920167782
        %v3033 = vsel %vm3025, %v3016, %v3032
        %v3034 = vsel %vm3024, %v3031, %v3033
        %v3035 = vsel %vm3023, %v3013, %v3016
        %v3036 = vsel %vm3026, %v3022, 1326507024
        %v3037 = vsel %vm3025, %v3019, %v3036
        %v3038 = vsel %vm3024, %v3035, %v3037
        %v3039 = vshll.u32 %v2999, 8
        %v3040 = vmul.u32.u64.compose %v3039, %v3038
        %v3041 = vextract.low.u32 %v3040
        %v3042 = vextract.high.u32 %v3040
        %v3043 = vmul.u32.u64.compose %v3039, %v3034
        %v3044 = vextract.low.u32 %v3043
        %v3045 = vextract.high.u32 %v3043
        %v3046 = vmul.u32 %v3039, %v3030
        %v3047 = vadd.s32 %v3042, %v3044
        %vm3048 = vc.u32 %v3042, %v3044
        %v3049 = vadd.s32 %v3045, 1
        %v3050 = vsel %vm3048, %v3049, %v3045
        %v3051 = vadd.s32 %v3046, %v3050
        %v3052 = vadd.s32 %v3051, 536870912
        %v3053 = vshrl.u32 %v3052, 30
        %v3054 = vshll.u32 %v3053, 30
        %v3055 = vsub.s32 %v3051, %v3054
        %vm3056 = vcmp.lt.s32.totalorder %v3055, 0
        %v3057 = vsub.s32 0, %v3055
        %v3058 = vsel %vm3056, %v3057, %v3055
        %v3059 = vclz %v3058
        %v3060 = vsub.s32 %v3059, 2
        %vm3061 = vcmp.gt.s32.totalorder 0, %v3060
        %v3062 = vsel %vm3061, 0, %v3060
        %v3063 = vsub.s32 32, %v3062
        %v3064 = vshll.u32 %v3055, %v3062
        %v3065 = vshrl.u32 %v3047, %v3063
        %v3066 = vor.u32 %v3064, %v3065
        %v3067 = vsub.s32 4294967266, %v3062
        %v3068 = vadd.s32 %v3067, 127
        %v3069 = vshll.u32 %v3068, 23
        %v3070 = vor.u32 4788187, %v3069
        %v3071 = vand.u32 2147483647, %v3070
        %v3073 = vcvt.s32.f32 %v3066
        %v3074 = vmul.f32 %v3073, %v3071
        %v3075 = vxor.u32 %v3074, 2147483648
        %v3076 = vsel %vm2993, %v3075, %v3074
        %v3077 = vsub.s32 4, %v3053
        %v3078 = vsel %vm2993, %v3077, %v3053
        %v3079 = vsel %vm2992, %v2351, %v3076
        %v3080 = vsel %vm2992, 0, %v3078
        %v3081 = vcosq.f32.pop %v3079
        %v3082 = vsinq.f32.pop %v3079
        %vm3083 = vweird.f32 %v2351
        %v3084 = vadd.s32 %v3080, 3
        %v3085 = vand.u32 %v3084, 3
        %vm3086 = vcmp.lt.s32.totalorder %v3085, 2
        %vm3087 = vcmp.eq.s32.totalorder %v3085, 0
        %v3088 = vxor.u32 %v3082, 2147483648
        %v3089 = vsel %vm3087, %v3081, %v3088
        %vm3090 = vcmp.eq.s32.totalorder %v3085, 2
        %v3091 = vxor.u32 %v3081, 2147483648
        %v3092 = vsel %vm3090, %v3091, %v3082
        %v3093 = vsel %vm3086, %v3089, %v3092
        %v3094 = vsel %vm3083, nan, %v3093
        %v3095 = vand.u32 2147483647, %v2353
        %vm3096 = vcmp.le.f32.partialorder %v3095, 0.7853982
        %vm3097 = vcmp.lt.s32.totalorder %v2353, 0
        %v3098 = vand.u32 %v2353, 2139095040
        %v3099 = vshrl.u32 %v3098, 23
        %v3100 = vsub.s32 %v3099, 127
        %v3101 = vand.u32 2147483647, %v2353
        %v3102 = vand.u32 %v3101, 8388607
        %v3103 = vor.u32 %v3102, 8388608
        %v3104 = vsub.s32 0, %v3103
        %v3105 = vadd.s32 %v3100, 1
        %vm3106 = vcmp.gt.s32.totalorder %v3105, 0
        %v3107 = vsel %vm3106, %v3105, 0
        %v3108 = vshrl.u32 %v3107, 5
        %v3109 = vand.u32 %v3107, 31
        %v3110 = vsub.s32 32, %v3109
        %v3111 = vshrl.u32 683565275, %v3110
        %v3112 = vshll.u32 683565275, %v3109
        %v3113 = vshrl.u32 2475754826, %v3110
        %v3114 = vor.u32 %v3112, %v3113
        %v3115 = vshll.u32 2475754826, %v3109
        %v3116 = vshrl.u32 2131351028, %v3110
        %v3117 = vor.u32 %v3115, %v3116
        %v3118 = vshll.u32 2131351028, %v3109
        %v3119 = vshrl.u32 2102212464, %v3110
        %v3120 = vor.u32 %v3118, %v3119
        %v3121 = vshll.u32 2102212464, %v3109
        %v3122 = vshrl.u32 920167782, %v3110
        %v3123 = vor.u32 %v3121, %v3122
        %v3124 = vshll.u32 920167782, %v3109
        %v3125 = vshrl.u32 1326507024, %v3110
        %v3126 = vor.u32 %v3124, %v3125
        %vm3127 = vcmp.lt.s32.totalorder %v3108, 1
        %vm3128 = vcmp.lt.s32.totalorder %v3108, 2
        %vm3129 = vcmp.lt.s32.totalorder %v3108, 3
        %vm3130 = vcmp.lt.s32.totalorder %v3108, 4
        %v3131 = vsel %vm3127, %v3111, %v3114
        %v3132 = vsel %vm3130, %v3120, 2102212464
        %v3133 = vsel %vm3129, %v3117, %v3132
        %v3134 = vsel %vm3128, %v3131, %v3133
        %v3135 = vsel %vm3127, %v3114, %v3117
        %v3136 = vsel %vm3130, %v3123, 920167782
        %v3137 = vsel %vm3129, %v3120, %v3136
        %v3138 = vsel %vm3128, %v3135, %v3137
        %v3139 = vsel %vm3127, %v3117, %v3120
        %v3140 = vsel %vm3130, %v3126, 1326507024
        %v3141 = vsel %vm3129, %v3123, %v3140
        %v3142 = vsel %vm3128, %v3139, %v3141
        %v3143 = vshll.u32 %v3103, 8
        %v3144 = vmul.u32.u64.compose %v3143, %v3142
        %v3145 = vextract.low.u32 %v3144
        %v3146 = vextract.high.u32 %v3144
        %v3147 = vmul.u32.u64.compose %v3143, %v3138
        %v3148 = vextract.low.u32 %v3147
        %v3149 = vextract.high.u32 %v3147
        %v3150 = vmul.u32 %v3143, %v3134
        %v3151 = vadd.s32 %v3146, %v3148
        %vm3152 = vc.u32 %v3146, %v3148
        %v3153 = vadd.s32 %v3149, 1
        %v3154 = vsel %vm3152, %v3153, %v3149
        %v3155 = vadd.s32 %v3150, %v3154
        %v3156 = vadd.s32 %v3155, 536870912
        %v3157 = vshrl.u32 %v3156, 30
        %v3158 = vshll.u32 %v3157, 30
        %v3159 = vsub.s32 %v3155, %v3158
        %vm3160 = vcmp.lt.s32.totalorder %v3159, 0
        %v3161 = vsub.s32 0, %v3159
        %v3162 = vsel %vm3160, %v3161, %v3159
        %v3163 = vclz %v3162
        %v3164 = vsub.s32 %v3163, 2
        %vm3165 = vcmp.gt.s32.totalorder 0, %v3164
        %v3166 = vsel %vm3165, 0, %v3164
        %v3167 = vsub.s32 32, %v3166
        %v3168 = vshll.u32 %v3159, %v3166
        %v3169 = vshrl.u32 %v3151, %v3167
        %v3170 = vor.u32 %v3168, %v3169
        %v3171 = vsub.s32 4294967266, %v3166
        %v3172 = vadd.s32 %v3171, 127
        %v3173 = vshll.u32 %v3172, 23
        %v3174 = vor.u32 4788187, %v3173
        %v3175 = vand.u32 2147483647, %v3174
        %v3177 = vcvt.s32.f32 %v3170
        %v3178 = vmul.f32 %v3177, %v3175
        %v3179 = vxor.u32 %v3178, 2147483648
        %v3180 = vsel %vm3097, %v3179, %v3178
        %v3181 = vsub.s32 4, %v3157
        %v3182 = vsel %vm3097, %v3181, %v3157
        %v3183 = vsel %vm3096, %v2353, %v3180
        %v3184 = vsel %vm3096, 0, %v3182
        %v3185 = vcosq.f32.pop %v3183
        %v3186 = vsinq.f32.pop %v3183
        %vm3187 = vweird.f32 %v2353
        %v3188 = vadd.s32 %v3184, 3
        %v3189 = vand.u32 %v3188, 3
        %vm3190 = vcmp.lt.s32.totalorder %v3189, 2
        %vm3191 = vcmp.eq.s32.totalorder %v3189, 0
        %v3192 = vxor.u32 %v3186, 2147483648
        %v3193 = vsel %vm3191, %v3185, %v3192
        %vm3194 = vcmp.eq.s32.totalorder %v3189, 2
        %v3195 = vxor.u32 %v3185, 2147483648
        %v3196 = vsel %vm3194, %v3195, %v3186
        %v3197 = vsel %vm3190, %v3193, %v3196
        %v3198 = vsel %vm3187, nan, %v3197
        %v3199 = vand.u32 2147483647, %v2268
        %vm3200 = vcmp.le.f32.partialorder %v3199, 0.7853982
        %vm3201 = vcmp.lt.s32.totalorder %v2268, 0
        %v3202 = vand.u32 %v2268, 2139095040
        %v3203 = vshrl.u32 %v3202, 23
        %v3204 = vsub.s32 %v3203, 127
        %v3205 = vand.u32 2147483647, %v2268
        %v3206 = vand.u32 %v3205, 8388607
        %v3207 = vor.u32 %v3206, 8388608
        %v3208 = vsub.s32 0, %v3207
        %v3209 = vadd.s32 %v3204, 1
        %vm3210 = vcmp.gt.s32.totalorder %v3209, 0
        %v3211 = vsel %vm3210, %v3209, 0
        %v3212 = vshrl.u32 %v3211, 5
        %v3213 = vand.u32 %v3211, 31
        %v3214 = vsub.s32 32, %v3213
        %v3215 = vshrl.u32 683565275, %v3214
        %v3216 = vshll.u32 683565275, %v3213
        %v3217 = vshrl.u32 2475754826, %v3214
        %v3218 = vor.u32 %v3216, %v3217
        %v3219 = vshll.u32 2475754826, %v3213
        %v3220 = vshrl.u32 2131351028, %v3214
        %v3221 = vor.u32 %v3219, %v3220
        %v3222 = vshll.u32 2131351028, %v3213
        %v3223 = vshrl.u32 2102212464, %v3214
        %v3224 = vor.u32 %v3222, %v3223
        %v3225 = vshll.u32 2102212464, %v3213
        %v3226 = vshrl.u32 920167782, %v3214
        %v3227 = vor.u32 %v3225, %v3226
        %v3228 = vshll.u32 920167782, %v3213
        %v3229 = vshrl.u32 1326507024, %v3214
        %v3230 = vor.u32 %v3228, %v3229
        %vm3231 = vcmp.lt.s32.totalorder %v3212, 1
        %vm3232 = vcmp.lt.s32.totalorder %v3212, 2
        %vm3233 = vcmp.lt.s32.totalorder %v3212, 3
        %vm3234 = vcmp.lt.s32.totalorder %v3212, 4
        %v3235 = vsel %vm3231, %v3215, %v3218
        %v3236 = vsel %vm3234, %v3224, 2102212464
        %v3237 = vsel %vm3233, %v3221, %v3236
        %v3238 = vsel %vm3232, %v3235, %v3237
        %v3239 = vsel %vm3231, %v3218, %v3221
        %v3240 = vsel %vm3234, %v3227, 920167782
        %v3241 = vsel %vm3233, %v3224, %v3240
        %v3242 = vsel %vm3232, %v3239, %v3241
        %v3243 = vsel %vm3231, %v3221, %v3224
        %v3244 = vsel %vm3234, %v3230, 1326507024
        %v3245 = vsel %vm3233, %v3227, %v3244
        %v3246 = vsel %vm3232, %v3243, %v3245
        %v3247 = vshll.u32 %v3207, 8
        %v3248 = vmul.u32.u64.compose %v3247, %v3246
        %v3249 = vextract.low.u32 %v3248
        %v3250 = vextract.high.u32 %v3248
        %v3251 = vmul.u32.u64.compose %v3247, %v3242
        %v3252 = vextract.low.u32 %v3251
        %v3253 = vextract.high.u32 %v3251
        %v3254 = vmul.u32 %v3247, %v3238
        %v3255 = vadd.s32 %v3250, %v3252
        %vm3256 = vc.u32 %v3250, %v3252
        %v3257 = vadd.s32 %v3253, 1
        %v3258 = vsel %vm3256, %v3257, %v3253
        %v3259 = vadd.s32 %v3254, %v3258
        %v3260 = vadd.s32 %v3259, 536870912
        %v3261 = vshrl.u32 %v3260, 30
        %v3262 = vshll.u32 %v3261, 30
        %v3263 = vsub.s32 %v3259, %v3262
        %vm3264 = vcmp.lt.s32.totalorder %v3263, 0
        %v3265 = vsub.s32 0, %v3263
        %v3266 = vsel %vm3264, %v3265, %v3263
        %v3267 = vclz %v3266
        %v3268 = vsub.s32 %v3267, 2
        %vm3269 = vcmp.gt.s32.totalorder 0, %v3268
        %v3270 = vsel %vm3269, 0, %v3268
        %v3271 = vsub.s32 32, %v3270
        %v3272 = vshll.u32 %v3263, %v3270
        %v3273 = vshrl.u32 %v3255, %v3271
        %v3274 = vor.u32 %v3272, %v3273
        %v3275 = vsub.s32 4294967266, %v3270
        %v3276 = vadd.s32 %v3275, 127
        %v3277 = vshll.u32 %v3276, 23
        %v3278 = vor.u32 4788187, %v3277
        %v3279 = vand.u32 2147483647, %v3278
        %v3281 = vcvt.s32.f32 %v3274
        %v3282 = vmul.f32 %v3281, %v3279
        %v3283 = vxor.u32 %v3282, 2147483648
        %v3284 = vsel %vm3201, %v3283, %v3282
        %v3285 = vsub.s32 4, %v3261
        %v3286 = vsel %vm3201, %v3285, %v3261
        %v3287 = vsel %vm3200, %v2268, %v3284
        %v3288 = vsel %vm3200, 0, %v3286
        %v3289 = vcosq.f32.pop %v3287
        %v3290 = vsinq.f32.pop %v3287
        %vm3291 = vweird.f32 %v2268
        %v3292 = vadd.s32 %v3288, 3
        %v3293 = vand.u32 %v3292, 3
        %vm3294 = vcmp.lt.s32.totalorder %v3293, 2
        %vm3295 = vcmp.eq.s32.totalorder %v3293, 0
        %v3296 = vxor.u32 %v3290, 2147483648
        %v3297 = vsel %vm3295, %v3289, %v3296
        %vm3298 = vcmp.eq.s32.totalorder %v3293, 2
        %v3299 = vxor.u32 %v3289, 2147483648
        %v3300 = vsel %vm3298, %v3299, %v3290
        %v3301 = vsel %vm3294, %v3297, %v3300
        %v3302 = vsel %vm3291, nan, %v3301
        %v3303 = vand.u32 2147483647, %v2270
        %vm3304 = vcmp.le.f32.partialorder %v3303, 0.7853982
        %vm3305 = vcmp.lt.s32.totalorder %v2270, 0
        %v3306 = vand.u32 %v2270, 2139095040
        %v3307 = vshrl.u32 %v3306, 23
        %v3308 = vsub.s32 %v3307, 127
        %v3309 = vand.u32 2147483647, %v2270
        %v3310 = vand.u32 %v3309, 8388607
        %v3311 = vor.u32 %v3310, 8388608
        %v3312 = vsub.s32 0, %v3311
        %v3313 = vadd.s32 %v3308, 1
        %vm3314 = vcmp.gt.s32.totalorder %v3313, 0
        %v3315 = vsel %vm3314, %v3313, 0
        %v3316 = vshrl.u32 %v3315, 5
        %v3317 = vand.u32 %v3315, 31
        %v3318 = vsub.s32 32, %v3317
        %v3319 = vshrl.u32 683565275, %v3318
        %v3320 = vshll.u32 683565275, %v3317
        %v3321 = vshrl.u32 2475754826, %v3318
        %v3322 = vor.u32 %v3320, %v3321
        %v3323 = vshll.u32 2475754826, %v3317
        %v3324 = vshrl.u32 2131351028, %v3318
        %v3325 = vor.u32 %v3323, %v3324
        %v3326 = vshll.u32 2131351028, %v3317
        %v3327 = vshrl.u32 2102212464, %v3318
        %v3328 = vor.u32 %v3326, %v3327
        %v3329 = vshll.u32 2102212464, %v3317
        %v3330 = vshrl.u32 920167782, %v3318
        %v3331 = vor.u32 %v3329, %v3330
        %v3332 = vshll.u32 920167782, %v3317
        %v3333 = vshrl.u32 1326507024, %v3318
        %v3334 = vor.u32 %v3332, %v3333
        %vm3335 = vcmp.lt.s32.totalorder %v3316, 1
        %vm3336 = vcmp.lt.s32.totalorder %v3316, 2
        %vm3337 = vcmp.lt.s32.totalorder %v3316, 3
        %vm3338 = vcmp.lt.s32.totalorder %v3316, 4
        %v3339 = vsel %vm3335, %v3319, %v3322
        %v3340 = vsel %vm3338, %v3328, 2102212464
        %v3341 = vsel %vm3337, %v3325, %v3340
        %v3342 = vsel %vm3336, %v3339, %v3341
        %v3343 = vsel %vm3335, %v3322, %v3325
        %v3344 = vsel %vm3338, %v3331, 920167782
        %v3345 = vsel %vm3337, %v3328, %v3344
        %v3346 = vsel %vm3336, %v3343, %v3345
        %v3347 = vsel %vm3335, %v3325, %v3328
        %v3348 = vsel %vm3338, %v3334, 1326507024
        %v3349 = vsel %vm3337, %v3331, %v3348
        %v3350 = vsel %vm3336, %v3347, %v3349
        %v3351 = vshll.u32 %v3311, 8
        %v3352 = vmul.u32.u64.compose %v3351, %v3350
        %v3353 = vextract.low.u32 %v3352
        %v3354 = vextract.high.u32 %v3352
        %v3355 = vmul.u32.u64.compose %v3351, %v3346
        %v3356 = vextract.low.u32 %v3355
        %v3357 = vextract.high.u32 %v3355
        %v3358 = vmul.u32 %v3351, %v3342
        %v3359 = vadd.s32 %v3354, %v3356
        %vm3360 = vc.u32 %v3354, %v3356
        %v3361 = vadd.s32 %v3357, 1
        %v3362 = vsel %vm3360, %v3361, %v3357
        %v3363 = vadd.s32 %v3358, %v3362
        %v3364 = vadd.s32 %v3363, 536870912
        %v3365 = vshrl.u32 %v3364, 30
        %v3366 = vshll.u32 %v3365, 30
        %v3367 = vsub.s32 %v3363, %v3366
        %vm3368 = vcmp.lt.s32.totalorder %v3367, 0
        %v3369 = vsub.s32 0, %v3367
        %v3370 = vsel %vm3368, %v3369, %v3367
        %v3371 = vclz %v3370
        %v3372 = vsub.s32 %v3371, 2
        %vm3373 = vcmp.gt.s32.totalorder 0, %v3372
        %v3374 = vsel %vm3373, 0, %v3372
        %v3375 = vsub.s32 32, %v3374
        %v3376 = vshll.u32 %v3367, %v3374
        %v3377 = vshrl.u32 %v3359, %v3375
        %v3378 = vor.u32 %v3376, %v3377
        %v3379 = vsub.s32 4294967266, %v3374
        %v3380 = vadd.s32 %v3379, 127
        %v3381 = vshll.u32 %v3380, 23
        %v3382 = vor.u32 4788187, %v3381
        %v3383 = vand.u32 2147483647, %v3382
        %v3385 = vcvt.s32.f32 %v3378
        %v3386 = vmul.f32 %v3385, %v3383
        %v3387 = vxor.u32 %v3386, 2147483648
        %v3388 = vsel %vm3305, %v3387, %v3386
        %v3389 = vsub.s32 4, %v3365
        %v3390 = vsel %vm3305, %v3389, %v3365
        %v3391 = vsel %vm3304, %v2270, %v3388
        %v3392 = vsel %vm3304, 0, %v3390
        %v3393 = vcosq.f32.pop %v3391
        %v3394 = vsinq.f32.pop %v3391
        %vm3395 = vweird.f32 %v2270
        %v3396 = vadd.s32 %v3392, 3
        %v3397 = vand.u32 %v3396, 3
        %vm3398 = vcmp.lt.s32.totalorder %v3397, 2
        %vm3399 = vcmp.eq.s32.totalorder %v3397, 0
        %v3400 = vxor.u32 %v3394, 2147483648
        %v3401 = vsel %vm3399, %v3393, %v3400
        %vm3402 = vcmp.eq.s32.totalorder %v3397, 2
        %v3403 = vxor.u32 %v3393, 2147483648
        %v3404 = vsel %vm3402, %v3403, %v3394
        %v3405 = vsel %vm3398, %v3401, %v3404
        %v3406 = vsel %vm3395, nan, %v3405
        %v3407 = vand.u32 2147483647, %v2357
        %vm3408 = vcmp.le.f32.partialorder %v3407, 0.7853982
        %vm3409 = vcmp.lt.s32.totalorder %v2357, 0
        %v3410 = vand.u32 %v2357, 2139095040
        %v3411 = vshrl.u32 %v3410, 23
        %v3412 = vsub.s32 %v3411, 127
        %v3413 = vand.u32 2147483647, %v2357
        %v3414 = vand.u32 %v3413, 8388607
        %v3415 = vor.u32 %v3414, 8388608
        %v3416 = vsub.s32 0, %v3415
        %v3417 = vadd.s32 %v3412, 1
        %vm3418 = vcmp.gt.s32.totalorder %v3417, 0
        %v3419 = vsel %vm3418, %v3417, 0
        %v3420 = vshrl.u32 %v3419, 5
        %v3421 = vand.u32 %v3419, 31
        %v3422 = vsub.s32 32, %v3421
        %v3423 = vshrl.u32 683565275, %v3422
        %v3424 = vshll.u32 683565275, %v3421
        %v3425 = vshrl.u32 2475754826, %v3422
        %v3426 = vor.u32 %v3424, %v3425
        %v3427 = vshll.u32 2475754826, %v3421
        %v3428 = vshrl.u32 2131351028, %v3422
        %v3429 = vor.u32 %v3427, %v3428
        %v3430 = vshll.u32 2131351028, %v3421
        %v3431 = vshrl.u32 2102212464, %v3422
        %v3432 = vor.u32 %v3430, %v3431
        %v3433 = vshll.u32 2102212464, %v3421
        %v3434 = vshrl.u32 920167782, %v3422
        %v3435 = vor.u32 %v3433, %v3434
        %v3436 = vshll.u32 920167782, %v3421
        %v3437 = vshrl.u32 1326507024, %v3422
        %v3438 = vor.u32 %v3436, %v3437
        %vm3439 = vcmp.lt.s32.totalorder %v3420, 1
        %vm3440 = vcmp.lt.s32.totalorder %v3420, 2
        %vm3441 = vcmp.lt.s32.totalorder %v3420, 3
        %vm3442 = vcmp.lt.s32.totalorder %v3420, 4
        %v3443 = vsel %vm3439, %v3423, %v3426
        %v3444 = vsel %vm3442, %v3432, 2102212464
        %v3445 = vsel %vm3441, %v3429, %v3444
        %v3446 = vsel %vm3440, %v3443, %v3445
        %v3447 = vsel %vm3439, %v3426, %v3429
        %v3448 = vsel %vm3442, %v3435, 920167782
        %v3449 = vsel %vm3441, %v3432, %v3448
        %v3450 = vsel %vm3440, %v3447, %v3449
        %v3451 = vsel %vm3439, %v3429, %v3432
        %v3452 = vsel %vm3442, %v3438, 1326507024
        %v3453 = vsel %vm3441, %v3435, %v3452
        %v3454 = vsel %vm3440, %v3451, %v3453
        %v3455 = vshll.u32 %v3415, 8
        %v3456 = vmul.u32.u64.compose %v3455, %v3454
        %v3457 = vextract.low.u32 %v3456
        %v3458 = vextract.high.u32 %v3456
        %v3459 = vmul.u32.u64.compose %v3455, %v3450
        %v3460 = vextract.low.u32 %v3459
        %v3461 = vextract.high.u32 %v3459
        %v3462 = vmul.u32 %v3455, %v3446
        %v3463 = vadd.s32 %v3458, %v3460
        %vm3464 = vc.u32 %v3458, %v3460
        %v3465 = vadd.s32 %v3461, 1
        %v3466 = vsel %vm3464, %v3465, %v3461
        %v3467 = vadd.s32 %v3462, %v3466
        %v3468 = vadd.s32 %v3467, 536870912
        %v3469 = vshrl.u32 %v3468, 30
        %v3470 = vshll.u32 %v3469, 30
        %v3471 = vsub.s32 %v3467, %v3470
        %vm3472 = vcmp.lt.s32.totalorder %v3471, 0
        %v3473 = vsub.s32 0, %v3471
        %v3474 = vsel %vm3472, %v3473, %v3471
        %v3475 = vclz %v3474
        %v3476 = vsub.s32 %v3475, 2
        %vm3477 = vcmp.gt.s32.totalorder 0, %v3476
        %v3478 = vsel %vm3477, 0, %v3476
        %v3479 = vsub.s32 32, %v3478
        %v3480 = vshll.u32 %v3471, %v3478
        %v3481 = vshrl.u32 %v3463, %v3479
        %v3482 = vor.u32 %v3480, %v3481
        %v3483 = vsub.s32 4294967266, %v3478
        %v3484 = vadd.s32 %v3483, 127
        %v3485 = vshll.u32 %v3484, 23
        %v3486 = vor.u32 4788187, %v3485
        %v3487 = vand.u32 2147483647, %v3486
        %v3489 = vcvt.s32.f32 %v3482
        %v3490 = vmul.f32 %v3489, %v3487
        %v3491 = vxor.u32 %v3490, 2147483648
        %v3492 = vsel %vm3409, %v3491, %v3490
        %v3493 = vsub.s32 4, %v3469
        %v3494 = vsel %vm3409, %v3493, %v3469
        %v3495 = vsel %vm3408, %v2357, %v3492
        %v3496 = vsel %vm3408, 0, %v3494
        %v3497 = vcosq.f32.pop %v3495
        %v3498 = vsinq.f32.pop %v3495
        %vm3499 = vweird.f32 %v2357
        %v3500 = vadd.s32 %v3496, 3
        %v3501 = vand.u32 %v3500, 3
        %vm3502 = vcmp.lt.s32.totalorder %v3501, 2
        %vm3503 = vcmp.eq.s32.totalorder %v3501, 0
        %v3504 = vxor.u32 %v3498, 2147483648
        %v3505 = vsel %vm3503, %v3497, %v3504
        %vm3506 = vcmp.eq.s32.totalorder %v3501, 2
        %v3507 = vxor.u32 %v3497, 2147483648
        %v3508 = vsel %vm3506, %v3507, %v3498
        %v3509 = vsel %vm3502, %v3505, %v3508
        %v3510 = vsel %vm3499, nan, %v3509
        %v3511 = vand.u32 2147483647, %v2359
        %vm3512 = vcmp.le.f32.partialorder %v3511, 0.7853982
        %vm3513 = vcmp.lt.s32.totalorder %v2359, 0
        %v3514 = vand.u32 %v2359, 2139095040
        %v3515 = vshrl.u32 %v3514, 23
        %v3516 = vsub.s32 %v3515, 127
        %v3517 = vand.u32 2147483647, %v2359
        %v3518 = vand.u32 %v3517, 8388607
        %v3519 = vor.u32 %v3518, 8388608
        %v3520 = vsub.s32 0, %v3519
        %v3521 = vadd.s32 %v3516, 1
        %vm3522 = vcmp.gt.s32.totalorder %v3521, 0
        %v3523 = vsel %vm3522, %v3521, 0
        %v3524 = vshrl.u32 %v3523, 5
        %v3525 = vand.u32 %v3523, 31
        %v3526 = vsub.s32 32, %v3525
        %v3527 = vshrl.u32 683565275, %v3526
        %v3528 = vshll.u32 683565275, %v3525
        %v3529 = vshrl.u32 2475754826, %v3526
        %v3530 = vor.u32 %v3528, %v3529
        %v3531 = vshll.u32 2475754826, %v3525
        %v3532 = vshrl.u32 2131351028, %v3526
        %v3533 = vor.u32 %v3531, %v3532
        %v3534 = vshll.u32 2131351028, %v3525
        %v3535 = vshrl.u32 2102212464, %v3526
        %v3536 = vor.u32 %v3534, %v3535
        %v3537 = vshll.u32 2102212464, %v3525
        %v3538 = vshrl.u32 920167782, %v3526
        %v3539 = vor.u32 %v3537, %v3538
        %v3540 = vshll.u32 920167782, %v3525
        %v3541 = vshrl.u32 1326507024, %v3526
        %v3542 = vor.u32 %v3540, %v3541
        %vm3543 = vcmp.lt.s32.totalorder %v3524, 1
        %vm3544 = vcmp.lt.s32.totalorder %v3524, 2
        %vm3545 = vcmp.lt.s32.totalorder %v3524, 3
        %vm3546 = vcmp.lt.s32.totalorder %v3524, 4
        %v3547 = vsel %vm3543, %v3527, %v3530
        %v3548 = vsel %vm3546, %v3536, 2102212464
        %v3549 = vsel %vm3545, %v3533, %v3548
        %v3550 = vsel %vm3544, %v3547, %v3549
        %v3551 = vsel %vm3543, %v3530, %v3533
        %v3552 = vsel %vm3546, %v3539, 920167782
        %v3553 = vsel %vm3545, %v3536, %v3552
        %v3554 = vsel %vm3544, %v3551, %v3553
        %v3555 = vsel %vm3543, %v3533, %v3536
        %v3556 = vsel %vm3546, %v3542, 1326507024
        %v3557 = vsel %vm3545, %v3539, %v3556
        %v3558 = vsel %vm3544, %v3555, %v3557
        %v3559 = vshll.u32 %v3519, 8
        %v3560 = vmul.u32.u64.compose %v3559, %v3558
        %v3561 = vextract.low.u32 %v3560
        %v3562 = vextract.high.u32 %v3560
        %v3563 = vmul.u32.u64.compose %v3559, %v3554
        %v3564 = vextract.low.u32 %v3563
        %v3565 = vextract.high.u32 %v3563
        %v3566 = vmul.u32 %v3559, %v3550
        %v3567 = vadd.s32 %v3562, %v3564
        %vm3568 = vc.u32 %v3562, %v3564
        %v3569 = vadd.s32 %v3565, 1
        %v3570 = vsel %vm3568, %v3569, %v3565
        %v3571 = vadd.s32 %v3566, %v3570
        %v3572 = vadd.s32 %v3571, 536870912
        %v3573 = vshrl.u32 %v3572, 30
        %v3574 = vshll.u32 %v3573, 30
        %v3575 = vsub.s32 %v3571, %v3574
        %vm3576 = vcmp.lt.s32.totalorder %v3575, 0
        %v3577 = vsub.s32 0, %v3575
        %v3578 = vsel %vm3576, %v3577, %v3575
        %v3579 = vclz %v3578
        %v3580 = vsub.s32 %v3579, 2
        %vm3581 = vcmp.gt.s32.totalorder 0, %v3580
        %v3582 = vsel %vm3581, 0, %v3580
        %v3583 = vsub.s32 32, %v3582
        %v3584 = vshll.u32 %v3575, %v3582
        %v3585 = vshrl.u32 %v3567, %v3583
        %v3586 = vor.u32 %v3584, %v3585
        %v3587 = vsub.s32 4294967266, %v3582
        %v3588 = vadd.s32 %v3587, 127
        %v3589 = vshll.u32 %v3588, 23
        %v3590 = vor.u32 4788187, %v3589
        %v3591 = vand.u32 2147483647, %v3590
        %v3593 = vcvt.s32.f32 %v3586
        %v3594 = vmul.f32 %v3593, %v3591
        %v3595 = vxor.u32 %v3594, 2147483648
        %v3596 = vsel %vm3513, %v3595, %v3594
        %v3597 = vsub.s32 4, %v3573
        %v3598 = vsel %vm3513, %v3597, %v3573
        %v3599 = vsel %vm3512, %v2359, %v3596
        %v3600 = vsel %vm3512, 0, %v3598
        %v3601 = vcosq.f32.pop %v3599
        %v3602 = vsinq.f32.pop %v3599
        %vm3603 = vweird.f32 %v2359
        %v3604 = vadd.s32 %v3600, 3
        %v3605 = vand.u32 %v3604, 3
        %vm3606 = vcmp.lt.s32.totalorder %v3605, 2
        %vm3607 = vcmp.eq.s32.totalorder %v3605, 0
        %v3608 = vxor.u32 %v3602, 2147483648
        %v3609 = vsel %vm3607, %v3601, %v3608
        %vm3610 = vcmp.eq.s32.totalorder %v3605, 2
        %v3611 = vxor.u32 %v3601, 2147483648
        %v3612 = vsel %vm3610, %v3611, %v3602
        %v3613 = vsel %vm3606, %v3609, %v3612
        %v3614 = vsel %vm3603, nan, %v3613
        %v3615 = vand.u32 2147483647, %v2274
        %vm3616 = vcmp.le.f32.partialorder %v3615, 0.7853982
        %vm3617 = vcmp.lt.s32.totalorder %v2274, 0
        %v3618 = vand.u32 %v2274, 2139095040
        %v3619 = vshrl.u32 %v3618, 23
        %v3620 = vsub.s32 %v3619, 127
        %v3621 = vand.u32 2147483647, %v2274
        %v3622 = vand.u32 %v3621, 8388607
        %v3623 = vor.u32 %v3622, 8388608
        %v3624 = vsub.s32 0, %v3623
        %v3625 = vadd.s32 %v3620, 1
        %vm3626 = vcmp.gt.s32.totalorder %v3625, 0
        %v3627 = vsel %vm3626, %v3625, 0
        %v3628 = vshrl.u32 %v3627, 5
        %v3629 = vand.u32 %v3627, 31
        %v3630 = vsub.s32 32, %v3629
        %v3631 = vshrl.u32 683565275, %v3630
        %v3632 = vshll.u32 683565275, %v3629
        %v3633 = vshrl.u32 2475754826, %v3630
        %v3634 = vor.u32 %v3632, %v3633
        %v3635 = vshll.u32 2475754826, %v3629
        %v3636 = vshrl.u32 2131351028, %v3630
        %v3637 = vor.u32 %v3635, %v3636
        %v3638 = vshll.u32 2131351028, %v3629
        %v3639 = vshrl.u32 2102212464, %v3630
        %v3640 = vor.u32 %v3638, %v3639
        %v3641 = vshll.u32 2102212464, %v3629
        %v3642 = vshrl.u32 920167782, %v3630
        %v3643 = vor.u32 %v3641, %v3642
        %v3644 = vshll.u32 920167782, %v3629
        %v3645 = vshrl.u32 1326507024, %v3630
        %v3646 = vor.u32 %v3644, %v3645
        %vm3647 = vcmp.lt.s32.totalorder %v3628, 1
        %vm3648 = vcmp.lt.s32.totalorder %v3628, 2
        %vm3649 = vcmp.lt.s32.totalorder %v3628, 3
        %vm3650 = vcmp.lt.s32.totalorder %v3628, 4
        %v3651 = vsel %vm3647, %v3631, %v3634
        %v3652 = vsel %vm3650, %v3640, 2102212464
        %v3653 = vsel %vm3649, %v3637, %v3652
        %v3654 = vsel %vm3648, %v3651, %v3653
        %v3655 = vsel %vm3647, %v3634, %v3637
        %v3656 = vsel %vm3650, %v3643, 920167782
        %v3657 = vsel %vm3649, %v3640, %v3656
        %v3658 = vsel %vm3648, %v3655, %v3657
        %v3659 = vsel %vm3647, %v3637, %v3640
        %v3660 = vsel %vm3650, %v3646, 1326507024
        %v3661 = vsel %vm3649, %v3643, %v3660
        %v3662 = vsel %vm3648, %v3659, %v3661
        %v3663 = vshll.u32 %v3623, 8
        %v3664 = vmul.u32.u64.compose %v3663, %v3662
        %v3665 = vextract.low.u32 %v3664
        %v3666 = vextract.high.u32 %v3664
        %v3667 = vmul.u32.u64.compose %v3663, %v3658
        %v3668 = vextract.low.u32 %v3667
        %v3669 = vextract.high.u32 %v3667
        %v3670 = vmul.u32 %v3663, %v3654
        %v3671 = vadd.s32 %v3666, %v3668
        %vm3672 = vc.u32 %v3666, %v3668
        %v3673 = vadd.s32 %v3669, 1
        %v3674 = vsel %vm3672, %v3673, %v3669
        %v3675 = vadd.s32 %v3670, %v3674
        %v3676 = vadd.s32 %v3675, 536870912
        %v3677 = vshrl.u32 %v3676, 30
        %v3678 = vshll.u32 %v3677, 30
        %v3679 = vsub.s32 %v3675, %v3678
        %vm3680 = vcmp.lt.s32.totalorder %v3679, 0
        %v3681 = vsub.s32 0, %v3679
        %v3682 = vsel %vm3680, %v3681, %v3679
        %v3683 = vclz %v3682
        %v3684 = vsub.s32 %v3683, 2
        %vm3685 = vcmp.gt.s32.totalorder 0, %v3684
        %v3686 = vsel %vm3685, 0, %v3684
        %v3687 = vsub.s32 32, %v3686
        %v3688 = vshll.u32 %v3679, %v3686
        %v3689 = vshrl.u32 %v3671, %v3687
        %v3690 = vor.u32 %v3688, %v3689
        %v3691 = vsub.s32 4294967266, %v3686
        %v3692 = vadd.s32 %v3691, 127
        %v3693 = vshll.u32 %v3692, 23
        %v3694 = vor.u32 4788187, %v3693
        %v3695 = vand.u32 2147483647, %v3694
        %v3697 = vcvt.s32.f32 %v3690
        %v3698 = vmul.f32 %v3697, %v3695
        %v3699 = vxor.u32 %v3698, 2147483648
        %v3700 = vsel %vm3617, %v3699, %v3698
        %v3701 = vsub.s32 4, %v3677
        %v3702 = vsel %vm3617, %v3701, %v3677
        %v3703 = vsel %vm3616, %v2274, %v3700
        %v3704 = vsel %vm3616, 0, %v3702
        %v3705 = vcosq.f32.pop %v3703
        %v3706 = vsinq.f32.pop %v3703
        %vm3707 = vweird.f32 %v2274
        %v3708 = vadd.s32 %v3704, 3
        %v3709 = vand.u32 %v3708, 3
        %vm3710 = vcmp.lt.s32.totalorder %v3709, 2
        %vm3711 = vcmp.eq.s32.totalorder %v3709, 0
        %v3712 = vxor.u32 %v3706, 2147483648
        %v3713 = vsel %vm3711, %v3705, %v3712
        %vm3714 = vcmp.eq.s32.totalorder %v3709, 2
        %v3715 = vxor.u32 %v3705, 2147483648
        %v3716 = vsel %vm3714, %v3715, %v3706
        %v3717 = vsel %vm3710, %v3713, %v3716
        %v3718 = vsel %vm3707, nan, %v3717
        %v3719 = vand.u32 2147483647, %v2276
        %vm3720 = vcmp.le.f32.partialorder %v3719, 0.7853982
        %vm3721 = vcmp.lt.s32.totalorder %v2276, 0
        %v3722 = vand.u32 %v2276, 2139095040
        %v3723 = vshrl.u32 %v3722, 23
        %v3724 = vsub.s32 %v3723, 127
        %v3725 = vand.u32 2147483647, %v2276
        %v3726 = vand.u32 %v3725, 8388607
        %v3727 = vor.u32 %v3726, 8388608
        %v3728 = vsub.s32 0, %v3727
        %v3729 = vadd.s32 %v3724, 1
        %vm3730 = vcmp.gt.s32.totalorder %v3729, 0
        %v3731 = vsel %vm3730, %v3729, 0
        %v3732 = vshrl.u32 %v3731, 5
        %v3733 = vand.u32 %v3731, 31
        %v3734 = vsub.s32 32, %v3733
        %v3735 = vshrl.u32 683565275, %v3734
        %v3736 = vshll.u32 683565275, %v3733
        %v3737 = vshrl.u32 2475754826, %v3734
        %v3738 = vor.u32 %v3736, %v3737
        %v3739 = vshll.u32 2475754826, %v3733
        %v3740 = vshrl.u32 2131351028, %v3734
        %v3741 = vor.u32 %v3739, %v3740
        %v3742 = vshll.u32 2131351028, %v3733
        %v3743 = vshrl.u32 2102212464, %v3734
        %v3744 = vor.u32 %v3742, %v3743
        %v3745 = vshll.u32 2102212464, %v3733
        %v3746 = vshrl.u32 920167782, %v3734
        %v3747 = vor.u32 %v3745, %v3746
        %v3748 = vshll.u32 920167782, %v3733
        %v3749 = vshrl.u32 1326507024, %v3734
        %v3750 = vor.u32 %v3748, %v3749
        %vm3751 = vcmp.lt.s32.totalorder %v3732, 1
        %vm3752 = vcmp.lt.s32.totalorder %v3732, 2
        %vm3753 = vcmp.lt.s32.totalorder %v3732, 3
        %vm3754 = vcmp.lt.s32.totalorder %v3732, 4
        %v3755 = vsel %vm3751, %v3735, %v3738
        %v3756 = vsel %vm3754, %v3744, 2102212464
        %v3757 = vsel %vm3753, %v3741, %v3756
        %v3758 = vsel %vm3752, %v3755, %v3757
        %v3759 = vsel %vm3751, %v3738, %v3741
        %v3760 = vsel %vm3754, %v3747, 920167782
        %v3761 = vsel %vm3753, %v3744, %v3760
        %v3762 = vsel %vm3752, %v3759, %v3761
        %v3763 = vsel %vm3751, %v3741, %v3744
        %v3764 = vsel %vm3754, %v3750, 1326507024
        %v3765 = vsel %vm3753, %v3747, %v3764
        %v3766 = vsel %vm3752, %v3763, %v3765
        %v3767 = vshll.u32 %v3727, 8
        %v3768 = vmul.u32.u64.compose %v3767, %v3766
        %v3769 = vextract.low.u32 %v3768
        %v3770 = vextract.high.u32 %v3768
        %v3771 = vmul.u32.u64.compose %v3767, %v3762
        %v3772 = vextract.low.u32 %v3771
        %v3773 = vextract.high.u32 %v3771
        %v3774 = vmul.u32 %v3767, %v3758
        %v3775 = vadd.s32 %v3770, %v3772
        %vm3776 = vc.u32 %v3770, %v3772
        %v3777 = vadd.s32 %v3773, 1
        %v3778 = vsel %vm3776, %v3777, %v3773
        %v3779 = vadd.s32 %v3774, %v3778
        %v3780 = vadd.s32 %v3779, 536870912
        %v3781 = vshrl.u32 %v3780, 30
        %v3782 = vshll.u32 %v3781, 30
        %v3783 = vsub.s32 %v3779, %v3782
        %vm3784 = vcmp.lt.s32.totalorder %v3783, 0
        %v3785 = vsub.s32 0, %v3783
        %v3786 = vsel %vm3784, %v3785, %v3783
        %v3787 = vclz %v3786
        %v3788 = vsub.s32 %v3787, 2
        %vm3789 = vcmp.gt.s32.totalorder 0, %v3788
        %v3790 = vsel %vm3789, 0, %v3788
        %v3791 = vsub.s32 32, %v3790
        %v3792 = vshll.u32 %v3783, %v3790
        %v3793 = vshrl.u32 %v3775, %v3791
        %v3794 = vor.u32 %v3792, %v3793
        %v3795 = vsub.s32 4294967266, %v3790
        %v3796 = vadd.s32 %v3795, 127
        %v3797 = vshll.u32 %v3796, 23
        %v3798 = vor.u32 4788187, %v3797
        %v3799 = vand.u32 2147483647, %v3798
        %v3801 = vcvt.s32.f32 %v3794
        %v3802 = vmul.f32 %v3801, %v3799
        %v3803 = vxor.u32 %v3802, 2147483648
        %v3804 = vsel %vm3721, %v3803, %v3802
        %v3805 = vsub.s32 4, %v3781
        %v3806 = vsel %vm3721, %v3805, %v3781
        %v3807 = vsel %vm3720, %v2276, %v3804
        %v3808 = vsel %vm3720, 0, %v3806
        %v3809 = vcosq.f32.pop %v3807
        %v3810 = vsinq.f32.pop %v3807
        %vm3811 = vweird.f32 %v2276
        %v3812 = vadd.s32 %v3808, 3
        %v3813 = vand.u32 %v3812, 3
        %vm3814 = vcmp.lt.s32.totalorder %v3813, 2
        %vm3815 = vcmp.eq.s32.totalorder %v3813, 0
        %v3816 = vxor.u32 %v3810, 2147483648
        %v3817 = vsel %vm3815, %v3809, %v3816
        %vm3818 = vcmp.eq.s32.totalorder %v3813, 2
        %v3819 = vxor.u32 %v3809, 2147483648
        %v3820 = vsel %vm3818, %v3819, %v3810
        %v3821 = vsel %vm3814, %v3817, %v3820
        %v3822 = vsel %vm3811, nan, %v3821
        %v3823 = vand.u32 2147483647, %v2363
        %vm3824 = vcmp.le.f32.partialorder %v3823, 0.7853982
        %vm3825 = vcmp.lt.s32.totalorder %v2363, 0
        %v3826 = vand.u32 %v2363, 2139095040
        %v3827 = vshrl.u32 %v3826, 23
        %v3828 = vsub.s32 %v3827, 127
        %v3829 = vand.u32 2147483647, %v2363
        %v3830 = vand.u32 %v3829, 8388607
        %v3831 = vor.u32 %v3830, 8388608
        %v3832 = vsub.s32 0, %v3831
        %v3833 = vadd.s32 %v3828, 1
        %vm3834 = vcmp.gt.s32.totalorder %v3833, 0
        %v3835 = vsel %vm3834, %v3833, 0
        %v3836 = vshrl.u32 %v3835, 5
        %v3837 = vand.u32 %v3835, 31
        %v3838 = vsub.s32 32, %v3837
        %v3839 = vshrl.u32 683565275, %v3838
        %v3840 = vshll.u32 683565275, %v3837
        %v3841 = vshrl.u32 2475754826, %v3838
        %v3842 = vor.u32 %v3840, %v3841
        %v3843 = vshll.u32 2475754826, %v3837
        %v3844 = vshrl.u32 2131351028, %v3838
        %v3845 = vor.u32 %v3843, %v3844
        %v3846 = vshll.u32 2131351028, %v3837
        %v3847 = vshrl.u32 2102212464, %v3838
        %v3848 = vor.u32 %v3846, %v3847
        %v3849 = vshll.u32 2102212464, %v3837
        %v3850 = vshrl.u32 920167782, %v3838
        %v3851 = vor.u32 %v3849, %v3850
        %v3852 = vshll.u32 920167782, %v3837
        %v3853 = vshrl.u32 1326507024, %v3838
        %v3854 = vor.u32 %v3852, %v3853
        %vm3855 = vcmp.lt.s32.totalorder %v3836, 1
        %vm3856 = vcmp.lt.s32.totalorder %v3836, 2
        %vm3857 = vcmp.lt.s32.totalorder %v3836, 3
        %vm3858 = vcmp.lt.s32.totalorder %v3836, 4
        %v3859 = vsel %vm3855, %v3839, %v3842
        %v3860 = vsel %vm3858, %v3848, 2102212464
        %v3861 = vsel %vm3857, %v3845, %v3860
        %v3862 = vsel %vm3856, %v3859, %v3861
        %v3863 = vsel %vm3855, %v3842, %v3845
        %v3864 = vsel %vm3858, %v3851, 920167782
        %v3865 = vsel %vm3857, %v3848, %v3864
        %v3866 = vsel %vm3856, %v3863, %v3865
        %v3867 = vsel %vm3855, %v3845, %v3848
        %v3868 = vsel %vm3858, %v3854, 1326507024
        %v3869 = vsel %vm3857, %v3851, %v3868
        %v3870 = vsel %vm3856, %v3867, %v3869
        %v3871 = vshll.u32 %v3831, 8
        %v3872 = vmul.u32.u64.compose %v3871, %v3870
        %v3873 = vextract.low.u32 %v3872
        %v3874 = vextract.high.u32 %v3872
        %v3875 = vmul.u32.u64.compose %v3871, %v3866
        %v3876 = vextract.low.u32 %v3875
        %v3877 = vextract.high.u32 %v3875
        %v3878 = vmul.u32 %v3871, %v3862
        %v3879 = vadd.s32 %v3874, %v3876
        %vm3880 = vc.u32 %v3874, %v3876
        %v3881 = vadd.s32 %v3877, 1
        %v3882 = vsel %vm3880, %v3881, %v3877
        %v3883 = vadd.s32 %v3878, %v3882
        %v3884 = vadd.s32 %v3883, 536870912
        %v3885 = vshrl.u32 %v3884, 30
        %v3886 = vshll.u32 %v3885, 30
        %v3887 = vsub.s32 %v3883, %v3886
        %vm3888 = vcmp.lt.s32.totalorder %v3887, 0
        %v3889 = vsub.s32 0, %v3887
        %v3890 = vsel %vm3888, %v3889, %v3887
        %v3891 = vclz %v3890
        %v3892 = vsub.s32 %v3891, 2
        %vm3893 = vcmp.gt.s32.totalorder 0, %v3892
        %v3894 = vsel %vm3893, 0, %v3892
        %v3895 = vsub.s32 32, %v3894
        %v3896 = vshll.u32 %v3887, %v3894
        %v3897 = vshrl.u32 %v3879, %v3895
        %v3898 = vor.u32 %v3896, %v3897
        %v3899 = vsub.s32 4294967266, %v3894
        %v3900 = vadd.s32 %v3899, 127
        %v3901 = vshll.u32 %v3900, 23
        %v3902 = vor.u32 4788187, %v3901
        %v3903 = vand.u32 2147483647, %v3902
        %v3905 = vcvt.s32.f32 %v3898
        %v3906 = vmul.f32 %v3905, %v3903
        %v3907 = vxor.u32 %v3906, 2147483648
        %v3908 = vsel %vm3825, %v3907, %v3906
        %v3909 = vsub.s32 4, %v3885
        %v3910 = vsel %vm3825, %v3909, %v3885
        %v3911 = vsel %vm3824, %v2363, %v3908
        %v3912 = vsel %vm3824, 0, %v3910
        %v3913 = vcosq.f32.pop %v3911
        %v3914 = vsinq.f32.pop %v3911
        %vm3915 = vweird.f32 %v2363
        %v3916 = vadd.s32 %v3912, 3
        %v3917 = vand.u32 %v3916, 3
        %vm3918 = vcmp.lt.s32.totalorder %v3917, 2
        %vm3919 = vcmp.eq.s32.totalorder %v3917, 0
        %v3920 = vxor.u32 %v3914, 2147483648
        %v3921 = vsel %vm3919, %v3913, %v3920
        %vm3922 = vcmp.eq.s32.totalorder %v3917, 2
        %v3923 = vxor.u32 %v3913, 2147483648
        %v3924 = vsel %vm3922, %v3923, %v3914
        %v3925 = vsel %vm3918, %v3921, %v3924
        %v3926 = vsel %vm3915, nan, %v3925
        %v3927 = vand.u32 2147483647, %v2365
        %vm3928 = vcmp.le.f32.partialorder %v3927, 0.7853982
        %vm3929 = vcmp.lt.s32.totalorder %v2365, 0
        %v3930 = vand.u32 %v2365, 2139095040
        %v3931 = vshrl.u32 %v3930, 23
        %v3932 = vsub.s32 %v3931, 127
        %v3933 = vand.u32 2147483647, %v2365
        %v3934 = vand.u32 %v3933, 8388607
        %v3935 = vor.u32 %v3934, 8388608
        %v3936 = vsub.s32 0, %v3935
        %v3937 = vadd.s32 %v3932, 1
        %vm3938 = vcmp.gt.s32.totalorder %v3937, 0
        %v3939 = vsel %vm3938, %v3937, 0
        %v3940 = vshrl.u32 %v3939, 5
        %v3941 = vand.u32 %v3939, 31
        %v3942 = vsub.s32 32, %v3941
        %v3943 = vshrl.u32 683565275, %v3942
        %v3944 = vshll.u32 683565275, %v3941
        %v3945 = vshrl.u32 2475754826, %v3942
        %v3946 = vor.u32 %v3944, %v3945
        %v3947 = vshll.u32 2475754826, %v3941
        %v3948 = vshrl.u32 2131351028, %v3942
        %v3949 = vor.u32 %v3947, %v3948
        %v3950 = vshll.u32 2131351028, %v3941
        %v3951 = vshrl.u32 2102212464, %v3942
        %v3952 = vor.u32 %v3950, %v3951
        %v3953 = vshll.u32 2102212464, %v3941
        %v3954 = vshrl.u32 920167782, %v3942
        %v3955 = vor.u32 %v3953, %v3954
        %v3956 = vshll.u32 920167782, %v3941
        %v3957 = vshrl.u32 1326507024, %v3942
        %v3958 = vor.u32 %v3956, %v3957
        %vm3959 = vcmp.lt.s32.totalorder %v3940, 1
        %vm3960 = vcmp.lt.s32.totalorder %v3940, 2
        %vm3961 = vcmp.lt.s32.totalorder %v3940, 3
        %vm3962 = vcmp.lt.s32.totalorder %v3940, 4
        %v3963 = vsel %vm3959, %v3943, %v3946
        %v3964 = vsel %vm3962, %v3952, 2102212464
        %v3965 = vsel %vm3961, %v3949, %v3964
        %v3966 = vsel %vm3960, %v3963, %v3965
        %v3967 = vsel %vm3959, %v3946, %v3949
        %v3968 = vsel %vm3962, %v3955, 920167782
        %v3969 = vsel %vm3961, %v3952, %v3968
        %v3970 = vsel %vm3960, %v3967, %v3969
        %v3971 = vsel %vm3959, %v3949, %v3952
        %v3972 = vsel %vm3962, %v3958, 1326507024
        %v3973 = vsel %vm3961, %v3955, %v3972
        %v3974 = vsel %vm3960, %v3971, %v3973
        %v3975 = vshll.u32 %v3935, 8
        %v3976 = vmul.u32.u64.compose %v3975, %v3974
        %v3977 = vextract.low.u32 %v3976
        %v3978 = vextract.high.u32 %v3976
        %v3979 = vmul.u32.u64.compose %v3975, %v3970
        %v3980 = vextract.low.u32 %v3979
        %v3981 = vextract.high.u32 %v3979
        %v3982 = vmul.u32 %v3975, %v3966
        %v3983 = vadd.s32 %v3978, %v3980
        %vm3984 = vc.u32 %v3978, %v3980
        %v3985 = vadd.s32 %v3981, 1
        %v3986 = vsel %vm3984, %v3985, %v3981
        %v3987 = vadd.s32 %v3982, %v3986
        %v3988 = vadd.s32 %v3987, 536870912
        %v3989 = vshrl.u32 %v3988, 30
        %v3990 = vshll.u32 %v3989, 30
        %v3991 = vsub.s32 %v3987, %v3990
        %vm3992 = vcmp.lt.s32.totalorder %v3991, 0
        %v3993 = vsub.s32 0, %v3991
        %v3994 = vsel %vm3992, %v3993, %v3991
        %v3995 = vclz %v3994
        %v3996 = vsub.s32 %v3995, 2
        %vm3997 = vcmp.gt.s32.totalorder 0, %v3996
        %v3998 = vsel %vm3997, 0, %v3996
        %v3999 = vsub.s32 32, %v3998
        %v4000 = vshll.u32 %v3991, %v3998
        %v4001 = vshrl.u32 %v3983, %v3999
        %v4002 = vor.u32 %v4000, %v4001
        %v4003 = vsub.s32 4294967266, %v3998
        %v4004 = vadd.s32 %v4003, 127
        %v4005 = vshll.u32 %v4004, 23
        %v4006 = vor.u32 4788187, %v4005
        %v4007 = vand.u32 2147483647, %v4006
        %v4009 = vcvt.s32.f32 %v4002
        %v4010 = vmul.f32 %v4009, %v4007
        %v4011 = vxor.u32 %v4010, 2147483648
        %v4012 = vsel %vm3929, %v4011, %v4010
        %v4013 = vsub.s32 4, %v3989
        %v4014 = vsel %vm3929, %v4013, %v3989
        %v4015 = vsel %vm3928, %v2365, %v4012
        %v4016 = vsel %vm3928, 0, %v4014
        %v4017 = vcosq.f32.pop %v4015
        %v4018 = vsinq.f32.pop %v4015
        %vm4019 = vweird.f32 %v2365
        %v4020 = vadd.s32 %v4016, 3
        %v4021 = vand.u32 %v4020, 3
        %vm4022 = vcmp.lt.s32.totalorder %v4021, 2
        %vm4023 = vcmp.eq.s32.totalorder %v4021, 0
        %v4024 = vxor.u32 %v4018, 2147483648
        %v4025 = vsel %vm4023, %v4017, %v4024
        %vm4026 = vcmp.eq.s32.totalorder %v4021, 2
        %v4027 = vxor.u32 %v4017, 2147483648
        %v4028 = vsel %vm4026, %v4027, %v4018
        %v4029 = vsel %vm4022, %v4025, %v4028
        %v4030 = vsel %vm4019, nan, %v4029
        %v4031 = vld [vmem:[%s5] sm:$0x1]
        %v4032 = vld [vmem:[#allocation2] sm:$0x1]
        %4034 = vset.pattern.permute.xlu0 0
        %4035 = vperm.xlu0 %4034, %v4032
        %v4036 = vpop.permute.xlu0 %4035
        %v4038 = vlaneseq
        %v4039 = vshrl.u32 %v4038, 7
        %v4040 = vsub.s32 0, %v4039
        %v4041 = vrot.slane %v4036, %v4040
        %v4043 = vsel %vm2176, %v4031, 0
        %4045 = vmatprep.subr.mxu0 %v2574
        %4046 = vmatpush1.msra.mxu0 %v2470
        %4047 = vmatprep.subr.mxu0 %v2990
        %4048 = vmatpush1.msra.mxu0 %v2886
        %4049 = vmatprep.subr.mxu0 %v3406
        %4050 = vmatpush1.msra.mxu0 %v3302
        %4051 = vmatprep.subr.mxu0 %v3822
        %4052 = vmatpush1.msra.mxu0 %v3718
        %4053 = vmatprep.subr.mxu0 0.0
        %4054 = vmatpush1.msra.mxu0 0.0
        %4055 = vmatprep.subr.mxu0 0.0
        %4056 = vmatpush1.msra.mxu0 0.0
        %4057 = vmatprep.subr.mxu0 0.0
        %4058 = vmatpush1.msra.mxu0 0.0
        %4059 = vmatprep.subr.mxu0 0.0
        %4060 = vmatpush1.msra.mxu0 0.0
        %4061 = vmatprep.subr.mxu0 0.0
        %4062 = vmatpush1.msra.mxu0 0.0
        %4063 = vmatprep.subr.mxu0 0.0
        %4064 = vmatpush1.msra.mxu0 0.0
        %4065 = vmatprep.subr.mxu0 0.0
        %4066 = vmatpush1.msra.mxu0 0.0
        %4067 = vmatprep.subr.mxu0 0.0
        %4068 = vmatpush1.msra.mxu0 0.0
        %4069 = vmatprep.subr.mxu0 0.0
        %4070 = vmatpush1.msra.mxu0 0.0
        %4071 = vmatprep.subr.mxu0 0.0
        %4072 = vmatpush1.msra.mxu0 0.0
        %4073 = vmatprep.subr.mxu0 0.0
        %4074 = vmatpush1.msra.mxu0 0.0
        %4075 = vmatprep.subr.mxu0 0.0
        %4076 = vmatpush1.msra.mxu0 0.0
        %4077 = vmatprep.subr.mxu0 0.0
        %4078 = vmatpush1.msra.mxu0 0.0
        %4079 = vmatprep.subr.mxu0 0.0
        %4080 = vmatpush1.msra.mxu0 0.0
        %4081 = vmatprep.subr.mxu0 0.0
        %4082 = vmatpush1.msra.mxu0 0.0
        %4083 = vmatprep.subr.mxu0 0.0
        %4084 = vmatpush1.msra.mxu0 0.0
        %4085 = vmatprep.subr.mxu0 0.0
        %4086 = vmatpush1.msra.mxu0 0.0
        %4087 = vmatprep.subr.mxu0 0.0
        %4088 = vmatpush1.msra.mxu0 0.0
        %4089 = vmatprep.subr.mxu0 0.0
        %4090 = vmatpush1.msra.mxu0 0.0
        %4091 = vmatprep.subr.mxu0 0.0
        %4092 = vmatpush1.msra.mxu0 0.0
        %4093 = vmatprep.subr.mxu0 0.0
        %4094 = vmatpush1.msra.mxu0 0.0
        %4095 = vmatprep.subr.mxu0 0.0
        %4096 = vmatpush1.msra.mxu0 0.0
        %4097 = vmatprep.subr.mxu0 0.0
        %4098 = vmatpush1.msra.mxu0 0.0
        %4099 = vmatprep.subr.mxu0 0.0
        %4100 = vmatpush1.msra.mxu0 0.0
        %4101 = vmatprep.subr.mxu0 0.0
        %4102 = vmatpush1.msra.mxu0 0.0
        %4103 = vmatprep.subr.mxu0 0.0
        %4104 = vmatpush1.msra.mxu0 0.0
        %4105 = vmatprep.subr.mxu0 0.0
        %4106 = vmatpush1.msra.mxu0 0.0
        %4107 = vmatprep.subr.mxu0 0.0
        %4108 = vmatpush1.msra.mxu0 0.0
        %4109 = vmatprep.mubr.f32.mxu0 0.0
        %4110 = vmatmul.mubr.f32.gmra.mrb[0].mxu0 %v4043
        %v4111 = vpop.f32.mrb[0].mxu0
        %v4112 = vadd.f32 %v4041, %v4111
        %v4113 = vpop.f32.mrb[0].mxu0
        %v4114 = vadd.f32 %v4041, %v4113
        %4115 = vdwg.mxu0
        %4116 = vmatprep.subr.mxu0 %v2782
        %4117 = vmatpush1.msra.mxu0 %v2678
        %4118 = vmatprep.subr.mxu0 %v3198
        %4119 = vmatpush1.msra.mxu0 %v3094
        %4120 = vmatprep.subr.mxu0 %v3614
        %4121 = vmatpush1.msra.mxu0 %v3510
        %4122 = vmatprep.subr.mxu0 %v4030
        %4123 = vmatpush1.msra.mxu0 %v3926
        %4124 = vmatprep.subr.mxu0 0.0
        %4125 = vmatpush1.msra.mxu0 0.0
        %4126 = vmatprep.subr.mxu0 0.0
        %4127 = vmatpush1.msra.mxu0 0.0
        %4128 = vmatprep.subr.mxu0 0.0
        %4129 = vmatpush1.msra.mxu0 0.0
        %4130 = vmatprep.subr.mxu0 0.0
        %4131 = vmatpush1.msra.mxu0 0.0
        %4132 = vmatprep.subr.mxu0 0.0
        %4133 = vmatpush1.msra.mxu0 0.0
        %4134 = vmatprep.subr.mxu0 0.0
        %4135 = vmatpush1.msra.mxu0 0.0
        %4136 = vmatprep.subr.mxu0 0.0
        %4137 = vmatpush1.msra.mxu0 0.0
        %4138 = vmatprep.subr.mxu0 0.0
        %4139 = vmatpush1.msra.mxu0 0.0
        %4140 = vmatprep.subr.mxu0 0.0
        %4141 = vmatpush1.msra.mxu0 0.0
        %4142 = vmatprep.subr.mxu0 0.0
        %4143 = vmatpush1.msra.mxu0 0.0
        %4144 = vmatprep.subr.mxu0 0.0
        %4145 = vmatpush1.msra.mxu0 0.0
        %4146 = vmatprep.subr.mxu0 0.0
        %4147 = vmatpush1.msra.mxu0 0.0
        %4148 = vmatprep.subr.mxu0 0.0
        %4149 = vmatpush1.msra.mxu0 0.0
        %4150 = vmatprep.subr.mxu0 0.0
        %4151 = vmatpush1.msra.mxu0 0.0
        %4152 = vmatprep.subr.mxu0 0.0
        %4153 = vmatpush1.msra.mxu0 0.0
        %4154 = vmatprep.subr.mxu0 0.0
        %4155 = vmatpush1.msra.mxu0 0.0
        %4156 = vmatprep.subr.mxu0 0.0
        %4157 = vmatpush1.msra.mxu0 0.0
        %4158 = vmatprep.subr.mxu0 0.0
        %4159 = vmatpush1.msra.mxu0 0.0
        %4160 = vmatprep.subr.mxu0 0.0
        %4161 = vmatpush1.msra.mxu0 0.0
        %4162 = vmatprep.subr.mxu0 0.0
        %4163 = vmatpush1.msra.mxu0 0.0
        %4164 = vmatprep.subr.mxu0 0.0
        %4165 = vmatpush1.msra.mxu0 0.0
        %4166 = vmatprep.subr.mxu0 0.0
        %4167 = vmatpush1.msra.mxu0 0.0
        %4168 = vmatprep.subr.mxu0 0.0
        %4169 = vmatpush1.msra.mxu0 0.0
        %4170 = vmatprep.subr.mxu0 0.0
        %4171 = vmatpush1.msra.mxu0 0.0
        %4172 = vmatprep.subr.mxu0 0.0
        %4173 = vmatpush1.msra.mxu0 0.0
        %4174 = vmatprep.subr.mxu0 0.0
        %4175 = vmatpush1.msra.mxu0 0.0
        %4176 = vmatprep.subr.mxu0 0.0
        %4177 = vmatpush1.msra.mxu0 0.0
        %4178 = vmatprep.subr.mxu0 0.0
        %4179 = vmatpush1.msra.mxu0 0.0
        %4180 = vmatprep.mubr.f32.mxu0 0.0
        %4181 = vmatmul.mubr.f32.gmra.mrb[0].mxu0 %v4043
        %v4182 = vpop.f32.mrb[0].mxu0
        %v4183 = vadd.f32 %v4041, %v4182
        %v4184 = vpop.f32.mrb[0].mxu0
        %v4185 = vadd.f32 %v4041, %v4184
        %4186 = vdwg.mxu0
        %v4191 = vcombine.low %v4112, %v4114
        %v4192 = vcombine.low %v4183, %v4185
        %v4194 = vunpack.c.l.s4 1966171168
        %v4195 = vunpack.c.0.s8 %v4194
        %v4196 = vlaneseq
        %v4197 = vshrl.u32 %v4196, 7
        %v4198 = vsub.s32 %v4195, %v4197
        %v4199 = vrot.slane %v4191, %v4198
        %v4201 = vunpack.c.l.s4 1966171168
        %v4202 = vunpack.c.0.s8 %v4201
        %v4203 = vlaneseq
        %v4204 = vshrl.u32 %v4203, 7
        %v4205 = vsub.s32 %v4202, %v4204
        %v4206 = vrot.slane %v4192, %v4205
        %v4207 = vcombine.low %v4199, %v4206
        %v4209 = vunpack.c.l.s4 1966171168
        %v4210 = vunpack.c.0.s8 %v4209
        %v4211 = vlaneseq
        %v4212 = vshrl.u32 %v4211, 7
        %v4213 = vsub.s32 %v4210, %v4212
        %v4214 = vrot.slane %v4207, %v4213
        %v4216 = vlaneseq
        %vm4217 = vcmp.ge.s32.totalorder %v4216, 0
        %vm4218 = vcmp.lt.s32.totalorder %v4216, 512
        %vm4219 = vmand %vm4217, %vm4218
        %4220 = vst.msk [vmem:[%s274] sm:$0xf] %vm4219, %v4214
        %s4221 = sand.u32 %s183, 1
        %s4222 = scalar_lea.sflag [#allocation4], %s4221
        %s4223 = sand.u32 %s183, 1
        %s4224 = smul.addr %s4223, 4
        %s4225 = scalar_lea.vmem [#allocation3], %s4224
        // Predicated region
        $region49: #{tpu_custom_call.1} parent=47 // pred_check
          %p4226 = pneg %p193
        $region50: #{tpu_custom_call.1} parent=47 // pred_check_branch
          %4228 = sbr.rel (%p4226) target = $region52
        $region51: #{tpu_custom_call.1} parent=47 // pred_region
          %s4229 = smul.u32 4, %s23
          %s4231 = ssub.s32 64, 64
          %4232 = vsyncadd %s4222, %s4231
          %s4233 = smul.addr %s4229, 16
          %s4234 = scalar_lea.hbm %s7, %s4233
          %s4236 = sshll.u32 %s4225, 4
          %s4237 = int_to_ptr.vmem [resolvable:$true] %s4236
          %4239 = dma.vmem_to_hbm [thread:$0]  %s4237, 64, %s4234, %s4222
        $region52: #{tpu_custom_call.1} parent=47 // pred_fallthru
          _
      $region48: #{tpu_custom_call.1} parent=5 // pred_fallthru
        _
      %p4240 = scmp.le.s32.totalorder 2, %s18
      // Predicated region
      $region53: #{tpu_custom_call.1} parent=5 // pred_check
        %p4241 = pneg %p4240
      $region54: #{tpu_custom_call.1} parent=5 // pred_check_branch
        %4243 = sbr.rel (%p4241) target = $region56
      $region55: #{tpu_custom_call.1} parent=5 // pred_region
        %s4244 = ssub.s32 %s18, 2
        // Predicated region
        $region57: #{tpu_custom_call.1} parent=55 // pred_check
          %p4245 = pneg %p199
        $region58: #{tpu_custom_call.1} parent=55 // pred_check_branch
          %4247 = sbr.rel (%p4245) target = $region60
        $region59: #{tpu_custom_call.1} parent=55 // pred_region
          %s4248 = sand.u32 %s184, 1
          %s4249 = scalar_lea.sflag [#allocation4], %s4248
          %s4250 = sand.u32 %s184, 1
          %s4251 = smul.addr %s4250, 4
          %s4252 = scalar_lea.vmem [#allocation3], %s4251
          %4253 = dma.done %s4249, 64
        $region60: #{tpu_custom_call.1} parent=55 // pred_fallthru
          _
      $region56: #{tpu_custom_call.1} parent=5 // pred_fallthru
        _
    $region6: #{tpu_custom_call.1} parent=1 // loop_footer
      %s22 = sadd.s32 1, %s18
    $region7: #{tpu_custom_call.1} parent=1 // loop_footer_branch
      %17 = sbr.rel target = $region3
    $region8: #{tpu_custom_call.1} parent=1 // loop_exit
      _
    %4254 = vsyncpa [#allocation4], 1
    %s4255 = scalar_lea.sflag [#allocation4], 1
    %4256 = vsyncpa %s4255, 1

</llo_original>
